<compile_context>
chip_gen: v7x
topology: tpu7x:2x2x1
jax: 0.10.0
libtpu: 0.0.40
codegen_flags: <defaults>
</compile_context>

<pallas_src>
import functools

import jax
import jax.numpy as jnp
from jax.experimental import pallas as pl
from jax.experimental.pallas import tpu as pltpu


# ----------------------------------------------------------------------------
# Scaled-down BERT config
# ----------------------------------------------------------------------------
VOCAB = 512
MAX_POS = 64
TYPE_VOCAB = 2
HIDDEN = 128
NUM_HEADS = 2
HEAD_DIM = HIDDEN // NUM_HEADS
INTERMEDIATE = 256
NUM_LAYERS = 2
NUM_LABELS = 6
LN_EPS = 1e-12
MASK_LANES = 128          # additive mask padded to one lane-dense 128-wide row


# ----------------------------------------------------------------------------
# Fused embedding + encoder + pooler kernel (one grid step == TB sequences)
# ----------------------------------------------------------------------------
def _bert_kernel(
    ids_ref,                               # SMEM (Bp, S) int32 (scalar prefetch)
    mask_ref,                              # (TB, 1, 128) f32 additive mask (lanes >= S unused)
    word_ref, pos_ref, type_ref,           # (VOCAB,H) (MAX_POS,H) (TYPE_VOCAB,H) f32
    emb_g_ref, emb_b_ref,                  # (1, H) f32
    qkv_w_ref, qkv_b_ref,                  # (L, H, 3H) bf16, (L, 1, 3H) f32
    ao_w_ref, ao_b_ref,                    # (L*NH, Dh, H) bf16, (L, 1, H) f32
    ln1_g_ref, ln1_b_ref,                  # (L, 1, H) f32
    ff1_w_ref, ff1_b_ref,                  # (L, H, I) bf16, (L, 1, I) f32
    ff2_w_ref, ff2_b_ref,                  # (L, I, H) bf16, (L, 1, H) f32
    ln2_g_ref, ln2_b_ref,                  # (L, 1, H) f32
    pool_w_ref, pool_b_ref,                # (H, H) bf16, (1, H) f32
    pooled_ref,                            # out: (1, TB, H) f32
    x_scratch,                             # VMEM (TB*S, H) f32
    *, TB, S,
):
    f32 = jnp.float32
    bf16 = jnp.bfloat16

    def mm(a, w_bf16):
        # Activation cast to bf16, weights already bf16, f32 accumulation.
        return jax.lax.dot_general(
            a.astype(bf16), w_bf16,
            (((a.ndim - 1,), (0,)), ((), ())),
            preferred_element_type=f32)

    def ln(x, g, b):
        mu = jnp.mean(x, axis=-1, keepdims=True)
        var = jnp.mean((x - mu) ** 2, axis=-1, keepdims=True)
        return (x - mu) * jax.lax.rsqrt(var + LN_EPS) * g + b

    def gelu(x):
        # tanh-approx GELU: tanh runs on the EUP instead of a 5-term erf
        # polynomial on the VPU.
        # TODO(synk): HF "gelu" is exact erf-GELU; tanh approx deviates <~1e-3.
        return 0.5 * x * (1.0 + jnp.tanh(
            0.7978845608028654 * (x + 0.044715 * x * x * x)))

    base = pl.program_id(0) * TB

    # ---- fused embedding gather: word[id] rows into VMEM scratch ---------
    for bb in range(TB):
        for s in range(S):
            tok = ids_ref[base + bb, s]
            r = bb * S + s
            x_scratch[r:r + 1, :] = word_ref[pl.ds(tok, 1), :]
    pe = pos_ref[0:S, :] + type_ref[0:1, :]                 # token_type_ids = 0
    x = x_scratch[...].reshape(TB, S, HIDDEN) + pe[None, :, :]
    x = x.reshape(TB * S, HIDDEN)

    hidden = ln(x, emb_g_ref[...], emb_b_ref[...])          # (TB*S, H)

    mask_add = mask_ref[...][:, :, :S]                      # (TB, 1, S)
    scale = 1.0 / (HEAD_DIM ** 0.5)

    for l in range(NUM_LAYERS):
        # ---- fused QKV projection: one (TB*S, H) @ (H, 3H) MXU pass
        qkv = mm(hidden, qkv_w_ref[l]) + qkv_b_ref[l]       # (TB*S, 3H)
        q = qkv[:, 0 * HIDDEN:1 * HIDDEN]
        k = qkv[:, 1 * HIDDEN:2 * HIDDEN]
        v = qkv[:, 2 * HIDDEN:3 * HIDDEN]

        # ---- multi-head attention: batched over the TB sequences per head;
        #      each head's context goes straight through its own slab of the
        #      output projection (no lane-64 concatenate).
        attn = None
        for h in range(NUM_HEADS):
            sl = slice(h * HEAD_DIM, (h + 1) * HEAD_DIM)
            qh = q[:, sl].reshape(TB, S, HEAD_DIM)
            kh = k[:, sl].reshape(TB, S, HEAD_DIM)
            vh = v[:, sl].reshape(TB, S, HEAD_DIM)
            s_ = jax.lax.dot_general(                        # (TB, S, S)
                qh.astype(bf16), kh.astype(bf16),
                (((2,), (2,)), ((0,), (0,))),
                preferred_element_type=f32) * scale + mask_add
            s_ = s_ - jnp.max(s_, axis=-1, keepdims=True)
            p = jnp.exp(s_)
            p = p * pl.reciprocal(jnp.sum(p, axis=-1, keepdims=True),
                                  approx=True)
            ctx = jax.lax.dot_general(                       # (TB, S, Dh)
                p.astype(bf16), vh.astype(bf16),
                (((2,), (1,)), ((0,), (0,))),
                preferred_element_type=f32)
            part = mm(ctx.reshape(TB * S, HEAD_DIM),
                      ao_w_ref[l * NUM_HEADS + h])           # (TB*S, H)
            attn = part if attn is None else attn + part
        attn = attn + ao_b_ref[l]
        hidden = ln(attn + hidden, ln1_g_ref[l], ln1_b_ref[l])

        # ---- feed-forward: FF1 + GELU + FF2 + residual + LN (fused)
        inter = gelu(mm(hidden, ff1_w_ref[l]) + ff1_b_ref[l])
        ffn = mm(inter, ff2_w_ref[l]) + ff2_b_ref[l]
        hidden = ln(ffn + hidden, ln2_g_ref[l], ln2_b_ref[l])

    # ---- pooler: tanh(W @ [CLS]) over all TB CLS rows in one MXU pass
    cls = jnp.concatenate(
        [hidden[bb * S:bb * S + 1, :] for bb in range(TB)], axis=0)  # (TB, H)
    pooled = jnp.tanh(mm(cls, pool_w_ref[...]) + pool_b_ref[...])
    pooled_ref[0] = pooled


_WEIGHT_NAMES = (
    "word_emb", "pos_emb", "type_emb", "emb_ln_g", "emb_ln_b",
    "qkv_w", "qkv_b", "ao_w", "ao_b", "ln1_g", "ln1_b",
    "ff1_w", "ff1_b", "ff2_w", "ff2_b", "ln2_g", "ln2_b",
    "pooler_w", "pooler_b",
)


def _pick_tb(B):
    # 16-32 sequences per grid step fills the MXU M dimension (TB*S rows);
    # keep >=2 grid steps when B > 1 so v7x's two TensorCores both get work.
    # TODO(synk): bias TB larger on single-TC v5e/v6e when B is large.
    return max(1, min(16, B // 2)) if B > 1 else 1


def bert_encoder_pooler(input_ids, add_mask, params, TB):
    """input_ids: (Bp,S) int32; add_mask: (Bp,1,128) f32. Returns pooled (Bp,H)."""
    Bp, S = input_ids.shape
    G = Bp // TB
    weights = [params[n] for n in _WEIGHT_NAMES]
    # Un-blocked VMEM residency for every weight / embedding table (loaded
    # once, no double-buffering across the batch grid).
    # TODO(synk): at real BERT sizes add a layer axis to the grid (or
    # pltpu.emit_pipeline per layer) so weights stay within v7x's 64 MiB VMEM.
    wspec = pl.BlockSpec(memory_space=pltpu.MemorySpace.VMEM)
    kernel = functools.partial(_bert_kernel, TB=TB, S=S)
    pooled = pl.pallas_call(
        kernel,
        out_shape=jax.ShapeDtypeStruct((G, TB, HIDDEN), jnp.float32),
        grid_spec=pltpu.PrefetchScalarGridSpec(
            num_scalar_prefetch=1,                            # input_ids -> SMEM
            grid=(G,),
            in_specs=[pl.BlockSpec((TB, 1, MASK_LANES),
                                   lambda g, ids_s: (g, 0, 0))]
                     + [wspec] * len(weights),
            out_specs=pl.BlockSpec((1, TB, HIDDEN), lambda g, ids_s: (g, 0, 0)),
            scratch_shapes=[pltpu.VMEM((TB * S, HIDDEN), jnp.float32)],
        ),
        compiler_params=pltpu.CompilerParams(
            dimension_semantics=("parallel",)),
    )(input_ids, add_mask, *weights)
    return pooled.reshape(Bp, HIDDEN)


# ----------------------------------------------------------------------------
# Deterministic parameter init (pre-stacked / pre-cast layouts)
# ----------------------------------------------------------------------------
def init_params(key):
    def nrm(k, shape):
        return (0.02 * jax.random.normal(k, shape)).astype(jnp.float32)

    keys = iter(jax.random.split(key, 64))
    p = {
        "word_emb": nrm(next(keys), (VOCAB, HIDDEN)),
        "pos_emb": nrm(next(keys), (MAX_POS, HIDDEN)),
        "type_emb": nrm(next(keys), (TYPE_VOCAB, HIDDEN)),
        "emb_ln_g": jnp.ones((1, HIDDEN), jnp.float32),
        "emb_ln_b": jnp.zeros((1, HIDDEN), jnp.float32),
        "pooler_w": nrm(next(keys), (HIDDEN, HIDDEN)).astype(jnp.bfloat16),
        "pooler_b": jnp.zeros((1, HIDDEN), jnp.float32),
        "cls_w": nrm(next(keys), (HIDDEN, NUM_LABELS)),
        "cls_b": jnp.zeros((NUM_LABELS,), jnp.float32),
    }
    qkv_w, ao_w, ff1_w, ff2_w = [], [], [], []
    for _ in range(NUM_LAYERS):
        qw = nrm(next(keys), (HIDDEN, HIDDEN))
        kw = nrm(next(keys), (HIDDEN, HIDDEN))
        vw = nrm(next(keys), (HIDDEN, HIDDEN))
        qkv_w.append(jnp.concatenate([qw, kw, vw], axis=1))      # (H, 3H)
        # attention-output weight stored per head: (NH, Dh, H)
        ao_w.append(nrm(next(keys), (HIDDEN, HIDDEN))
                    .reshape(NUM_HEADS, HEAD_DIM, HIDDEN))
        ff1_w.append(nrm(next(keys), (HIDDEN, INTERMEDIATE)))
        ff2_w.append(nrm(next(keys), (INTERMEDIATE, HIDDEN)))
    L = NUM_LAYERS
    p.update({
        # Matmul weights pre-cast to bf16: no per-step VPU casts, half VMEM.
        "qkv_w": jnp.stack(qkv_w).astype(jnp.bfloat16),          # (L, H, 3H)
        "qkv_b": jnp.zeros((L, 1, 3 * HIDDEN), jnp.float32),
        "ao_w": jnp.concatenate(ao_w, axis=0).astype(jnp.bfloat16),  # (L*NH, Dh, H)
        "ao_b": jnp.zeros((L, 1, HIDDEN), jnp.float32),
        "ln1_g": jnp.ones((L, 1, HIDDEN), jnp.float32),
        "ln1_b": jnp.zeros((L, 1, HIDDEN), jnp.float32),
        "ff1_w": jnp.stack(ff1_w).astype(jnp.bfloat16),          # (L, H, I)
        "ff1_b": jnp.zeros((L, 1, INTERMEDIATE), jnp.float32),
        "ff2_w": jnp.stack(ff2_w).astype(jnp.bfloat16),          # (L, I, H)
        "ff2_b": jnp.zeros((L, 1, HIDDEN), jnp.float32),
        "ln2_g": jnp.ones((L, 1, HIDDEN), jnp.float32),
        "ln2_b": jnp.zeros((L, 1, HIDDEN), jnp.float32),
    })
    return p


# ----------------------------------------------------------------------------
# Forward pass (mirrors BertForSequenceClassification, eval mode)
# ----------------------------------------------------------------------------
def bert_forward(params, input_ids, attention_mask, labels=None):
    B, S = input_ids.shape
    assert S <= MAX_POS and S <= MASK_LANES

    TB = _pick_tb(B)
    G = -(-B // TB)
    Bp = G * TB
    pad_b = Bp - B

    # Pad batch to a multiple of TB (padded rows: ids=0, fully-masked).
    ids_p = jnp.pad(input_ids, ((0, pad_b), (0, 0)))
    am = jnp.pad(attention_mask, ((0, pad_b), (0, 0))).astype(jnp.float32)

    # HF-style additive mask, padded to a lane-dense 128-wide row.
    add_mask = (1.0 - am) * jnp.finfo(jnp.float32).min               # (Bp, S)
    add_mask = jnp.pad(add_mask, ((0, 0), (0, MASK_LANES - S)))[:, None, :]

    pooled = bert_encoder_pooler(ids_p, add_mask, params, TB)[:B]    # (B, H)

    # Classifier head: (B,128)@(128,6) is sub-tile -> plain JAX
    # (dropout = identity in eval mode).
    logits = pooled @ params["cls_w"] + params["cls_b"]              # (B, NUM_LABELS)

    loss = None
    if labels is not None:
        logp = jax.nn.log_softmax(logits, axis=-1)
        loss = -jnp.mean(jnp.take_along_axis(logp, labels[:, None], axis=-1))
    return loss, logits


bert_forward_jit = jax.jit(bert_forward)


# ----------------------------------------------------------------------------
if __name__ == "__main__":
    key = jax.random.PRNGKey(0)
    kp, kids, klab = jax.random.split(key, 3)

    params = init_params(kp)

    B, S = 8, 8
    input_ids = jax.random.randint(kids, (B, S), 0, VOCAB, dtype=jnp.int32)
    attention_mask = jnp.ones((B, S), dtype=jnp.int32).at[1::2, S - 2:].set(0)
    labels = jax.random.randint(klab, (B,), 0, NUM_LABELS, dtype=jnp.int32)

    loss, logits = bert_forward_jit(params, input_ids, attention_mask, labels)
    jax.block_until_ready((loss, logits))
    assert logits.shape == (B, NUM_LABELS)
    assert bool(jnp.isfinite(loss))
    print("KERNEL_OK")
</pallas_src>

<mosaic_0001>
module attributes {stable_mosaic.version = 11 : i64} {
  func.func @_bert_kernel(%arg0: i32, %arg1: memref<8x8xi32, #tpu.memory_space<smem>>, %arg2: memref<4x1x128xf32, #tpu.memory_space<vmem>>, %arg3: memref<512x128xf32, #tpu.memory_space<vmem>>, %arg4: memref<64x128xf32, #tpu.memory_space<vmem>>, %arg5: memref<2x128xf32, #tpu.memory_space<vmem>>, %arg6: memref<1x128xf32, #tpu.memory_space<vmem>>, %arg7: memref<1x128xf32, #tpu.memory_space<vmem>>, %arg8: memref<2x128x384xbf16, #tpu.memory_space<vmem>>, %arg9: memref<2x1x384xf32, #tpu.memory_space<vmem>>, %arg10: memref<4x64x128xbf16, #tpu.memory_space<vmem>>, %arg11: memref<2x1x128xf32, #tpu.memory_space<vmem>>, %arg12: memref<2x1x128xf32, #tpu.memory_space<vmem>>, %arg13: memref<2x1x128xf32, #tpu.memory_space<vmem>>, %arg14: memref<2x128x256xbf16, #tpu.memory_space<vmem>>, %arg15: memref<2x1x256xf32, #tpu.memory_space<vmem>>, %arg16: memref<2x256x128xbf16, #tpu.memory_space<vmem>>, %arg17: memref<2x1x128xf32, #tpu.memory_space<vmem>>, %arg18: memref<2x1x128xf32, #tpu.memory_space<vmem>>, %arg19: memref<2x1x128xf32, #tpu.memory_space<vmem>>, %arg20: memref<128x128xbf16, #tpu.memory_space<vmem>>, %arg21: memref<1x128xf32, #tpu.memory_space<vmem>>, %arg22: memref<1x4x128xf32, #tpu.memory_space<vmem>>, %arg23: memref<32x128xf32, #tpu.memory_space<vmem>>) attributes {dimension_semantics = [#tpu.dimension_semantics<parallel>], iteration_bounds = array<i64: 2>, scalar_prefetch = 1 : i64, scratch_operands = 1 : i64, tpu.core_type = #tpu.core_type<tc>, window_params = [{transform_indices = @transform_0, window_bounds = array<i64: 4, 1, 128>}, {pipeline_mode = #tpu.pipeline_mode<synchronous>, transform_indices = @transform_1, window_bounds = array<i64: 512, 128>}, {pipeline_mode = #tpu.pipeline_mode<synchronous>, transform_indices = @transform_2, window_bounds = array<i64: 64, 128>}, {pipeline_mode = #tpu.pipeline_mode<synchronous>, transform_indices = @transform_3, window_bounds = array<i64: 2, 128>}, {pipeline_mode = #tpu.pipeline_mode<synchronous>, transform_indices = @transform_4, window_bounds = array<i64: 1, 128>}, {pipeline_mode = #tpu.pipeline_mode<synchronous>, transform_indices = @transform_5, window_bounds = array<i64: 1, 128>}, {pipeline_mode = #tpu.pipeline_mode<synchronous>, transform_indices = @transform_6, window_bounds = array<i64: 2, 128, 384>}, {pipeline_mode = #tpu.pipeline_mode<synchronous>, transform_indices = @transform_7, window_bounds = array<i64: 2, 1, 384>}, {pipeline_mode = #tpu.pipeline_mode<synchronous>, transform_indices = @transform_8, window_bounds = array<i64: 4, 64, 128>}, {pipeline_mode = #tpu.pipeline_mode<synchronous>, transform_indices = @transform_9, window_bounds = array<i64: 2, 1, 128>}, {pipeline_mode = #tpu.pipeline_mode<synchronous>, transform_indices = @transform_10, window_bounds = array<i64: 2, 1, 128>}, {pipeline_mode = #tpu.pipeline_mode<synchronous>, transform_indices = @transform_11, window_bounds = array<i64: 2, 1, 128>}, {pipeline_mode = #tpu.pipeline_mode<synchronous>, transform_indices = @transform_12, window_bounds = array<i64: 2, 128, 256>}, {pipeline_mode = #tpu.pipeline_mode<synchronous>, transform_indices = @transform_13, window_bounds = array<i64: 2, 1, 256>}, {pipeline_mode = #tpu.pipeline_mode<synchronous>, transform_indices = @transform_14, window_bounds = array<i64: 2, 256, 128>}, {pipeline_mode = #tpu.pipeline_mode<synchronous>, transform_indices = @transform_15, window_bounds = array<i64: 2, 1, 128>}, {pipeline_mode = #tpu.pipeline_mode<synchronous>, transform_indices = @transform_16, window_bounds = array<i64: 2, 1, 128>}, {pipeline_mode = #tpu.pipeline_mode<synchronous>, transform_indices = @transform_17, window_bounds = array<i64: 2, 1, 128>}, {pipeline_mode = #tpu.pipeline_mode<synchronous>, transform_indices = @transform_18, window_bounds = array<i64: 128, 128>}, {pipeline_mode = #tpu.pipeline_mode<synchronous>, transform_indices = @transform_19, window_bounds = array<i64: 1, 128>}, {transform_indices = @transform_20, window_bounds = array<i64: 1, 4, 128>}]} {
    %c4_i32 = arith.constant 4 : i32
    %0 = arith.muli %arg0, %c4_i32 : i32
    %c0_i32 = arith.constant 0 : i32
    %1 = arith.addi %0, %c0_i32 : i32
    %2 = arith.index_cast %1 : i32 to index
    %c0 = arith.constant 0 : index
    %3 = memref.load %arg1[%2, %c0] : memref<8x8xi32, #tpu.memory_space<smem>>
    %4 = arith.index_cast %3 : i32 to index
    %c0_0 = arith.constant 0 : index
    %5 = vector.load %arg3[%4, %c0_0] : memref<512x128xf32, #tpu.memory_space<vmem>>, vector<1x128xf32>
    %c0_1 = arith.constant 0 : index
    %c0_2 = arith.constant 0 : index
    %6 = vector.load %arg23[%c0_1, %c0_2] : memref<32x128xf32, #tpu.memory_space<vmem>>, vector<1x128xf32>
    tpu.vector_store %arg23[%c0_1, %c0_2], %5 {strides = array<i32>} : memref<32x128xf32, #tpu.memory_space<vmem>>, vector<1x128xf32>,
    %c0_i32_3 = arith.constant 0 : i32
    %7 = arith.addi %0, %c0_i32_3 : i32
    %8 = arith.index_cast %7 : i32 to index
    %c1 = arith.constant 1 : index
    %9 = memref.load %arg1[%8, %c1] : memref<8x8xi32, #tpu.memory_space<smem>>
    %10 = arith.index_cast %9 : i32 to index
    %c0_4 = arith.constant 0 : index
    %11 = vector.load %arg3[%10, %c0_4] : memref<512x128xf32, #tpu.memory_space<vmem>>, vector<1x128xf32>
    %c1_5 = arith.constant 1 : index
    %c0_6 = arith.constant 0 : index
    %12 = vector.load %arg23[%c1_5, %c0_6] : memref<32x128xf32, #tpu.memory_space<vmem>>, vector<1x128xf32>
    tpu.vector_store %arg23[%c1_5, %c0_6], %11 {strides = array<i32>} : memref<32x128xf32, #tpu.memory_space<vmem>>, vector<1x128xf32>,
    %c0_i32_7 = arith.constant 0 : i32
    %13 = arith.addi %0, %c0_i32_7 : i32
    %14 = arith.index_cast %13 : i32 to index
    %c2 = arith.constant 2 : index
    %15 = memref.load %arg1[%14, %c2] : memref<8x8xi32, #tpu.memory_space<smem>>
    %16 = arith.index_cast %15 : i32 to index
    %c0_8 = arith.constant 0 : index
    %17 = vector.load %arg3[%16, %c0_8] : memref<512x128xf32, #tpu.memory_space<vmem>>, vector<1x128xf32>
    %c2_9 = arith.constant 2 : index
    %c0_10 = arith.constant 0 : index
    %18 = vector.load %arg23[%c2_9, %c0_10] : memref<32x128xf32, #tpu.memory_space<vmem>>, vector<1x128xf32>
    tpu.vector_store %arg23[%c2_9, %c0_10], %17 {strides = array<i32>} : memref<32x128xf32, #tpu.memory_space<vmem>>, vector<1x128xf32>,
    %c0_i32_11 = arith.constant 0 : i32
    %19 = arith.addi %0, %c0_i32_11 : i32
    %20 = arith.index_cast %19 : i32 to index
    %c3 = arith.constant 3 : index
    %21 = memref.load %arg1[%20, %c3] : memref<8x8xi32, #tpu.memory_space<smem>>
    %22 = arith.index_cast %21 : i32 to index
    %c0_12 = arith.constant 0 : index
    %23 = vector.load %arg3[%22, %c0_12] : memref<512x128xf32, #tpu.memory_space<vmem>>, vector<1x128xf32>
    %c3_13 = arith.constant 3 : index
    %c0_14 = arith.constant 0 : index
    %24 = vector.load %arg23[%c3_13, %c0_14] : memref<32x128xf32, #tpu.memory_space<vmem>>, vector<1x128xf32>
    tpu.vector_store %arg23[%c3_13, %c0_14], %23 {strides = array<i32>} : memref<32x128xf32, #tpu.memory_space<vmem>>, vector<1x128xf32>,
    %c0_i32_15 = arith.constant 0 : i32
    %25 = arith.addi %0, %c0_i32_15 : i32
    %26 = arith.index_cast %25 : i32 to index
    %c4 = arith.constant 4 : index
    %27 = memref.load %arg1[%26, %c4] : memref<8x8xi32, #tpu.memory_space<smem>>
    %28 = arith.index_cast %27 : i32 to index
    %c0_16 = arith.constant 0 : index
    %29 = vector.load %arg3[%28, %c0_16] : memref<512x128xf32, #tpu.memory_space<vmem>>, vector<1x128xf32>
    %c4_17 = arith.constant 4 : index
    %c0_18 = arith.constant 0 : index
    %30 = vector.load %arg23[%c4_17, %c0_18] : memref<32x128xf32, #tpu.memory_space<vmem>>, vector<1x128xf32>
    tpu.vector_store %arg23[%c4_17, %c0_18], %29 {strides = array<i32>} : memref<32x128xf32, #tpu.memory_space<vmem>>, vector<1x128xf32>,
    %c0_i32_19 = arith.constant 0 : i32
    %31 = arith.addi %0, %c0_i32_19 : i32
    %32 = arith.index_cast %31 : i32 to index
    %c5 = arith.constant 5 : index
    %33 = memref.load %arg1[%32, %c5] : memref<8x8xi32, #tpu.memory_space<smem>>
    %34 = arith.index_cast %33 : i32 to index
    %c0_20 = arith.constant 0 : index
    %35 = vector.load %arg3[%34, %c0_20] : memref<512x128xf32, #tpu.memory_space<vmem>>, vector<1x128xf32>
    %c5_21 = arith.constant 5 : index
    %c0_22 = arith.constant 0 : index
    %36 = vector.load %arg23[%c5_21, %c0_22] : memref<32x128xf32, #tpu.memory_space<vmem>>, vector<1x128xf32>
    tpu.vector_store %arg23[%c5_21, %c0_22], %35 {strides = array<i32>} : memref<32x128xf32, #tpu.memory_space<vmem>>, vector<1x128xf32>,
    %c0_i32_23 = arith.constant 0 : i32
    %37 = arith.addi %0, %c0_i32_23 : i32
    %38 = arith.index_cast %37 : i32 to index
    %c6 = arith.constant 6 : index
    %39 = memref.load %arg1[%38, %c6] : memref<8x8xi32, #tpu.memory_space<smem>>
    %40 = arith.index_cast %39 : i32 to index
    %c0_24 = arith.constant 0 : index
    %41 = vector.load %arg3[%40, %c0_24] : memref<512x128xf32, #tpu.memory_space<vmem>>, vector<1x128xf32>
    %c6_25 = arith.constant 6 : index
    %c0_26 = arith.constant 0 : index
    %42 = vector.load %arg23[%c6_25, %c0_26] : memref<32x128xf32, #tpu.memory_space<vmem>>, vector<1x128xf32>
    tpu.vector_store %arg23[%c6_25, %c0_26], %41 {strides = array<i32>} : memref<32x128xf32, #tpu.memory_space<vmem>>, vector<1x128xf32>,
    %c0_i32_27 = arith.constant 0 : i32
    %43 = arith.addi %0, %c0_i32_27 : i32
    %44 = arith.index_cast %43 : i32 to index
    %c7 = arith.constant 7 : index
    %45 = memref.load %arg1[%44, %c7] : memref<8x8xi32, #tpu.memory_space<smem>>
    %46 = arith.index_cast %45 : i32 to index
    %c0_28 = arith.constant 0 : index
    %47 = vector.load %arg3[%46, %c0_28] : memref<512x128xf32, #tpu.memory_space<vmem>>, vector<1x128xf32>
    %c7_29 = arith.constant 7 : index
    %c0_30 = arith.constant 0 : index
    %48 = vector.load %arg23[%c7_29, %c0_30] : memref<32x128xf32, #tpu.memory_space<vmem>>, vector<1x128xf32>
    tpu.vector_store %arg23[%c7_29, %c0_30], %47 {strides = array<i32>} : memref<32x128xf32, #tpu.memory_space<vmem>>, vector<1x128xf32>,
    %c1_i32 = arith.constant 1 : i32
    %49 = arith.addi %0, %c1_i32 : i32
    %50 = arith.index_cast %49 : i32 to index
    %c0_31 = arith.constant 0 : index
    %51 = memref.load %arg1[%50, %c0_31] : memref<8x8xi32, #tpu.memory_space<smem>>
    %52 = arith.index_cast %51 : i32 to index
    %c0_32 = arith.constant 0 : index
    %53 = vector.load %arg3[%52, %c0_32] : memref<512x128xf32, #tpu.memory_space<vmem>>, vector<1x128xf32>
    %c8 = arith.constant 8 : index
    %c0_33 = arith.constant 0 : index
    %54 = vector.load %arg23[%c8, %c0_33] : memref<32x128xf32, #tpu.memory_space<vmem>>, vector<1x128xf32>
    tpu.vector_store %arg23[%c8, %c0_33], %53 {strides = array<i32>} : memref<32x128xf32, #tpu.memory_space<vmem>>, vector<1x128xf32>,
    %c1_i32_34 = arith.constant 1 : i32
    %55 = arith.addi %0, %c1_i32_34 : i32
    %56 = arith.index_cast %55 : i32 to index
    %c1_35 = arith.constant 1 : index
    %57 = memref.load %arg1[%56, %c1_35] : memref<8x8xi32, #tpu.memory_space<smem>>
    %58 = arith.index_cast %57 : i32 to index
    %c0_36 = arith.constant 0 : index
    %59 = vector.load %arg3[%58, %c0_36] : memref<512x128xf32, #tpu.memory_space<vmem>>, vector<1x128xf32>
    %c9 = arith.constant 9 : index
    %c0_37 = arith.constant 0 : index
    %60 = vector.load %arg23[%c9, %c0_37] : memref<32x128xf32, #tpu.memory_space<vmem>>, vector<1x128xf32>
    tpu.vector_store %arg23[%c9, %c0_37], %59 {strides = array<i32>} : memref<32x128xf32, #tpu.memory_space<vmem>>, vector<1x128xf32>,
    %c1_i32_38 = arith.constant 1 : i32
    %61 = arith.addi %0, %c1_i32_38 : i32
    %62 = arith.index_cast %61 : i32 to index
    %c2_39 = arith.constant 2 : index
    %63 = memref.load %arg1[%62, %c2_39] : memref<8x8xi32, #tpu.memory_space<smem>>
    %64 = arith.index_cast %63 : i32 to index
    %c0_40 = arith.constant 0 : index
    %65 = vector.load %arg3[%64, %c0_40] : memref<512x128xf32, #tpu.memory_space<vmem>>, vector<1x128xf32>
    %c10 = arith.constant 10 : index
    %c0_41 = arith.constant 0 : index
    %66 = vector.load %arg23[%c10, %c0_41] : memref<32x128xf32, #tpu.memory_space<vmem>>, vector<1x128xf32>
    tpu.vector_store %arg23[%c10, %c0_41], %65 {strides = array<i32>} : memref<32x128xf32, #tpu.memory_space<vmem>>, vector<1x128xf32>,
    %c1_i32_42 = arith.constant 1 : i32
    %67 = arith.addi %0, %c1_i32_42 : i32
    %68 = arith.index_cast %67 : i32 to index
    %c3_43 = arith.constant 3 : index
    %69 = memref.load %arg1[%68, %c3_43] : memref<8x8xi32, #tpu.memory_space<smem>>
    %70 = arith.index_cast %69 : i32 to index
    %c0_44 = arith.constant 0 : index
    %71 = vector.load %arg3[%70, %c0_44] : memref<512x128xf32, #tpu.memory_space<vmem>>, vector<1x128xf32>
    %c11 = arith.constant 11 : index
    %c0_45 = arith.constant 0 : index
    %72 = vector.load %arg23[%c11, %c0_45] : memref<32x128xf32, #tpu.memory_space<vmem>>, vector<1x128xf32>
    tpu.vector_store %arg23[%c11, %c0_45], %71 {strides = array<i32>} : memref<32x128xf32, #tpu.memory_space<vmem>>, vector<1x128xf32>,
    %c1_i32_46 = arith.constant 1 : i32
    %73 = arith.addi %0, %c1_i32_46 : i32
    %74 = arith.index_cast %73 : i32 to index
    %c4_47 = arith.constant 4 : index
    %75 = memref.load %arg1[%74, %c4_47] : memref<8x8xi32, #tpu.memory_space<smem>>
    %76 = arith.index_cast %75 : i32 to index
    %c0_48 = arith.constant 0 : index
    %77 = vector.load %arg3[%76, %c0_48] : memref<512x128xf32, #tpu.memory_space<vmem>>, vector<1x128xf32>
    %c12 = arith.constant 12 : index
    %c0_49 = arith.constant 0 : index
    %78 = vector.load %arg23[%c12, %c0_49] : memref<32x128xf32, #tpu.memory_space<vmem>>, vector<1x128xf32>
    tpu.vector_store %arg23[%c12, %c0_49], %77 {strides = array<i32>} : memref<32x128xf32, #tpu.memory_space<vmem>>, vector<1x128xf32>,
    %c1_i32_50 = arith.constant 1 : i32
    %79 = arith.addi %0, %c1_i32_50 : i32
    %80 = arith.index_cast %79 : i32 to index
    %c5_51 = arith.constant 5 : index
    %81 = memref.load %arg1[%80, %c5_51] : memref<8x8xi32, #tpu.memory_space<smem>>
    %82 = arith.index_cast %81 : i32 to index
    %c0_52 = arith.constant 0 : index
    %83 = vector.load %arg3[%82, %c0_52] : memref<512x128xf32, #tpu.memory_space<vmem>>, vector<1x128xf32>
    %c13 = arith.constant 13 : index
    %c0_53 = arith.constant 0 : index
    %84 = vector.load %arg23[%c13, %c0_53] : memref<32x128xf32, #tpu.memory_space<vmem>>, vector<1x128xf32>
    tpu.vector_store %arg23[%c13, %c0_53], %83 {strides = array<i32>} : memref<32x128xf32, #tpu.memory_space<vmem>>, vector<1x128xf32>,
    %c1_i32_54 = arith.constant 1 : i32
    %85 = arith.addi %0, %c1_i32_54 : i32
    %86 = arith.index_cast %85 : i32 to index
    %c6_55 = arith.constant 6 : index
    %87 = memref.load %arg1[%86, %c6_55] : memref<8x8xi32, #tpu.memory_space<smem>>
    %88 = arith.index_cast %87 : i32 to index
    %c0_56 = arith.constant 0 : index
    %89 = vector.load %arg3[%88, %c0_56] : memref<512x128xf32, #tpu.memory_space<vmem>>, vector<1x128xf32>
    %c14 = arith.constant 14 : index
    %c0_57 = arith.constant 0 : index
    %90 = vector.load %arg23[%c14, %c0_57] : memref<32x128xf32, #tpu.memory_space<vmem>>, vector<1x128xf32>
    tpu.vector_store %arg23[%c14, %c0_57], %89 {strides = array<i32>} : memref<32x128xf32, #tpu.memory_space<vmem>>, vector<1x128xf32>,
    %c1_i32_58 = arith.constant 1 : i32
    %91 = arith.addi %0, %c1_i32_58 : i32
    %92 = arith.index_cast %91 : i32 to index
    %c7_59 = arith.constant 7 : index
    %93 = memref.load %arg1[%92, %c7_59] : memref<8x8xi32, #tpu.memory_space<smem>>
    %94 = arith.index_cast %93 : i32 to index
    %c0_60 = arith.constant 0 : index
    %95 = vector.load %arg3[%94, %c0_60] : memref<512x128xf32, #tpu.memory_space<vmem>>, vector<1x128xf32>
    %c15 = arith.constant 15 : index
    %c0_61 = arith.constant 0 : index
    %96 = vector.load %arg23[%c15, %c0_61] : memref<32x128xf32, #tpu.memory_space<vmem>>, vector<1x128xf32>
    tpu.vector_store %arg23[%c15, %c0_61], %95 {strides = array<i32>} : memref<32x128xf32, #tpu.memory_space<vmem>>, vector<1x128xf32>,
    %c2_i32 = arith.constant 2 : i32
    %97 = arith.addi %0, %c2_i32 : i32
    %98 = arith.index_cast %97 : i32 to index
    %c0_62 = arith.constant 0 : index
    %99 = memref.load %arg1[%98, %c0_62] : memref<8x8xi32, #tpu.memory_space<smem>>
    %100 = arith.index_cast %99 : i32 to index
    %c0_63 = arith.constant 0 : index
    %101 = vector.load %arg3[%100, %c0_63] : memref<512x128xf32, #tpu.memory_space<vmem>>, vector<1x128xf32>
    %c16 = arith.constant 16 : index
    %c0_64 = arith.constant 0 : index
    %102 = vector.load %arg23[%c16, %c0_64] : memref<32x128xf32, #tpu.memory_space<vmem>>, vector<1x128xf32>
    tpu.vector_store %arg23[%c16, %c0_64], %101 {strides = array<i32>} : memref<32x128xf32, #tpu.memory_space<vmem>>, vector<1x128xf32>,
    %c2_i32_65 = arith.constant 2 : i32
    %103 = arith.addi %0, %c2_i32_65 : i32
    %104 = arith.index_cast %103 : i32 to index
    %c1_66 = arith.constant 1 : index
    %105 = memref.load %arg1[%104, %c1_66] : memref<8x8xi32, #tpu.memory_space<smem>>
    %106 = arith.index_cast %105 : i32 to index
    %c0_67 = arith.constant 0 : index
    %107 = vector.load %arg3[%106, %c0_67] : memref<512x128xf32, #tpu.memory_space<vmem>>, vector<1x128xf32>
    %c17 = arith.constant 17 : index
    %c0_68 = arith.constant 0 : index
    %108 = vector.load %arg23[%c17, %c0_68] : memref<32x128xf32, #tpu.memory_space<vmem>>, vector<1x128xf32>
    tpu.vector_store %arg23[%c17, %c0_68], %107 {strides = array<i32>} : memref<32x128xf32, #tpu.memory_space<vmem>>, vector<1x128xf32>,
    %c2_i32_69 = arith.constant 2 : i32
    %109 = arith.addi %0, %c2_i32_69 : i32
    %110 = arith.index_cast %109 : i32 to index
    %c2_70 = arith.constant 2 : index
    %111 = memref.load %arg1[%110, %c2_70] : memref<8x8xi32, #tpu.memory_space<smem>>
    %112 = arith.index_cast %111 : i32 to index
    %c0_71 = arith.constant 0 : index
    %113 = vector.load %arg3[%112, %c0_71] : memref<512x128xf32, #tpu.memory_space<vmem>>, vector<1x128xf32>
    %c18 = arith.constant 18 : index
    %c0_72 = arith.constant 0 : index
    %114 = vector.load %arg23[%c18, %c0_72] : memref<32x128xf32, #tpu.memory_space<vmem>>, vector<1x128xf32>
    tpu.vector_store %arg23[%c18, %c0_72], %113 {strides = array<i32>} : memref<32x128xf32, #tpu.memory_space<vmem>>, vector<1x128xf32>,
    %c2_i32_73 = arith.constant 2 : i32
    %115 = arith.addi %0, %c2_i32_73 : i32
    %116 = arith.index_cast %115 : i32 to index
    %c3_74 = arith.constant 3 : index
    %117 = memref.load %arg1[%116, %c3_74] : memref<8x8xi32, #tpu.memory_space<smem>>
    %118 = arith.index_cast %117 : i32 to index
    %c0_75 = arith.constant 0 : index
    %119 = vector.load %arg3[%118, %c0_75] : memref<512x128xf32, #tpu.memory_space<vmem>>, vector<1x128xf32>
    %c19 = arith.constant 19 : index
    %c0_76 = arith.constant 0 : index
    %120 = vector.load %arg23[%c19, %c0_76] : memref<32x128xf32, #tpu.memory_space<vmem>>, vector<1x128xf32>
    tpu.vector_store %arg23[%c19, %c0_76], %119 {strides = array<i32>} : memref<32x128xf32, #tpu.memory_space<vmem>>, vector<1x128xf32>,
    %c2_i32_77 = arith.constant 2 : i32
    %121 = arith.addi %0, %c2_i32_77 : i32
    %122 = arith.index_cast %121 : i32 to index
    %c4_78 = arith.constant 4 : index
    %123 = memref.load %arg1[%122, %c4_78] : memref<8x8xi32, #tpu.memory_space<smem>>
    %124 = arith.index_cast %123 : i32 to index
    %c0_79 = arith.constant 0 : index
    %125 = vector.load %arg3[%124, %c0_79] : memref<512x128xf32, #tpu.memory_space<vmem>>, vector<1x128xf32>
    %c20 = arith.constant 20 : index
    %c0_80 = arith.constant 0 : index
    %126 = vector.load %arg23[%c20, %c0_80] : memref<32x128xf32, #tpu.memory_space<vmem>>, vector<1x128xf32>
    tpu.vector_store %arg23[%c20, %c0_80], %125 {strides = array<i32>} : memref<32x128xf32, #tpu.memory_space<vmem>>, vector<1x128xf32>,
    %c2_i32_81 = arith.constant 2 : i32
    %127 = arith.addi %0, %c2_i32_81 : i32
    %128 = arith.index_cast %127 : i32 to index
    %c5_82 = arith.constant 5 : index
    %129 = memref.load %arg1[%128, %c5_82] : memref<8x8xi32, #tpu.memory_space<smem>>
    %130 = arith.index_cast %129 : i32 to index
    %c0_83 = arith.constant 0 : index
    %131 = vector.load %arg3[%130, %c0_83] : memref<512x128xf32, #tpu.memory_space<vmem>>, vector<1x128xf32>
    %c21 = arith.constant 21 : index
    %c0_84 = arith.constant 0 : index
    %132 = vector.load %arg23[%c21, %c0_84] : memref<32x128xf32, #tpu.memory_space<vmem>>, vector<1x128xf32>
    tpu.vector_store %arg23[%c21, %c0_84], %131 {strides = array<i32>} : memref<32x128xf32, #tpu.memory_space<vmem>>, vector<1x128xf32>,
    %c2_i32_85 = arith.constant 2 : i32
    %133 = arith.addi %0, %c2_i32_85 : i32
    %134 = arith.index_cast %133 : i32 to index
    %c6_86 = arith.constant 6 : index
    %135 = memref.load %arg1[%134, %c6_86] : memref<8x8xi32, #tpu.memory_space<smem>>
    %136 = arith.index_cast %135 : i32 to index
    %c0_87 = arith.constant 0 : index
    %137 = vector.load %arg3[%136, %c0_87] : memref<512x128xf32, #tpu.memory_space<vmem>>, vector<1x128xf32>
    %c22 = arith.constant 22 : index
    %c0_88 = arith.constant 0 : index
    %138 = vector.load %arg23[%c22, %c0_88] : memref<32x128xf32, #tpu.memory_space<vmem>>, vector<1x128xf32>
    tpu.vector_store %arg23[%c22, %c0_88], %137 {strides = array<i32>} : memref<32x128xf32, #tpu.memory_space<vmem>>, vector<1x128xf32>,
    %c2_i32_89 = arith.constant 2 : i32
    %139 = arith.addi %0, %c2_i32_89 : i32
    %140 = arith.index_cast %139 : i32 to index
    %c7_90 = arith.constant 7 : index
    %141 = memref.load %arg1[%140, %c7_90] : memref<8x8xi32, #tpu.memory_space<smem>>
    %142 = arith.index_cast %141 : i32 to index
    %c0_91 = arith.constant 0 : index
    %143 = vector.load %arg3[%142, %c0_91] : memref<512x128xf32, #tpu.memory_space<vmem>>, vector<1x128xf32>
    %c23 = arith.constant 23 : index
    %c0_92 = arith.constant 0 : index
    %144 = vector.load %arg23[%c23, %c0_92] : memref<32x128xf32, #tpu.memory_space<vmem>>, vector<1x128xf32>
    tpu.vector_store %arg23[%c23, %c0_92], %143 {strides = array<i32>} : memref<32x128xf32, #tpu.memory_space<vmem>>, vector<1x128xf32>,
    %c3_i32 = arith.constant 3 : i32
    %145 = arith.addi %0, %c3_i32 : i32
    %146 = arith.index_cast %145 : i32 to index
    %c0_93 = arith.constant 0 : index
    %147 = memref.load %arg1[%146, %c0_93] : memref<8x8xi32, #tpu.memory_space<smem>>
    %148 = arith.index_cast %147 : i32 to index
    %c0_94 = arith.constant 0 : index
    %149 = vector.load %arg3[%148, %c0_94] : memref<512x128xf32, #tpu.memory_space<vmem>>, vector<1x128xf32>
    %c24 = arith.constant 24 : index
    %c0_95 = arith.constant 0 : index
    %150 = vector.load %arg23[%c24, %c0_95] : memref<32x128xf32, #tpu.memory_space<vmem>>, vector<1x128xf32>
    tpu.vector_store %arg23[%c24, %c0_95], %149 {strides = array<i32>} : memref<32x128xf32, #tpu.memory_space<vmem>>, vector<1x128xf32>,
    %c3_i32_96 = arith.constant 3 : i32
    %151 = arith.addi %0, %c3_i32_96 : i32
    %152 = arith.index_cast %151 : i32 to index
    %c1_97 = arith.constant 1 : index
    %153 = memref.load %arg1[%152, %c1_97] : memref<8x8xi32, #tpu.memory_space<smem>>
    %154 = arith.index_cast %153 : i32 to index
    %c0_98 = arith.constant 0 : index
    %155 = vector.load %arg3[%154, %c0_98] : memref<512x128xf32, #tpu.memory_space<vmem>>, vector<1x128xf32>
    %c25 = arith.constant 25 : index
    %c0_99 = arith.constant 0 : index
    %156 = vector.load %arg23[%c25, %c0_99] : memref<32x128xf32, #tpu.memory_space<vmem>>, vector<1x128xf32>
    tpu.vector_store %arg23[%c25, %c0_99], %155 {strides = array<i32>} : memref<32x128xf32, #tpu.memory_space<vmem>>, vector<1x128xf32>,
    %c3_i32_100 = arith.constant 3 : i32
    %157 = arith.addi %0, %c3_i32_100 : i32
    %158 = arith.index_cast %157 : i32 to index
    %c2_101 = arith.constant 2 : index
    %159 = memref.load %arg1[%158, %c2_101] : memref<8x8xi32, #tpu.memory_space<smem>>
    %160 = arith.index_cast %159 : i32 to index
    %c0_102 = arith.constant 0 : index
    %161 = vector.load %arg3[%160, %c0_102] : memref<512x128xf32, #tpu.memory_space<vmem>>, vector<1x128xf32>
    %c26 = arith.constant 26 : index
    %c0_103 = arith.constant 0 : index
    %162 = vector.load %arg23[%c26, %c0_103] : memref<32x128xf32, #tpu.memory_space<vmem>>, vector<1x128xf32>
    tpu.vector_store %arg23[%c26, %c0_103], %161 {strides = array<i32>} : memref<32x128xf32, #tpu.memory_space<vmem>>, vector<1x128xf32>,
    %c3_i32_104 = arith.constant 3 : i32
    %163 = arith.addi %0, %c3_i32_104 : i32
    %164 = arith.index_cast %163 : i32 to index
    %c3_105 = arith.constant 3 : index
    %165 = memref.load %arg1[%164, %c3_105] : memref<8x8xi32, #tpu.memory_space<smem>>
    %166 = arith.index_cast %165 : i32 to index
    %c0_106 = arith.constant 0 : index
    %167 = vector.load %arg3[%166, %c0_106] : memref<512x128xf32, #tpu.memory_space<vmem>>, vector<1x128xf32>
    %c27 = arith.constant 27 : index
    %c0_107 = arith.constant 0 : index
    %168 = vector.load %arg23[%c27, %c0_107] : memref<32x128xf32, #tpu.memory_space<vmem>>, vector<1x128xf32>
    tpu.vector_store %arg23[%c27, %c0_107], %167 {strides = array<i32>} : memref<32x128xf32, #tpu.memory_space<vmem>>, vector<1x128xf32>,
    %c3_i32_108 = arith.constant 3 : i32
    %169 = arith.addi %0, %c3_i32_108 : i32
    %170 = arith.index_cast %169 : i32 to index
    %c4_109 = arith.constant 4 : index
    %171 = memref.load %arg1[%170, %c4_109] : memref<8x8xi32, #tpu.memory_space<smem>>
    %172 = arith.index_cast %171 : i32 to index
    %c0_110 = arith.constant 0 : index
    %173 = vector.load %arg3[%172, %c0_110] : memref<512x128xf32, #tpu.memory_space<vmem>>, vector<1x128xf32>
    %c28 = arith.constant 28 : index
    %c0_111 = arith.constant 0 : index
    %174 = vector.load %arg23[%c28, %c0_111] : memref<32x128xf32, #tpu.memory_space<vmem>>, vector<1x128xf32>
    tpu.vector_store %arg23[%c28, %c0_111], %173 {strides = array<i32>} : memref<32x128xf32, #tpu.memory_space<vmem>>, vector<1x128xf32>,
    %c3_i32_112 = arith.constant 3 : i32
    %175 = arith.addi %0, %c3_i32_112 : i32
    %176 = arith.index_cast %175 : i32 to index
    %c5_113 = arith.constant 5 : index
    %177 = memref.load %arg1[%176, %c5_113] : memref<8x8xi32, #tpu.memory_space<smem>>
    %178 = arith.index_cast %177 : i32 to index
    %c0_114 = arith.constant 0 : index
    %179 = vector.load %arg3[%178, %c0_114] : memref<512x128xf32, #tpu.memory_space<vmem>>, vector<1x128xf32>
    %c29 = arith.constant 29 : index
    %c0_115 = arith.constant 0 : index
    %180 = vector.load %arg23[%c29, %c0_115] : memref<32x128xf32, #tpu.memory_space<vmem>>, vector<1x128xf32>
    tpu.vector_store %arg23[%c29, %c0_115], %179 {strides = array<i32>} : memref<32x128xf32, #tpu.memory_space<vmem>>, vector<1x128xf32>,
    %c3_i32_116 = arith.constant 3 : i32
    %181 = arith.addi %0, %c3_i32_116 : i32
    %182 = arith.index_cast %181 : i32 to index
    %c6_117 = arith.constant 6 : index
    %183 = memref.load %arg1[%182, %c6_117] : memref<8x8xi32, #tpu.memory_space<smem>>
    %184 = arith.index_cast %183 : i32 to index
    %c0_118 = arith.constant 0 : index
    %185 = vector.load %arg3[%184, %c0_118] : memref<512x128xf32, #tpu.memory_space<vmem>>, vector<1x128xf32>
    %c30 = arith.constant 30 : index
    %c0_119 = arith.constant 0 : index
    %186 = vector.load %arg23[%c30, %c0_119] : memref<32x128xf32, #tpu.memory_space<vmem>>, vector<1x128xf32>
    tpu.vector_store %arg23[%c30, %c0_119], %185 {strides = array<i32>} : memref<32x128xf32, #tpu.memory_space<vmem>>, vector<1x128xf32>,
    %c3_i32_120 = arith.constant 3 : i32
    %187 = arith.addi %0, %c3_i32_120 : i32
    %188 = arith.index_cast %187 : i32 to index
    %c7_121 = arith.constant 7 : index
    %189 = memref.load %arg1[%188, %c7_121] : memref<8x8xi32, #tpu.memory_space<smem>>
    %190 = arith.index_cast %189 : i32 to index
    %c0_122 = arith.constant 0 : index
    %191 = vector.load %arg3[%190, %c0_122] : memref<512x128xf32, #tpu.memory_space<vmem>>, vector<1x128xf32>
    %c31 = arith.constant 31 : index
    %c0_123 = arith.constant 0 : index
    %192 = vector.load %arg23[%c31, %c0_123] : memref<32x128xf32, #tpu.memory_space<vmem>>, vector<1x128xf32>
    tpu.vector_store %arg23[%c31, %c0_123], %191 {strides = array<i32>} : memref<32x128xf32, #tpu.memory_space<vmem>>, vector<1x128xf32>,
    %c0_124 = arith.constant 0 : index
    %c0_125 = arith.constant 0 : index
    %193 = vector.load %arg4[%c0_124, %c0_125] : memref<64x128xf32, #tpu.memory_space<vmem>>, vector<8x128xf32>
    %c0_126 = arith.constant 0 : index
    %c0_127 = arith.constant 0 : index
    %194 = vector.load %arg5[%c0_126, %c0_127] : memref<2x128xf32, #tpu.memory_space<vmem>>, vector<1x128xf32>
    %195 = vector.broadcast %194 : vector<1x128xf32> to vector<8x128xf32>
    %196 = arith.addf %193, %195 : vector<8x128xf32>
    %c0_128 = arith.constant 0 : index
    %c0_129 = arith.constant 0 : index
    %197 = vector.load %arg23[%c0_128, %c0_129] : memref<32x128xf32, #tpu.memory_space<vmem>>, vector<32x128xf32>
    %198 = vector.shape_cast %197 : vector<32x128xf32> to vector<4x8x128xf32>
    %199 = vector.shape_cast %196 : vector<8x128xf32> to vector<1x8x128xf32>
    %200 = vector.broadcast %199 : vector<1x8x128xf32> to vector<4x8x128xf32>
    %201 = arith.addf %198, %200 : vector<4x8x128xf32>
    %202 = vector.shape_cast %201 : vector<4x8x128xf32> to vector<32x128xf32>
    %c0_130 = arith.constant 0 : index
    %c0_131 = arith.constant 0 : index
    %203 = vector.load %arg6[%c0_130, %c0_131] : memref<1x128xf32, #tpu.memory_space<vmem>>, vector<1x128xf32>
    %c0_132 = arith.constant 0 : index
    %c0_133 = arith.constant 0 : index
    %204 = vector.load %arg7[%c0_132, %c0_133] : memref<1x128xf32, #tpu.memory_space<vmem>>, vector<1x128xf32>
    %cst = arith.constant dense<0.000000e+00> : vector<32xf32>
    %205 = vector.multi_reduction <add>, %202, %cst [1] : vector<32x128xf32> to vector<32xf32>
    %206 = vector.shape_cast %205 : vector<32xf32> to vector<32x1xf32>
    %cst_134 = arith.constant 1.280000e+02 : f32
    %207 = vector.broadcast %cst_134 : f32 to vector<32x1xf32>
    %208 = arith.divf %206, %207 : vector<32x1xf32>
    %209 = vector.broadcast %208 : vector<32x1xf32> to vector<32x128xf32>
    %210 = arith.subf %202, %209 : vector<32x128xf32>
    %211 = arith.mulf %210, %210 : vector<32x128xf32>
    %cst_135 = arith.constant dense<0.000000e+00> : vector<32xf32>
    %212 = vector.multi_reduction <add>, %211, %cst_135 [1] : vector<32x128xf32> to vector<32xf32>
    %213 = vector.shape_cast %212 : vector<32xf32> to vector<32x1xf32>
    %cst_136 = arith.constant 1.280000e+02 : f32
    %214 = vector.broadcast %cst_136 : f32 to vector<32x1xf32>
    %215 = arith.divf %213, %214 : vector<32x1xf32>
    %216 = vector.broadcast %208 : vector<32x1xf32> to vector<32x128xf32>
    %217 = arith.subf %202, %216 : vector<32x128xf32>
    %cst_137 = arith.constant 9.99999996E-13 : f32
    %218 = vector.broadcast %cst_137 : f32 to vector<32x1xf32>
    %219 = arith.addf %215, %218 : vector<32x1xf32>
    %220 = math.rsqrt %219 : vector<32x1xf32>
    %221 = vector.broadcast %220 : vector<32x1xf32> to vector<32x128xf32>
    %222 = arith.mulf %217, %221 : vector<32x128xf32>
    %223 = vector.broadcast %203 : vector<1x128xf32> to vector<32x128xf32>
    %224 = arith.mulf %222, %223 : vector<32x128xf32>
    %225 = vector.broadcast %204 : vector<1x128xf32> to vector<32x128xf32>
    %226 = arith.addf %224, %225 : vector<32x128xf32>
    %c0_138 = arith.constant 0 : index
    %c0_139 = arith.constant 0 : index
    %c0_140 = arith.constant 0 : index
    %227 = vector.load %arg2[%c0_138, %c0_139, %c0_140] : memref<4x1x128xf32, #tpu.memory_space<vmem>>, vector<4x1x128xf32>
    %228 = vector.extract_strided_slice %227 {offsets = [0, 0, 0], sizes = [4, 1, 8], strides = [1, 1, 1]} : vector<4x1x128xf32> to vector<4x1x8xf32>
    %c0_141 = arith.constant 0 : index
    %c0_142 = arith.constant 0 : index
    %c0_143 = arith.constant 0 : index
    %229 = vector.load %arg8[%c0_141, %c0_142, %c0_143] : memref<2x128x384xbf16, #tpu.memory_space<vmem>>, vector<1x128x384xbf16>
    %230 = vector.shape_cast %229 : vector<1x128x384xbf16> to vector<128x384xbf16>
    %231 = arith.truncf %226 : vector<32x128xf32> to vector<32x128xbf16>
    %cst_144 = arith.constant dense<0.000000e+00> : vector<32x384xf32>
    %232 = tpu.matmul %231, %230, %cst_144 {dimension_numbers = #tpu.dot_dimension_numbers<[1], [0], [0], [1], [0, 0, 1, 1], [], []>} : vector<32x128xbf16>, vector<128x384xbf16>, vector<32x384xf32> -> vector<32x384xf32>
    %c0_145 = arith.constant 0 : index
    %c0_146 = arith.constant 0 : index
    %c0_147 = arith.constant 0 : index
    %233 = vector.load %arg9[%c0_145, %c0_146, %c0_147] : memref<2x1x384xf32, #tpu.memory_space<vmem>>, vector<1x1x384xf32>
    %234 = vector.shape_cast %233 : vector<1x1x384xf32> to vector<1x384xf32>
    %235 = vector.broadcast %234 : vector<1x384xf32> to vector<32x384xf32>
    %236 = arith.addf %232, %235 : vector<32x384xf32>
    %237 = vector.extract_strided_slice %236 {offsets = [0, 0], sizes = [32, 128], strides = [1, 1]} : vector<32x384xf32> to vector<32x128xf32>
    %238 = vector.extract_strided_slice %236 {offsets = [0, 128], sizes = [32, 128], strides = [1, 1]} : vector<32x384xf32> to vector<32x128xf32>
    %239 = vector.extract_strided_slice %236 {offsets = [0, 256], sizes = [32, 128], strides = [1, 1]} : vector<32x384xf32> to vector<32x128xf32>
    %240 = vector.extract_strided_slice %237 {offsets = [0, 0], sizes = [32, 64], strides = [1, 1]} : vector<32x128xf32> to vector<32x64xf32>
    %241 = vector.shape_cast %240 : vector<32x64xf32> to vector<4x8x64xf32>
    %242 = vector.extract_strided_slice %238 {offsets = [0, 0], sizes = [32, 64], strides = [1, 1]} : vector<32x128xf32> to vector<32x64xf32>
    %243 = vector.shape_cast %242 : vector<32x64xf32> to vector<4x8x64xf32>
    %244 = vector.extract_strided_slice %239 {offsets = [0, 0], sizes = [32, 64], strides = [1, 1]} : vector<32x128xf32> to vector<32x64xf32>
    %245 = vector.shape_cast %244 : vector<32x64xf32> to vector<4x8x64xf32>
    %246 = arith.truncf %241 : vector<4x8x64xf32> to vector<4x8x64xbf16>
    %247 = arith.truncf %243 : vector<4x8x64xf32> to vector<4x8x64xbf16>
    %cst_148 = arith.constant dense<0.000000e+00> : vector<4x8x8xf32>
    %248 = tpu.matmul %246, %247, %cst_148 {dimension_numbers = #tpu.dot_dimension_numbers<[2], [2], [1], [1], [0, 0, 0, 1, 1, 1], [0], [0]>} : vector<4x8x64xbf16>, vector<4x8x64xbf16>, vector<4x8x8xf32> -> vector<4x8x8xf32>
    %cst_149 = arith.constant 1.250000e-01 : f32
    %249 = vector.broadcast %cst_149 : f32 to vector<4x8x8xf32>
    %250 = arith.mulf %248, %249 : vector<4x8x8xf32>
    %251 = vector.broadcast %228 : vector<4x1x8xf32> to vector<4x8x8xf32>
    %252 = arith.addf %250, %251 : vector<4x8x8xf32>
    %cst_150 = arith.constant dense<0xFF800000> : vector<4x8xf32>
    %253 = vector.multi_reduction <maximumf>, %252, %cst_150 [2] : vector<4x8x8xf32> to vector<4x8xf32>
    %254 = vector.shape_cast %253 : vector<4x8xf32> to vector<4x8x1xf32>
    %255 = vector.broadcast %254 : vector<4x8x1xf32> to vector<4x8x8xf32>
    %256 = arith.subf %252, %255 : vector<4x8x8xf32>
    %257 = math.exp %256 : vector<4x8x8xf32>
    %cst_151 = arith.constant dense<0.000000e+00> : vector<4x8xf32>
    %258 = vector.multi_reduction <add>, %257, %cst_151 [2] : vector<4x8x8xf32> to vector<4x8xf32>
    %259 = vector.shape_cast %258 : vector<4x8xf32> to vector<4x8x1xf32>
    %260 = tpu.reciprocal %259 {approx = true} : vector<4x8x1xf32> -> vector<4x8x1xf32>
    %261 = vector.broadcast %260 : vector<4x8x1xf32> to vector<4x8x8xf32>
    %262 = arith.mulf %257, %261 : vector<4x8x8xf32>
    %263 = arith.truncf %262 : vector<4x8x8xf32> to vector<4x8x8xbf16>
    %264 = arith.truncf %245 : vector<4x8x64xf32> to vector<4x8x64xbf16>
    %cst_152 = arith.constant dense<0.000000e+00> : vector<4x8x64xf32>
    %265 = tpu.matmul %263, %264, %cst_152 {dimension_numbers = #tpu.dot_dimension_numbers<[2], [1], [1], [2], [0, 0, 0, 1, 1, 2], [0], [0]>} : vector<4x8x8xbf16>, vector<4x8x64xbf16>, vector<4x8x64xf32> -> vector<4x8x64xf32>
    %266 = vector.shape_cast %265 : vector<4x8x64xf32> to vector<32x64xf32>
    %c0_153 = arith.constant 0 : index
    %c0_154 = arith.constant 0 : index
    %c0_155 = arith.constant 0 : index
    %267 = vector.load %arg10[%c0_153, %c0_154, %c0_155] : memref<4x64x128xbf16, #tpu.memory_space<vmem>>, vector<1x64x128xbf16>
    %268 = vector.shape_cast %267 : vector<1x64x128xbf16> to vector<64x128xbf16>
    %269 = arith.truncf %266 : vector<32x64xf32> to vector<32x64xbf16>
    %cst_156 = arith.constant dense<0.000000e+00> : vector<32x128xf32>
    %270 = tpu.matmul %269, %268, %cst_156 {dimension_numbers = #tpu.dot_dimension_numbers<[1], [0], [0], [1], [0, 0, 1, 1], [], []>} : vector<32x64xbf16>, vector<64x128xbf16>, vector<32x128xf32> -> vector<32x128xf32>
    %271 = vector.extract_strided_slice %237 {offsets = [0, 64], sizes = [32, 64], strides = [1, 1]} : vector<32x128xf32> to vector<32x64xf32>
    %272 = vector.shape_cast %271 : vector<32x64xf32> to vector<4x8x64xf32>
    %273 = vector.extract_strided_slice %238 {offsets = [0, 64], sizes = [32, 64], strides = [1, 1]} : vector<32x128xf32> to vector<32x64xf32>
    %274 = vector.shape_cast %273 : vector<32x64xf32> to vector<4x8x64xf32>
    %275 = vector.extract_strided_slice %239 {offsets = [0, 64], sizes = [32, 64], strides = [1, 1]} : vector<32x128xf32> to vector<32x64xf32>
    %276 = vector.shape_cast %275 : vector<32x64xf32> to vector<4x8x64xf32>
    %277 = arith.truncf %272 : vector<4x8x64xf32> to vector<4x8x64xbf16>
    %278 = arith.truncf %274 : vector<4x8x64xf32> to vector<4x8x64xbf16>
    %cst_157 = arith.constant dense<0.000000e+00> : vector<4x8x8xf32>
    %279 = tpu.matmul %277, %278, %cst_157 {dimension_numbers = #tpu.dot_dimension_numbers<[2], [2], [1], [1], [0, 0, 0, 1, 1, 1], [0], [0]>} : vector<4x8x64xbf16>, vector<4x8x64xbf16>, vector<4x8x8xf32> -> vector<4x8x8xf32>
    %cst_158 = arith.constant 1.250000e-01 : f32
    %280 = vector.broadcast %cst_158 : f32 to vector<4x8x8xf32>
    %281 = arith.mulf %279, %280 : vector<4x8x8xf32>
    %282 = vector.broadcast %228 : vector<4x1x8xf32> to vector<4x8x8xf32>
    %283 = arith.addf %281, %282 : vector<4x8x8xf32>
    %cst_159 = arith.constant dense<0xFF800000> : vector<4x8xf32>
    %284 = vector.multi_reduction <maximumf>, %283, %cst_159 [2] : vector<4x8x8xf32> to vector<4x8xf32>
    %285 = vector.shape_cast %284 : vector<4x8xf32> to vector<4x8x1xf32>
    %286 = vector.broadcast %285 : vector<4x8x1xf32> to vector<4x8x8xf32>
    %287 = arith.subf %283, %286 : vector<4x8x8xf32>
    %288 = math.exp %287 : vector<4x8x8xf32>
    %cst_160 = arith.constant dense<0.000000e+00> : vector<4x8xf32>
    %289 = vector.multi_reduction <add>, %288, %cst_160 [2] : vector<4x8x8xf32> to vector<4x8xf32>
    %290 = vector.shape_cast %289 : vector<4x8xf32> to vector<4x8x1xf32>
    %291 = tpu.reciprocal %290 {approx = true} : vector<4x8x1xf32> -> vector<4x8x1xf32>
    %292 = vector.broadcast %291 : vector<4x8x1xf32> to vector<4x8x8xf32>
    %293 = arith.mulf %288, %292 : vector<4x8x8xf32>
    %294 = arith.truncf %293 : vector<4x8x8xf32> to vector<4x8x8xbf16>
    %295 = arith.truncf %276 : vector<4x8x64xf32> to vector<4x8x64xbf16>
    %cst_161 = arith.constant dense<0.000000e+00> : vector<4x8x64xf32>
    %296 = tpu.matmul %294, %295, %cst_161 {dimension_numbers = #tpu.dot_dimension_numbers<[2], [1], [1], [2], [0, 0, 0, 1, 1, 2], [0], [0]>} : vector<4x8x8xbf16>, vector<4x8x64xbf16>, vector<4x8x64xf32> -> vector<4x8x64xf32>
    %297 = vector.shape_cast %296 : vector<4x8x64xf32> to vector<32x64xf32>
    %c1_162 = arith.constant 1 : index
    %c0_163 = arith.constant 0 : index
    %c0_164 = arith.constant 0 : index
    %298 = vector.load %arg10[%c1_162, %c0_163, %c0_164] : memref<4x64x128xbf16, #tpu.memory_space<vmem>>, vector<1x64x128xbf16>
    %299 = vector.shape_cast %298 : vector<1x64x128xbf16> to vector<64x128xbf16>
    %300 = arith.truncf %297 : vector<32x64xf32> to vector<32x64xbf16>
    %cst_165 = arith.constant dense<0.000000e+00> : vector<32x128xf32>
    %301 = tpu.matmul %300, %299, %cst_165 {dimension_numbers = #tpu.dot_dimension_numbers<[1], [0], [0], [1], [0, 0, 1, 1], [], []>} : vector<32x64xbf16>, vector<64x128xbf16>, vector<32x128xf32> -> vector<32x128xf32>
    %302 = arith.addf %270, %301 : vector<32x128xf32>
    %c0_166 = arith.constant 0 : index
    %c0_167 = arith.constant 0 : index
    %c0_168 = arith.constant 0 : index
    %303 = vector.load %arg11[%c0_166, %c0_167, %c0_168] : memref<2x1x128xf32, #tpu.memory_space<vmem>>, vector<1x1x128xf32>
    %304 = vector.shape_cast %303 : vector<1x1x128xf32> to vector<1x128xf32>
    %305 = vector.broadcast %304 : vector<1x128xf32> to vector<32x128xf32>
    %306 = arith.addf %302, %305 : vector<32x128xf32>
    %307 = arith.addf %306, %226 : vector<32x128xf32>
    %c0_169 = arith.constant 0 : index
    %c0_170 = arith.constant 0 : index
    %c0_171 = arith.constant 0 : index
    %308 = vector.load %arg12[%c0_169, %c0_170, %c0_171] : memref<2x1x128xf32, #tpu.memory_space<vmem>>, vector<1x1x128xf32>
    %309 = vector.shape_cast %308 : vector<1x1x128xf32> to vector<1x128xf32>
    %c0_172 = arith.constant 0 : index
    %c0_173 = arith.constant 0 : index
    %c0_174 = arith.constant 0 : index
    %310 = vector.load %arg13[%c0_172, %c0_173, %c0_174] : memref<2x1x128xf32, #tpu.memory_space<vmem>>, vector<1x1x128xf32>
    %311 = vector.shape_cast %310 : vector<1x1x128xf32> to vector<1x128xf32>
    %cst_175 = arith.constant dense<0.000000e+00> : vector<32xf32>
    %312 = vector.multi_reduction <add>, %307, %cst_175 [1] : vector<32x128xf32> to vector<32xf32>
    %313 = vector.shape_cast %312 : vector<32xf32> to vector<32x1xf32>
    %cst_176 = arith.constant 1.280000e+02 : f32
    %314 = vector.broadcast %cst_176 : f32 to vector<32x1xf32>
    %315 = arith.divf %313, %314 : vector<32x1xf32>
    %316 = vector.broadcast %315 : vector<32x1xf32> to vector<32x128xf32>
    %317 = arith.subf %307, %316 : vector<32x128xf32>
    %318 = arith.mulf %317, %317 : vector<32x128xf32>
    %cst_177 = arith.constant dense<0.000000e+00> : vector<32xf32>
    %319 = vector.multi_reduction <add>, %318, %cst_177 [1] : vector<32x128xf32> to vector<32xf32>
    %320 = vector.shape_cast %319 : vector<32xf32> to vector<32x1xf32>
    %cst_178 = arith.constant 1.280000e+02 : f32
    %321 = vector.broadcast %cst_178 : f32 to vector<32x1xf32>
    %322 = arith.divf %320, %321 : vector<32x1xf32>
    %323 = vector.broadcast %315 : vector<32x1xf32> to vector<32x128xf32>
    %324 = arith.subf %307, %323 : vector<32x128xf32>
    %cst_179 = arith.constant 9.99999996E-13 : f32
    %325 = vector.broadcast %cst_179 : f32 to vector<32x1xf32>
    %326 = arith.addf %322, %325 : vector<32x1xf32>
    %327 = math.rsqrt %326 : vector<32x1xf32>
    %328 = vector.broadcast %327 : vector<32x1xf32> to vector<32x128xf32>
    %329 = arith.mulf %324, %328 : vector<32x128xf32>
    %330 = vector.broadcast %309 : vector<1x128xf32> to vector<32x128xf32>
    %331 = arith.mulf %329, %330 : vector<32x128xf32>
    %332 = vector.broadcast %311 : vector<1x128xf32> to vector<32x128xf32>
    %333 = arith.addf %331, %332 : vector<32x128xf32>
    %c0_180 = arith.constant 0 : index
    %c0_181 = arith.constant 0 : index
    %c0_182 = arith.constant 0 : index
    %334 = vector.load %arg14[%c0_180, %c0_181, %c0_182] : memref<2x128x256xbf16, #tpu.memory_space<vmem>>, vector<1x128x256xbf16>
    %335 = vector.shape_cast %334 : vector<1x128x256xbf16> to vector<128x256xbf16>
    %336 = arith.truncf %333 : vector<32x128xf32> to vector<32x128xbf16>
    %cst_183 = arith.constant dense<0.000000e+00> : vector<32x256xf32>
    %337 = tpu.matmul %336, %335, %cst_183 {dimension_numbers = #tpu.dot_dimension_numbers<[1], [0], [0], [1], [0, 0, 1, 1], [], []>} : vector<32x128xbf16>, vector<128x256xbf16>, vector<32x256xf32> -> vector<32x256xf32>
    %c0_184 = arith.constant 0 : index
    %c0_185 = arith.constant 0 : index
    %c0_186 = arith.constant 0 : index
    %338 = vector.load %arg15[%c0_184, %c0_185, %c0_186] : memref<2x1x256xf32, #tpu.memory_space<vmem>>, vector<1x1x256xf32>
    %339 = vector.shape_cast %338 : vector<1x1x256xf32> to vector<1x256xf32>
    %340 = vector.broadcast %339 : vector<1x256xf32> to vector<32x256xf32>
    %341 = arith.addf %337, %340 : vector<32x256xf32>
    %cst_187 = arith.constant 5.000000e-01 : f32
    %342 = vector.broadcast %cst_187 : f32 to vector<32x256xf32>
    %343 = arith.mulf %342, %341 : vector<32x256xf32>
    %cst_188 = arith.constant 4.471500e-02 : f32
    %344 = vector.broadcast %cst_188 : f32 to vector<32x256xf32>
    %345 = arith.mulf %344, %341 : vector<32x256xf32>
    %346 = arith.mulf %345, %341 : vector<32x256xf32>
    %347 = arith.mulf %346, %341 : vector<32x256xf32>
    %348 = arith.addf %341, %347 : vector<32x256xf32>
    %cst_189 = arith.constant 0.797884583 : f32
    %349 = vector.broadcast %cst_189 : f32 to vector<32x256xf32>
    %350 = arith.mulf %349, %348 : vector<32x256xf32>
    %351 = math.tanh %350 : vector<32x256xf32>
    %cst_190 = arith.constant 1.000000e+00 : f32
    %352 = vector.broadcast %cst_190 : f32 to vector<32x256xf32>
    %353 = arith.addf %352, %351 : vector<32x256xf32>
    %354 = arith.mulf %343, %353 : vector<32x256xf32>
    %c0_191 = arith.constant 0 : index
    %c0_192 = arith.constant 0 : index
    %c0_193 = arith.constant 0 : index
    %355 = vector.load %arg16[%c0_191, %c0_192, %c0_193] : memref<2x256x128xbf16, #tpu.memory_space<vmem>>, vector<1x256x128xbf16>
    %356 = vector.shape_cast %355 : vector<1x256x128xbf16> to vector<256x128xbf16>
    %357 = arith.truncf %354 : vector<32x256xf32> to vector<32x256xbf16>
    %cst_194 = arith.constant dense<0.000000e+00> : vector<32x128xf32>
    %358 = tpu.matmul %357, %356, %cst_194 {dimension_numbers = #tpu.dot_dimension_numbers<[1], [0], [0], [1], [0, 0, 1, 1], [], []>} : vector<32x256xbf16>, vector<256x128xbf16>, vector<32x128xf32> -> vector<32x128xf32>
    %c0_195 = arith.constant 0 : index
    %c0_196 = arith.constant 0 : index
    %c0_197 = arith.constant 0 : index
    %359 = vector.load %arg17[%c0_195, %c0_196, %c0_197] : memref<2x1x128xf32, #tpu.memory_space<vmem>>, vector<1x1x128xf32>
    %360 = vector.shape_cast %359 : vector<1x1x128xf32> to vector<1x128xf32>
    %361 = vector.broadcast %360 : vector<1x128xf32> to vector<32x128xf32>
    %362 = arith.addf %358, %361 : vector<32x128xf32>
    %363 = arith.addf %362, %333 : vector<32x128xf32>
    %c0_198 = arith.constant 0 : index
    %c0_199 = arith.constant 0 : index
    %c0_200 = arith.constant 0 : index
    %364 = vector.load %arg18[%c0_198, %c0_199, %c0_200] : memref<2x1x128xf32, #tpu.memory_space<vmem>>, vector<1x1x128xf32>
    %365 = vector.shape_cast %364 : vector<1x1x128xf32> to vector<1x128xf32>
    %c0_201 = arith.constant 0 : index
    %c0_202 = arith.constant 0 : index
    %c0_203 = arith.constant 0 : index
    %366 = vector.load %arg19[%c0_201, %c0_202, %c0_203] : memref<2x1x128xf32, #tpu.memory_space<vmem>>, vector<1x1x128xf32>
    %367 = vector.shape_cast %366 : vector<1x1x128xf32> to vector<1x128xf32>
    %cst_204 = arith.constant dense<0.000000e+00> : vector<32xf32>
    %368 = vector.multi_reduction <add>, %363, %cst_204 [1] : vector<32x128xf32> to vector<32xf32>
    %369 = vector.shape_cast %368 : vector<32xf32> to vector<32x1xf32>
    %cst_205 = arith.constant 1.280000e+02 : f32
    %370 = vector.broadcast %cst_205 : f32 to vector<32x1xf32>
    %371 = arith.divf %369, %370 : vector<32x1xf32>
    %372 = vector.broadcast %371 : vector<32x1xf32> to vector<32x128xf32>
    %373 = arith.subf %363, %372 : vector<32x128xf32>
    %374 = arith.mulf %373, %373 : vector<32x128xf32>
    %cst_206 = arith.constant dense<0.000000e+00> : vector<32xf32>
    %375 = vector.multi_reduction <add>, %374, %cst_206 [1] : vector<32x128xf32> to vector<32xf32>
    %376 = vector.shape_cast %375 : vector<32xf32> to vector<32x1xf32>
    %cst_207 = arith.constant 1.280000e+02 : f32
    %377 = vector.broadcast %cst_207 : f32 to vector<32x1xf32>
    %378 = arith.divf %376, %377 : vector<32x1xf32>
    %379 = vector.broadcast %371 : vector<32x1xf32> to vector<32x128xf32>
    %380 = arith.subf %363, %379 : vector<32x128xf32>
    %cst_208 = arith.constant 9.99999996E-13 : f32
    %381 = vector.broadcast %cst_208 : f32 to vector<32x1xf32>
    %382 = arith.addf %378, %381 : vector<32x1xf32>
    %383 = math.rsqrt %382 : vector<32x1xf32>
    %384 = vector.broadcast %383 : vector<32x1xf32> to vector<32x128xf32>
    %385 = arith.mulf %380, %384 : vector<32x128xf32>
    %386 = vector.broadcast %365 : vector<1x128xf32> to vector<32x128xf32>
    %387 = arith.mulf %385, %386 : vector<32x128xf32>
    %388 = vector.broadcast %367 : vector<1x128xf32> to vector<32x128xf32>
    %389 = arith.addf %387, %388 : vector<32x128xf32>
    %c1_209 = arith.constant 1 : index
    %c0_210 = arith.constant 0 : index
    %c0_211 = arith.constant 0 : index
    %390 = vector.load %arg8[%c1_209, %c0_210, %c0_211] : memref<2x128x384xbf16, #tpu.memory_space<vmem>>, vector<1x128x384xbf16>
    %391 = vector.shape_cast %390 : vector<1x128x384xbf16> to vector<128x384xbf16>
    %392 = arith.truncf %389 : vector<32x128xf32> to vector<32x128xbf16>
    %cst_212 = arith.constant dense<0.000000e+00> : vector<32x384xf32>
    %393 = tpu.matmul %392, %391, %cst_212 {dimension_numbers = #tpu.dot_dimension_numbers<[1], [0], [0], [1], [0, 0, 1, 1], [], []>} : vector<32x128xbf16>, vector<128x384xbf16>, vector<32x384xf32> -> vector<32x384xf32>
    %c1_213 = arith.constant 1 : index
    %c0_214 = arith.constant 0 : index
    %c0_215 = arith.constant 0 : index
    %394 = vector.load %arg9[%c1_213, %c0_214, %c0_215] : memref<2x1x384xf32, #tpu.memory_space<vmem>>, vector<1x1x384xf32>
    %395 = vector.shape_cast %394 : vector<1x1x384xf32> to vector<1x384xf32>
    %396 = vector.broadcast %395 : vector<1x384xf32> to vector<32x384xf32>
    %397 = arith.addf %393, %396 : vector<32x384xf32>
    %398 = vector.extract_strided_slice %397 {offsets = [0, 0], sizes = [32, 128], strides = [1, 1]} : vector<32x384xf32> to vector<32x128xf32>
    %399 = vector.extract_strided_slice %397 {offsets = [0, 128], sizes = [32, 128], strides = [1, 1]} : vector<32x384xf32> to vector<32x128xf32>
    %400 = vector.extract_strided_slice %397 {offsets = [0, 256], sizes = [32, 128], strides = [1, 1]} : vector<32x384xf32> to vector<32x128xf32>
    %401 = vector.extract_strided_slice %398 {offsets = [0, 0], sizes = [32, 64], strides = [1, 1]} : vector<32x128xf32> to vector<32x64xf32>
    %402 = vector.shape_cast %401 : vector<32x64xf32> to vector<4x8x64xf32>
    %403 = vector.extract_strided_slice %399 {offsets = [0, 0], sizes = [32, 64], strides = [1, 1]} : vector<32x128xf32> to vector<32x64xf32>
    %404 = vector.shape_cast %403 : vector<32x64xf32> to vector<4x8x64xf32>
    %405 = vector.extract_strided_slice %400 {offsets = [0, 0], sizes = [32, 64], strides = [1, 1]} : vector<32x128xf32> to vector<32x64xf32>
    %406 = vector.shape_cast %405 : vector<32x64xf32> to vector<4x8x64xf32>
    %407 = arith.truncf %402 : vector<4x8x64xf32> to vector<4x8x64xbf16>
    %408 = arith.truncf %404 : vector<4x8x64xf32> to vector<4x8x64xbf16>
    %cst_216 = arith.constant dense<0.000000e+00> : vector<4x8x8xf32>
    %409 = tpu.matmul %407, %408, %cst_216 {dimension_numbers = #tpu.dot_dimension_numbers<[2], [2], [1], [1], [0, 0, 0, 1, 1, 1], [0], [0]>} : vector<4x8x64xbf16>, vector<4x8x64xbf16>, vector<4x8x8xf32> -> vector<4x8x8xf32>
    %cst_217 = arith.constant 1.250000e-01 : f32
    %410 = vector.broadcast %cst_217 : f32 to vector<4x8x8xf32>
    %411 = arith.mulf %409, %410 : vector<4x8x8xf32>
    %412 = vector.broadcast %228 : vector<4x1x8xf32> to vector<4x8x8xf32>
    %413 = arith.addf %411, %412 : vector<4x8x8xf32>
    %cst_218 = arith.constant dense<0xFF800000> : vector<4x8xf32>
    %414 = vector.multi_reduction <maximumf>, %413, %cst_218 [2] : vector<4x8x8xf32> to vector<4x8xf32>
    %415 = vector.shape_cast %414 : vector<4x8xf32> to vector<4x8x1xf32>
    %416 = vector.broadcast %415 : vector<4x8x1xf32> to vector<4x8x8xf32>
    %417 = arith.subf %413, %416 : vector<4x8x8xf32>
    %418 = math.exp %417 : vector<4x8x8xf32>
    %cst_219 = arith.constant dense<0.000000e+00> : vector<4x8xf32>
    %419 = vector.multi_reduction <add>, %418, %cst_219 [2] : vector<4x8x8xf32> to vector<4x8xf32>
    %420 = vector.shape_cast %419 : vector<4x8xf32> to vector<4x8x1xf32>
    %421 = tpu.reciprocal %420 {approx = true} : vector<4x8x1xf32> -> vector<4x8x1xf32>
    %422 = vector.broadcast %421 : vector<4x8x1xf32> to vector<4x8x8xf32>
    %423 = arith.mulf %418, %422 : vector<4x8x8xf32>
    %424 = arith.truncf %423 : vector<4x8x8xf32> to vector<4x8x8xbf16>
    %425 = arith.truncf %406 : vector<4x8x64xf32> to vector<4x8x64xbf16>
    %cst_220 = arith.constant dense<0.000000e+00> : vector<4x8x64xf32>
    %426 = tpu.matmul %424, %425, %cst_220 {dimension_numbers = #tpu.dot_dimension_numbers<[2], [1], [1], [2], [0, 0, 0, 1, 1, 2], [0], [0]>} : vector<4x8x8xbf16>, vector<4x8x64xbf16>, vector<4x8x64xf32> -> vector<4x8x64xf32>
    %427 = vector.shape_cast %426 : vector<4x8x64xf32> to vector<32x64xf32>
    %c2_221 = arith.constant 2 : index
    %c0_222 = arith.constant 0 : index
    %c0_223 = arith.constant 0 : index
    %428 = vector.load %arg10[%c2_221, %c0_222, %c0_223] : memref<4x64x128xbf16, #tpu.memory_space<vmem>>, vector<1x64x128xbf16>
    %429 = vector.shape_cast %428 : vector<1x64x128xbf16> to vector<64x128xbf16>
    %430 = arith.truncf %427 : vector<32x64xf32> to vector<32x64xbf16>
    %cst_224 = arith.constant dense<0.000000e+00> : vector<32x128xf32>
    %431 = tpu.matmul %430, %429, %cst_224 {dimension_numbers = #tpu.dot_dimension_numbers<[1], [0], [0], [1], [0, 0, 1, 1], [], []>} : vector<32x64xbf16>, vector<64x128xbf16>, vector<32x128xf32> -> vector<32x128xf32>
    %432 = vector.extract_strided_slice %398 {offsets = [0, 64], sizes = [32, 64], strides = [1, 1]} : vector<32x128xf32> to vector<32x64xf32>
    %433 = vector.shape_cast %432 : vector<32x64xf32> to vector<4x8x64xf32>
    %434 = vector.extract_strided_slice %399 {offsets = [0, 64], sizes = [32, 64], strides = [1, 1]} : vector<32x128xf32> to vector<32x64xf32>
    %435 = vector.shape_cast %434 : vector<32x64xf32> to vector<4x8x64xf32>
    %436 = vector.extract_strided_slice %400 {offsets = [0, 64], sizes = [32, 64], strides = [1, 1]} : vector<32x128xf32> to vector<32x64xf32>
    %437 = vector.shape_cast %436 : vector<32x64xf32> to vector<4x8x64xf32>
    %438 = arith.truncf %433 : vector<4x8x64xf32> to vector<4x8x64xbf16>
    %439 = arith.truncf %435 : vector<4x8x64xf32> to vector<4x8x64xbf16>
    %cst_225 = arith.constant dense<0.000000e+00> : vector<4x8x8xf32>
    %440 = tpu.matmul %438, %439, %cst_225 {dimension_numbers = #tpu.dot_dimension_numbers<[2], [2], [1], [1], [0, 0, 0, 1, 1, 1], [0], [0]>} : vector<4x8x64xbf16>, vector<4x8x64xbf16>, vector<4x8x8xf32> -> vector<4x8x8xf32>
    %cst_226 = arith.constant 1.250000e-01 : f32
    %441 = vector.broadcast %cst_226 : f32 to vector<4x8x8xf32>
    %442 = arith.mulf %440, %441 : vector<4x8x8xf32>
    %443 = vector.broadcast %228 : vector<4x1x8xf32> to vector<4x8x8xf32>
    %444 = arith.addf %442, %443 : vector<4x8x8xf32>
    %cst_227 = arith.constant dense<0xFF800000> : vector<4x8xf32>
    %445 = vector.multi_reduction <maximumf>, %444, %cst_227 [2] : vector<4x8x8xf32> to vector<4x8xf32>
    %446 = vector.shape_cast %445 : vector<4x8xf32> to vector<4x8x1xf32>
    %447 = vector.broadcast %446 : vector<4x8x1xf32> to vector<4x8x8xf32>
    %448 = arith.subf %444, %447 : vector<4x8x8xf32>
    %449 = math.exp %448 : vector<4x8x8xf32>
    %cst_228 = arith.constant dense<0.000000e+00> : vector<4x8xf32>
    %450 = vector.multi_reduction <add>, %449, %cst_228 [2] : vector<4x8x8xf32> to vector<4x8xf32>
    %451 = vector.shape_cast %450 : vector<4x8xf32> to vector<4x8x1xf32>
    %452 = tpu.reciprocal %451 {approx = true} : vector<4x8x1xf32> -> vector<4x8x1xf32>
    %453 = vector.broadcast %452 : vector<4x8x1xf32> to vector<4x8x8xf32>
    %454 = arith.mulf %449, %453 : vector<4x8x8xf32>
    %455 = arith.truncf %454 : vector<4x8x8xf32> to vector<4x8x8xbf16>
    %456 = arith.truncf %437 : vector<4x8x64xf32> to vector<4x8x64xbf16>
    %cst_229 = arith.constant dense<0.000000e+00> : vector<4x8x64xf32>
    %457 = tpu.matmul %455, %456, %cst_229 {dimension_numbers = #tpu.dot_dimension_numbers<[2], [1], [1], [2], [0, 0, 0, 1, 1, 2], [0], [0]>} : vector<4x8x8xbf16>, vector<4x8x64xbf16>, vector<4x8x64xf32> -> vector<4x8x64xf32>
    %458 = vector.shape_cast %457 : vector<4x8x64xf32> to vector<32x64xf32>
    %c3_230 = arith.constant 3 : index
    %c0_231 = arith.constant 0 : index
    %c0_232 = arith.constant 0 : index
    %459 = vector.load %arg10[%c3_230, %c0_231, %c0_232] : memref<4x64x128xbf16, #tpu.memory_space<vmem>>, vector<1x64x128xbf16>
    %460 = vector.shape_cast %459 : vector<1x64x128xbf16> to vector<64x128xbf16>
    %461 = arith.truncf %458 : vector<32x64xf32> to vector<32x64xbf16>
    %cst_233 = arith.constant dense<0.000000e+00> : vector<32x128xf32>
    %462 = tpu.matmul %461, %460, %cst_233 {dimension_numbers = #tpu.dot_dimension_numbers<[1], [0], [0], [1], [0, 0, 1, 1], [], []>} : vector<32x64xbf16>, vector<64x128xbf16>, vector<32x128xf32> -> vector<32x128xf32>
    %463 = arith.addf %431, %462 : vector<32x128xf32>
    %c1_234 = arith.constant 1 : index
    %c0_235 = arith.constant 0 : index
    %c0_236 = arith.constant 0 : index
    %464 = vector.load %arg11[%c1_234, %c0_235, %c0_236] : memref<2x1x128xf32, #tpu.memory_space<vmem>>, vector<1x1x128xf32>
    %465 = vector.shape_cast %464 : vector<1x1x128xf32> to vector<1x128xf32>
    %466 = vector.broadcast %465 : vector<1x128xf32> to vector<32x128xf32>
    %467 = arith.addf %463, %466 : vector<32x128xf32>
    %468 = arith.addf %467, %389 : vector<32x128xf32>
    %c1_237 = arith.constant 1 : index
    %c0_238 = arith.constant 0 : index
    %c0_239 = arith.constant 0 : index
    %469 = vector.load %arg12[%c1_237, %c0_238, %c0_239] : memref<2x1x128xf32, #tpu.memory_space<vmem>>, vector<1x1x128xf32>
    %470 = vector.shape_cast %469 : vector<1x1x128xf32> to vector<1x128xf32>
    %c1_240 = arith.constant 1 : index
    %c0_241 = arith.constant 0 : index
    %c0_242 = arith.constant 0 : index
    %471 = vector.load %arg13[%c1_240, %c0_241, %c0_242] : memref<2x1x128xf32, #tpu.memory_space<vmem>>, vector<1x1x128xf32>
    %472 = vector.shape_cast %471 : vector<1x1x128xf32> to vector<1x128xf32>
    %cst_243 = arith.constant dense<0.000000e+00> : vector<32xf32>
    %473 = vector.multi_reduction <add>, %468, %cst_243 [1] : vector<32x128xf32> to vector<32xf32>
    %474 = vector.shape_cast %473 : vector<32xf32> to vector<32x1xf32>
    %cst_244 = arith.constant 1.280000e+02 : f32
    %475 = vector.broadcast %cst_244 : f32 to vector<32x1xf32>
    %476 = arith.divf %474, %475 : vector<32x1xf32>
    %477 = vector.broadcast %476 : vector<32x1xf32> to vector<32x128xf32>
    %478 = arith.subf %468, %477 : vector<32x128xf32>
    %479 = arith.mulf %478, %478 : vector<32x128xf32>
    %cst_245 = arith.constant dense<0.000000e+00> : vector<32xf32>
    %480 = vector.multi_reduction <add>, %479, %cst_245 [1] : vector<32x128xf32> to vector<32xf32>
    %481 = vector.shape_cast %480 : vector<32xf32> to vector<32x1xf32>
    %cst_246 = arith.constant 1.280000e+02 : f32
    %482 = vector.broadcast %cst_246 : f32 to vector<32x1xf32>
    %483 = arith.divf %481, %482 : vector<32x1xf32>
    %484 = vector.broadcast %476 : vector<32x1xf32> to vector<32x128xf32>
    %485 = arith.subf %468, %484 : vector<32x128xf32>
    %cst_247 = arith.constant 9.99999996E-13 : f32
    %486 = vector.broadcast %cst_247 : f32 to vector<32x1xf32>
    %487 = arith.addf %483, %486 : vector<32x1xf32>
    %488 = math.rsqrt %487 : vector<32x1xf32>
    %489 = vector.broadcast %488 : vector<32x1xf32> to vector<32x128xf32>
    %490 = arith.mulf %485, %489 : vector<32x128xf32>
    %491 = vector.broadcast %470 : vector<1x128xf32> to vector<32x128xf32>
    %492 = arith.mulf %490, %491 : vector<32x128xf32>
    %493 = vector.broadcast %472 : vector<1x128xf32> to vector<32x128xf32>
    %494 = arith.addf %492, %493 : vector<32x128xf32>
    %c1_248 = arith.constant 1 : index
    %c0_249 = arith.constant 0 : index
    %c0_250 = arith.constant 0 : index
    %495 = vector.load %arg14[%c1_248, %c0_249, %c0_250] : memref<2x128x256xbf16, #tpu.memory_space<vmem>>, vector<1x128x256xbf16>
    %496 = vector.shape_cast %495 : vector<1x128x256xbf16> to vector<128x256xbf16>
    %497 = arith.truncf %494 : vector<32x128xf32> to vector<32x128xbf16>
    %cst_251 = arith.constant dense<0.000000e+00> : vector<32x256xf32>
    %498 = tpu.matmul %497, %496, %cst_251 {dimension_numbers = #tpu.dot_dimension_numbers<[1], [0], [0], [1], [0, 0, 1, 1], [], []>} : vector<32x128xbf16>, vector<128x256xbf16>, vector<32x256xf32> -> vector<32x256xf32>
    %c1_252 = arith.constant 1 : index
    %c0_253 = arith.constant 0 : index
    %c0_254 = arith.constant 0 : index
    %499 = vector.load %arg15[%c1_252, %c0_253, %c0_254] : memref<2x1x256xf32, #tpu.memory_space<vmem>>, vector<1x1x256xf32>
    %500 = vector.shape_cast %499 : vector<1x1x256xf32> to vector<1x256xf32>
    %501 = vector.broadcast %500 : vector<1x256xf32> to vector<32x256xf32>
    %502 = arith.addf %498, %501 : vector<32x256xf32>
    %cst_255 = arith.constant 5.000000e-01 : f32
    %503 = vector.broadcast %cst_255 : f32 to vector<32x256xf32>
    %504 = arith.mulf %503, %502 : vector<32x256xf32>
    %cst_256 = arith.constant 4.471500e-02 : f32
    %505 = vector.broadcast %cst_256 : f32 to vector<32x256xf32>
    %506 = arith.mulf %505, %502 : vector<32x256xf32>
    %507 = arith.mulf %506, %502 : vector<32x256xf32>
    %508 = arith.mulf %507, %502 : vector<32x256xf32>
    %509 = arith.addf %502, %508 : vector<32x256xf32>
    %cst_257 = arith.constant 0.797884583 : f32
    %510 = vector.broadcast %cst_257 : f32 to vector<32x256xf32>
    %511 = arith.mulf %510, %509 : vector<32x256xf32>
    %512 = math.tanh %511 : vector<32x256xf32>
    %cst_258 = arith.constant 1.000000e+00 : f32
    %513 = vector.broadcast %cst_258 : f32 to vector<32x256xf32>
    %514 = arith.addf %513, %512 : vector<32x256xf32>
    %515 = arith.mulf %504, %514 : vector<32x256xf32>
    %c1_259 = arith.constant 1 : index
    %c0_260 = arith.constant 0 : index
    %c0_261 = arith.constant 0 : index
    %516 = vector.load %arg16[%c1_259, %c0_260, %c0_261] : memref<2x256x128xbf16, #tpu.memory_space<vmem>>, vector<1x256x128xbf16>
    %517 = vector.shape_cast %516 : vector<1x256x128xbf16> to vector<256x128xbf16>
    %518 = arith.truncf %515 : vector<32x256xf32> to vector<32x256xbf16>
    %cst_262 = arith.constant dense<0.000000e+00> : vector<32x128xf32>
    %519 = tpu.matmul %518, %517, %cst_262 {dimension_numbers = #tpu.dot_dimension_numbers<[1], [0], [0], [1], [0, 0, 1, 1], [], []>} : vector<32x256xbf16>, vector<256x128xbf16>, vector<32x128xf32> -> vector<32x128xf32>
    %c1_263 = arith.constant 1 : index
    %c0_264 = arith.constant 0 : index
    %c0_265 = arith.constant 0 : index
    %520 = vector.load %arg17[%c1_263, %c0_264, %c0_265] : memref<2x1x128xf32, #tpu.memory_space<vmem>>, vector<1x1x128xf32>
    %521 = vector.shape_cast %520 : vector<1x1x128xf32> to vector<1x128xf32>
    %522 = vector.broadcast %521 : vector<1x128xf32> to vector<32x128xf32>
    %523 = arith.addf %519, %522 : vector<32x128xf32>
    %524 = arith.addf %523, %494 : vector<32x128xf32>
    %c1_266 = arith.constant 1 : index
    %c0_267 = arith.constant 0 : index
    %c0_268 = arith.constant 0 : index
    %525 = vector.load %arg18[%c1_266, %c0_267, %c0_268] : memref<2x1x128xf32, #tpu.memory_space<vmem>>, vector<1x1x128xf32>
    %526 = vector.shape_cast %525 : vector<1x1x128xf32> to vector<1x128xf32>
    %c1_269 = arith.constant 1 : index
    %c0_270 = arith.constant 0 : index
    %c0_271 = arith.constant 0 : index
    %527 = vector.load %arg19[%c1_269, %c0_270, %c0_271] : memref<2x1x128xf32, #tpu.memory_space<vmem>>, vector<1x1x128xf32>
    %528 = vector.shape_cast %527 : vector<1x1x128xf32> to vector<1x128xf32>
    %cst_272 = arith.constant dense<0.000000e+00> : vector<32xf32>
    %529 = vector.multi_reduction <add>, %524, %cst_272 [1] : vector<32x128xf32> to vector<32xf32>
    %530 = vector.shape_cast %529 : vector<32xf32> to vector<32x1xf32>
    %cst_273 = arith.constant 1.280000e+02 : f32
    %531 = vector.broadcast %cst_273 : f32 to vector<32x1xf32>
    %532 = arith.divf %530, %531 : vector<32x1xf32>
    %533 = vector.broadcast %532 : vector<32x1xf32> to vector<32x128xf32>
    %534 = arith.subf %524, %533 : vector<32x128xf32>
    %535 = arith.mulf %534, %534 : vector<32x128xf32>
    %cst_274 = arith.constant dense<0.000000e+00> : vector<32xf32>
    %536 = vector.multi_reduction <add>, %535, %cst_274 [1] : vector<32x128xf32> to vector<32xf32>
    %537 = vector.shape_cast %536 : vector<32xf32> to vector<32x1xf32>
    %cst_275 = arith.constant 1.280000e+02 : f32
    %538 = vector.broadcast %cst_275 : f32 to vector<32x1xf32>
    %539 = arith.divf %537, %538 : vector<32x1xf32>
    %540 = vector.broadcast %532 : vector<32x1xf32> to vector<32x128xf32>
    %541 = arith.subf %524, %540 : vector<32x128xf32>
    %cst_276 = arith.constant 9.99999996E-13 : f32
    %542 = vector.broadcast %cst_276 : f32 to vector<32x1xf32>
    %543 = arith.addf %539, %542 : vector<32x1xf32>
    %544 = math.rsqrt %543 : vector<32x1xf32>
    %545 = vector.broadcast %544 : vector<32x1xf32> to vector<32x128xf32>
    %546 = arith.mulf %541, %545 : vector<32x128xf32>
    %547 = vector.broadcast %526 : vector<1x128xf32> to vector<32x128xf32>
    %548 = arith.mulf %546, %547 : vector<32x128xf32>
    %549 = vector.broadcast %528 : vector<1x128xf32> to vector<32x128xf32>
    %550 = arith.addf %548, %549 : vector<32x128xf32>
    %551 = vector.extract_strided_slice %550 {offsets = [0, 0], sizes = [1, 128], strides = [1, 1]} : vector<32x128xf32> to vector<1x128xf32>
    %552 = vector.extract_strided_slice %550 {offsets = [8, 0], sizes = [1, 128], strides = [1, 1]} : vector<32x128xf32> to vector<1x128xf32>
    %553 = vector.extract_strided_slice %550 {offsets = [16, 0], sizes = [1, 128], strides = [1, 1]} : vector<32x128xf32> to vector<1x128xf32>
    %554 = vector.extract_strided_slice %550 {offsets = [24, 0], sizes = [1, 128], strides = [1, 1]} : vector<32x128xf32> to vector<1x128xf32>
    %555 = tpu.concatenate %551, %552, %553, %554 in 0 : vector<1x128xf32>, vector<1x128xf32>, vector<1x128xf32>, vector<1x128xf32> -> vector<4x128xf32>
    %c0_277 = arith.constant 0 : index
    %c0_278 = arith.constant 0 : index
    %556 = vector.load %arg20[%c0_277, %c0_278] : memref<128x128xbf16, #tpu.memory_space<vmem>>, vector<128x128xbf16>
    %557 = arith.truncf %555 : vector<4x128xf32> to vector<4x128xbf16>
    %cst_279 = arith.constant dense<0.000000e+00> : vector<4x128xf32>
    %558 = tpu.matmul %557, %556, %cst_279 {dimension_numbers = #tpu.dot_dimension_numbers<[1], [0], [0], [1], [0, 0, 1, 1], [], []>} : vector<4x128xbf16>, vector<128x128xbf16>, vector<4x128xf32> -> vector<4x128xf32>
    %c0_280 = arith.constant 0 : index
    %c0_281 = arith.constant 0 : index
    %559 = vector.load %arg21[%c0_280, %c0_281] : memref<1x128xf32, #tpu.memory_space<vmem>>, vector<1x128xf32>
    %560 = vector.broadcast %559 : vector<1x128xf32> to vector<4x128xf32>
    %561 = arith.addf %558, %560 : vector<4x128xf32>
    %562 = math.tanh %561 : vector<4x128xf32>
    %c0_282 = arith.constant 0 : index
    %c0_283 = arith.constant 0 : index
    %c0_284 = arith.constant 0 : index
    %563 = vector.load %arg22[%c0_282, %c0_283, %c0_284] : memref<1x4x128xf32, #tpu.memory_space<vmem>>, vector<1x4x128xf32>
    %564 = vector.shape_cast %563 : vector<1x4x128xf32> to vector<4x128xf32>
    %565 = vector.shape_cast %562 : vector<4x128xf32> to vector<1x4x128xf32>
    tpu.vector_store %arg22[%c0_282, %c0_283, %c0_284], %565 {strides = array<i32>} : memref<1x4x128xf32, #tpu.memory_space<vmem>>, vector<1x4x128xf32>,
    return
  }
  func.func @transform_0(%arg0: i32, %arg1: memref<8x8xi32, #tpu.memory_space<smem>>) -> (i32, i32, i32) {
    %c0_i32 = arith.constant 0 : i32
    %c0_i32_0 = arith.constant 0 : i32
    %c0_i32_1 = arith.constant 0 : i32
    return %arg0, %c0_i32, %c0_i32_0 : i32, i32, i32
  }
  func.func @transform_1(%arg0: i32, %arg1: memref<8x8xi32, #tpu.memory_space<smem>>) -> (i32, i32) {
    %c0_i32 = arith.constant 0 : i32
    %c0_i32_0 = arith.constant 0 : i32
    %c0_i32_1 = arith.constant 0 : i32
    return %c0_i32, %c0_i32_0 : i32, i32
  }
  func.func @transform_2(%arg0: i32, %arg1: memref<8x8xi32, #tpu.memory_space<smem>>) -> (i32, i32) {
    %c0_i32 = arith.constant 0 : i32
    %c0_i32_0 = arith.constant 0 : i32
    %c0_i32_1 = arith.constant 0 : i32
    return %c0_i32, %c0_i32_0 : i32, i32
  }
  func.func @transform_3(%arg0: i32, %arg1: memref<8x8xi32, #tpu.memory_space<smem>>) -> (i32, i32) {
    %c0_i32 = arith.constant 0 : i32
    %c0_i32_0 = arith.constant 0 : i32
    %c0_i32_1 = arith.constant 0 : i32
    return %c0_i32, %c0_i32_0 : i32, i32
  }
  func.func @transform_4(%arg0: i32, %arg1: memref<8x8xi32, #tpu.memory_space<smem>>) -> (i32, i32) {
    %c0_i32 = arith.constant 0 : i32
    %c0_i32_0 = arith.constant 0 : i32
    %c0_i32_1 = arith.constant 0 : i32
    return %c0_i32, %c0_i32_0 : i32, i32
  }
  func.func @transform_5(%arg0: i32, %arg1: memref<8x8xi32, #tpu.memory_space<smem>>) -> (i32, i32) {
    %c0_i32 = arith.constant 0 : i32
    %c0_i32_0 = arith.constant 0 : i32
    %c0_i32_1 = arith.constant 0 : i32
    return %c0_i32, %c0_i32_0 : i32, i32
  }
  func.func @transform_6(%arg0: i32, %arg1: memref<8x8xi32, #tpu.memory_space<smem>>) -> (i32, i32, i32) {
    %c0_i32 = arith.constant 0 : i32
    %c0_i32_0 = arith.constant 0 : i32
    %c0_i32_1 = arith.constant 0 : i32
    %c0_i32_2 = arith.constant 0 : i32
    return %c0_i32, %c0_i32_0, %c0_i32_1 : i32, i32, i32
  }
  func.func @transform_7(%arg0: i32, %arg1: memref<8x8xi32, #tpu.memory_space<smem>>) -> (i32, i32, i32) {
    %c0_i32 = arith.constant 0 : i32
    %c0_i32_0 = arith.constant 0 : i32
    %c0_i32_1 = arith.constant 0 : i32
    %c0_i32_2 = arith.constant 0 : i32
    return %c0_i32, %c0_i32_0, %c0_i32_1 : i32, i32, i32
  }
  func.func @transform_8(%arg0: i32, %arg1: memref<8x8xi32, #tpu.memory_space<smem>>) -> (i32, i32, i32) {
    %c0_i32 = arith.constant 0 : i32
    %c0_i32_0 = arith.constant 0 : i32
    %c0_i32_1 = arith.constant 0 : i32
    %c0_i32_2 = arith.constant 0 : i32
    return %c0_i32, %c0_i32_0, %c0_i32_1 : i32, i32, i32
  }
  func.func @transform_9(%arg0: i32, %arg1: memref<8x8xi32, #tpu.memory_space<smem>>) -> (i32, i32, i32) {
    %c0_i32 = arith.constant 0 : i32
    %c0_i32_0 = arith.constant 0 : i32
    %c0_i32_1 = arith.constant 0 : i32
    %c0_i32_2 = arith.constant 0 : i32
    return %c0_i32, %c0_i32_0, %c0_i32_1 : i32, i32, i32
  }
  func.func @transform_10(%arg0: i32, %arg1: memref<8x8xi32, #tpu.memory_space<smem>>) -> (i32, i32, i32) {
    %c0_i32 = arith.constant 0 : i32
    %c0_i32_0 = arith.constant 0 : i32
    %c0_i32_1 = arith.constant 0 : i32
    %c0_i32_2 = arith.constant 0 : i32
    return %c0_i32, %c0_i32_0, %c0_i32_1 : i32, i32, i32
  }
  func.func @transform_11(%arg0: i32, %arg1: memref<8x8xi32, #tpu.memory_space<smem>>) -> (i32, i32, i32) {
    %c0_i32 = arith.constant 0 : i32
    %c0_i32_0 = arith.constant 0 : i32
    %c0_i32_1 = arith.constant 0 : i32
    %c0_i32_2 = arith.constant 0 : i32
    return %c0_i32, %c0_i32_0, %c0_i32_1 : i32, i32, i32
  }
  func.func @transform_12(%arg0: i32, %arg1: memref<8x8xi32, #tpu.memory_space<smem>>) -> (i32, i32, i32) {
    %c0_i32 = arith.constant 0 : i32
    %c0_i32_0 = arith.constant 0 : i32
    %c0_i32_1 = arith.constant 0 : i32
    %c0_i32_2 = arith.constant 0 : i32
    return %c0_i32, %c0_i32_0, %c0_i32_1 : i32, i32, i32
  }
  func.func @transform_13(%arg0: i32, %arg1: memref<8x8xi32, #tpu.memory_space<smem>>) -> (i32, i32, i32) {
    %c0_i32 = arith.constant 0 : i32
    %c0_i32_0 = arith.constant 0 : i32
    %c0_i32_1 = arith.constant 0 : i32
    %c0_i32_2 = arith.constant 0 : i32
    return %c0_i32, %c0_i32_0, %c0_i32_1 : i32, i32, i32
  }
  func.func @transform_14(%arg0: i32, %arg1: memref<8x8xi32, #tpu.memory_space<smem>>) -> (i32, i32, i32) {
    %c0_i32 = arith.constant 0 : i32
    %c0_i32_0 = arith.constant 0 : i32
    %c0_i32_1 = arith.constant 0 : i32
    %c0_i32_2 = arith.constant 0 : i32
    return %c0_i32, %c0_i32_0, %c0_i32_1 : i32, i32, i32
  }
  func.func @transform_15(%arg0: i32, %arg1: memref<8x8xi32, #tpu.memory_space<smem>>) -> (i32, i32, i32) {
    %c0_i32 = arith.constant 0 : i32
    %c0_i32_0 = arith.constant 0 : i32
    %c0_i32_1 = arith.constant 0 : i32
    %c0_i32_2 = arith.constant 0 : i32
    return %c0_i32, %c0_i32_0, %c0_i32_1 : i32, i32, i32
  }
  func.func @transform_16(%arg0: i32, %arg1: memref<8x8xi32, #tpu.memory_space<smem>>) -> (i32, i32, i32) {
    %c0_i32 = arith.constant 0 : i32
    %c0_i32_0 = arith.constant 0 : i32
    %c0_i32_1 = arith.constant 0 : i32
    %c0_i32_2 = arith.constant 0 : i32
    return %c0_i32, %c0_i32_0, %c0_i32_1 : i32, i32, i32
  }
  func.func @transform_17(%arg0: i32, %arg1: memref<8x8xi32, #tpu.memory_space<smem>>) -> (i32, i32, i32) {
    %c0_i32 = arith.constant 0 : i32
    %c0_i32_0 = arith.constant 0 : i32
    %c0_i32_1 = arith.constant 0 : i32
    %c0_i32_2 = arith.constant 0 : i32
    return %c0_i32, %c0_i32_0, %c0_i32_1 : i32, i32, i32
  }
  func.func @transform_18(%arg0: i32, %arg1: memref<8x8xi32, #tpu.memory_space<smem>>) -> (i32, i32) {
    %c0_i32 = arith.constant 0 : i32
    %c0_i32_0 = arith.constant 0 : i32
    %c0_i32_1 = arith.constant 0 : i32
    return %c0_i32, %c0_i32_0 : i32, i32
  }
  func.func @transform_19(%arg0: i32, %arg1: memref<8x8xi32, #tpu.memory_space<smem>>) -> (i32, i32) {
    %c0_i32 = arith.constant 0 : i32
    %c0_i32_0 = arith.constant 0 : i32
    %c0_i32_1 = arith.constant 0 : i32
    return %c0_i32, %c0_i32_0 : i32, i32
  }
  func.func @transform_20(%arg0: i32, %arg1: memref<8x8xi32, #tpu.memory_space<smem>>) -> (i32, i32, i32) {
    %c0_i32 = arith.constant 0 : i32
    %c0_i32_0 = arith.constant 0 : i32
    %c0_i32_1 = arith.constant 0 : i32
    return %arg0, %c0_i32, %c0_i32_0 : i32, i32, i32
  }
}

</mosaic_0001>

<llo_original>
// kernel: bert_forward.1
$region0: #{bert_forward.1}
  #allocation0 [shape = 'u32[]', space=smem, size = 0x4, offset = 0x4, fixed_abs, tag = 'smem constant byte address 0x4 - core index']
  #allocation1 [shape = 'u32[144,128]{1,0:T(1,128)}', space=vmem, size = 0x12000, scoped, tag = 'internal scratch']
  #allocation2 [shape = 'f32[32,128]{1,0:T(8,128)}', space=vmem, size = 0x4000, scoped, tag = 'scratch operand']
  #allocation3 [shape = 's32[1]{0}', space=sflag, size = 0x4, scoped, tag = 'scoped memory for bert_forward.1']
  #allocation4 [shape = 'u8[4096]{0}', space=smem, size = 0x1000, scoped, tag = 'prefetched SMEM operand 0']
  %s0 = inlined_call_operand.vmem [shape: s32[8,8], index: 0, kind: input, shape index: {}]
  %s1 = inlined_call_operand.vmem [shape: f32[8,1,128], index: 1, kind: input, shape index: {}]
  %s2 = inlined_call_operand.hbm [shape: f32[512,128], index: 2, kind: input, shape index: {}]
  %s3 = inlined_call_operand.vmem [shape: f32[64,128], index: 3, kind: input, shape index: {}]
  %s4 = inlined_call_operand.vmem [shape: f32[2,128], index: 4, kind: input, shape index: {}]
  %s5 = inlined_call_operand.vmem [shape: f32[1,128], index: 5, kind: input, shape index: {}]
  %s6 = inlined_call_operand.vmem [shape: f32[1,128], index: 6, kind: input, shape index: {}]
  %s7 = inlined_call_operand.hbm [shape: bf16[2,128,384], index: 7, kind: input, shape index: {}]
  %s8 = inlined_call_operand.vmem [shape: f32[2,1,384], index: 8, kind: input, shape index: {}]
  %s9 = inlined_call_operand.hbm [shape: bf16[4,64,128], index: 9, kind: input, shape index: {}]
  %s10 = inlined_call_operand.vmem [shape: f32[2,1,128], index: 10, kind: input, shape index: {}]
  %s11 = inlined_call_operand.vmem [shape: f32[2,1,128], index: 11, kind: input, shape index: {}]
  %s12 = inlined_call_operand.vmem [shape: f32[2,1,128], index: 12, kind: input, shape index: {}]
  %s13 = inlined_call_operand.hbm [shape: bf16[2,128,256], index: 13, kind: input, shape index: {}]
  %s14 = inlined_call_operand.vmem [shape: f32[2,1,256], index: 14, kind: input, shape index: {}]
  %s15 = inlined_call_operand.hbm [shape: bf16[2,256,128], index: 15, kind: input, shape index: {}]
  %s16 = inlined_call_operand.vmem [shape: f32[2,1,128], index: 16, kind: input, shape index: {}]
  %s17 = inlined_call_operand.vmem [shape: f32[2,1,128], index: 17, kind: input, shape index: {}]
  %s18 = inlined_call_operand.vmem [shape: f32[2,1,128], index: 18, kind: input, shape index: {}]
  %s19 = inlined_call_operand.hbm [shape: bf16[128,128], index: 19, kind: input, shape index: {}]
  %s20 = inlined_call_operand.vmem [shape: f32[1,128], index: 20, kind: input, shape index: {}]
  %s21 = inlined_call_operand.vmem [shape: f32[2,4,128], index: 21, kind: output, shape index: {}]
  %s22 = sld [smem:[#allocation0]]
  $region137: #{bert_forward.1} parent=0
    _
  %s24 = ssub.s32 1, %s22
  %s25 = scalar_select 0, %s24, %s22
  %s26 = sshll.u32 %s0, 4
  %s27 = int_to_ptr.vmem [resolvable:$true] %s26
  %29 = dma.vmem_to_smem %s27, 128, [#allocation4], [#allocation3]
  %30 = dma.done [#allocation3], 128
  %31 = sfence
  $region1: #{bert_forward.1} parent=0
    #allocation5 [shape = 'u8[262144]{0}', space=vmem, size = 0x40000, scoped, tag = 'input window, operand 2, single buffered']
    #allocation6 [shape = 's32[2]{0}', space=sflag, size = 0x8, scoped, tag = 'scoped memory for bert_forward.1']
    #allocation7 [shape = 'u8[196608]{0}', space=vmem, size = 0x30000, scoped, tag = 'input window, operand 7, single buffered']
    #allocation8 [shape = 's32[1]{0}', space=sflag, size = 0x4, scoped, tag = 'scoped memory for bert_forward.1']
    #allocation9 [shape = 'u8[65536]{0}', space=vmem, size = 0x10000, scoped, tag = 'input window, operand 9, single buffered']
    #allocation10 [shape = 'u8[131072]{0}', space=vmem, size = 0x20000, scoped, tag = 'input window, operand 13, single buffered']
    #allocation11 [shape = 's32[1]{0}', space=sflag, size = 0x4, scoped, tag = 'scoped memory for bert_forward.1']
    #allocation12 [shape = 'u8[131072]{0}', space=vmem, size = 0x20000, scoped, tag = 'input window, operand 15, single buffered']
    #allocation13 [shape = 'u8[32768]{0}', space=vmem, size = 0x8000, scoped, tag = 'input window, operand 19, single buffered']
    #allocation14 [shape = 's32[1]{0}', space=sflag, size = 0x4, scoped, tag = 'scoped memory for bert_forward.1']
    %32 = vsyncpa [#allocation6], 0
    %33 = vsyncpa [#allocation8], 0
    %34 = vsyncpa [#allocation11], 0
    %35 = vsyncpa [#allocation14], 0
    loop: start=0, step=1, limit=4
    $region2: #{bert_forward.1} parent=1 // loop_pre_header
      _
    $region3: #{bert_forward.1} parent=1 // loop_header
      %s37 = sphi 0, %s41
      %p38 = scmp.ge.s32.totalorder %s37, 4
      %s47 = sphi 0, %s49
      %s50 = sphi 0, %s47
      %s51 = sphi 0, %s50
      %s67 = sphi 0, %s51
      %s71 = sphi 0, %s71
      %s73 = sphi 0, %s71
      %s74 = sphi 0, %s73
      %s88 = sphi 0, %s74
      %s92 = sphi 0, %s92
      %s94 = sphi 0, %s92
      %s95 = sphi 0, %s94
      %s109 = sphi 0, %s95
      %s113 = sphi 0, %s113
      %s115 = sphi 0, %s113
      %s116 = sphi 0, %s115
      %s130 = sphi 0, %s116
      %s134 = sphi 0, %s134
      %s136 = sphi 0, %s134
      %s137 = sphi 0, %s136
      %s151 = sphi 0, %s137
      %s155 = sphi 0, %s155
      %s157 = sphi 0, %s155
      %s158 = sphi 0, %s157
      %s172 = sphi 0, %s158
      %s176 = sphi 0, %s176
      %s178 = sphi 0, %s176
      %s179 = sphi 0, %s178
      %s193 = sphi 0, %s179
      %s197 = sphi 0, %s197
      %s199 = sphi 0, %s197
      %s200 = sphi 0, %s199
      %s214 = sphi 0, %s200
      %s218 = sphi 0, %s218
      %s220 = sphi 0, %s218
      %s221 = sphi 0, %s220
      %s235 = sphi 0, %s221
      %s239 = sphi 0, %s239
      %s241 = sphi 0, %s239
      %s242 = sphi 0, %s241
      %s256 = sphi 0, %s242
      %s260 = sphi 0, %s260
      %s262 = sphi 0, %s260
      %s263 = sphi 0, %s262
      %s277 = sphi 0, %s263
      %s281 = sphi 0, %s281
      %s283 = sphi 0, %s281
      %s284 = sphi 0, %s283
      %s298 = sphi 0, %s284
      %s302 = sphi 0, %s302
      %s304 = sphi 0, %s302
      %s305 = sphi 0, %s304
      %s319 = sphi 0, %s305
      %s323 = sphi 0, %s323
      %s325 = sphi 0, %s323
      %s326 = sphi 0, %s325
      %s340 = sphi 0, %s326
      %s344 = sphi 0, %s344
      %s346 = sphi 0, %s344
      %s347 = sphi 0, %s346
      %s361 = sphi 0, %s347
      %s365 = sphi 0, %s365
      %s367 = sphi 0, %s365
      %s368 = sphi 0, %s367
      %s382 = sphi 0, %s368
      %s386 = sphi 0, %s386
      %s388 = sphi 0, %s386
      %s389 = sphi 0, %s388
      %s403 = sphi 0, %s389
      %s407 = sphi 0, %s407
      %s409 = sphi 0, %s407
      %s410 = sphi 0, %s409
      %s424 = sphi 0, %s410
      %s428 = sphi 0, %s428
      %s430 = sphi 0, %s428
      %s431 = sphi 0, %s430
      %s445 = sphi 0, %s431
      %s449 = sphi 0, %s449
      %s451 = sphi 0, %s449
      %s452 = sphi 0, %s451
      %s466 = sphi 0, %s452
      %s472 = sphi 0, %s474
      %s475 = sphi 0, %s472
      %s476 = sphi 0, %s475
      %s492 = sphi 0, %s476
    $region4: #{bert_forward.1} parent=1 // loop_header_branch
      %40 = sbr.rel (%p38) target = $region8
    $region5: #{bert_forward.1} parent=1 // loop_body
      %s42 = ssub.s32 %s37, 1
      %s43 = ssub.s32 %s37, 2
      %s44 = sadd.s32 %s37, 1
      %s45 = ssub.s32 %s37, %s44
      %p46 = scmp.eq.s32.totalorder %s45, 0
      %s48 = sadd.s32 %s47, 1
      %s49 = scalar_select %p46, %s47, %s48
      %p52 = pneg %p46
      %p53 = scmp.eq.s32.totalorder %s37, 1
      %p54 = por %p52, %p53
      %p55 = scmp.ne.s32.totalorder %s47, %s50
      %p56 = scmp.eq.s32.totalorder %s37, 0
      %p57 = por %p55, %p56
      %p58 = scmp.ne.s32.totalorder %s47, %s50
      %p59 = scmp.eq.s32.totalorder %s42, 1
      %p60 = por %p58, %p59
      %p61 = scmp.ne.s32.totalorder %s50, %s51
      %p62 = scmp.eq.s32.totalorder %s42, 0
      %p63 = por %p61, %p62
      %p64 = scmp.ne.s32.totalorder %s50, %s51
      %p65 = scmp.eq.s32.totalorder %s43, 1
      %p66 = por %p64, %p65
      %p68 = scmp.ne.s32.totalorder %s51, %s67
      %p69 = scmp.eq.s32.totalorder %s43, 0
      %p70 = por %p68, %p69
      %s72 = sadd.s32 %s71, 1
      %p75 = scmp.eq.s32.totalorder %s37, 1
      %p76 = scmp.ne.s32.totalorder %s71, %s73
      %p77 = scmp.eq.s32.totalorder %s37, 0
      %p78 = por %p76, %p77
      %p79 = scmp.ne.s32.totalorder %s71, %s73
      %p80 = scmp.eq.s32.totalorder %s42, 1
      %p81 = por %p79, %p80
      %p82 = scmp.ne.s32.totalorder %s73, %s74
      %p83 = scmp.eq.s32.totalorder %s42, 0
      %p84 = por %p82, %p83
      %p85 = scmp.ne.s32.totalorder %s73, %s74
      %p86 = scmp.eq.s32.totalorder %s43, 1
      %p87 = por %p85, %p86
      %p89 = scmp.ne.s32.totalorder %s74, %s88
      %p90 = scmp.eq.s32.totalorder %s43, 0
      %p91 = por %p89, %p90
      %s93 = sadd.s32 %s92, 1
      %p96 = scmp.eq.s32.totalorder %s37, 1
      %p97 = scmp.ne.s32.totalorder %s92, %s94
      %p98 = scmp.eq.s32.totalorder %s37, 0
      %p99 = por %p97, %p98
      %p100 = scmp.ne.s32.totalorder %s92, %s94
      %p101 = scmp.eq.s32.totalorder %s42, 1
      %p102 = por %p100, %p101
      %p103 = scmp.ne.s32.totalorder %s94, %s95
      %p104 = scmp.eq.s32.totalorder %s42, 0
      %p105 = por %p103, %p104
      %p106 = scmp.ne.s32.totalorder %s94, %s95
      %p107 = scmp.eq.s32.totalorder %s43, 1
      %p108 = por %p106, %p107
      %p110 = scmp.ne.s32.totalorder %s95, %s109
      %p111 = scmp.eq.s32.totalorder %s43, 0
      %p112 = por %p110, %p111
      %s114 = sadd.s32 %s113, 1
      %p117 = scmp.eq.s32.totalorder %s37, 1
      %p118 = scmp.ne.s32.totalorder %s113, %s115
      %p119 = scmp.eq.s32.totalorder %s37, 0
      %p120 = por %p118, %p119
      %p121 = scmp.ne.s32.totalorder %s113, %s115
      %p122 = scmp.eq.s32.totalorder %s42, 1
      %p123 = por %p121, %p122
      %p124 = scmp.ne.s32.totalorder %s115, %s116
      %p125 = scmp.eq.s32.totalorder %s42, 0
      %p126 = por %p124, %p125
      %p127 = scmp.ne.s32.totalorder %s115, %s116
      %p128 = scmp.eq.s32.totalorder %s43, 1
      %p129 = por %p127, %p128
      %p131 = scmp.ne.s32.totalorder %s116, %s130
      %p132 = scmp.eq.s32.totalorder %s43, 0
      %p133 = por %p131, %p132
      %s135 = sadd.s32 %s134, 1
      %p138 = scmp.eq.s32.totalorder %s37, 1
      %p139 = scmp.ne.s32.totalorder %s134, %s136
      %p140 = scmp.eq.s32.totalorder %s37, 0
      %p141 = por %p139, %p140
      %p142 = scmp.ne.s32.totalorder %s134, %s136
      %p143 = scmp.eq.s32.totalorder %s42, 1
      %p144 = por %p142, %p143
      %p145 = scmp.ne.s32.totalorder %s136, %s137
      %p146 = scmp.eq.s32.totalorder %s42, 0
      %p147 = por %p145, %p146
      %p148 = scmp.ne.s32.totalorder %s136, %s137
      %p149 = scmp.eq.s32.totalorder %s43, 1
      %p150 = por %p148, %p149
      %p152 = scmp.ne.s32.totalorder %s137, %s151
      %p153 = scmp.eq.s32.totalorder %s43, 0
      %p154 = por %p152, %p153
      %s156 = sadd.s32 %s155, 1
      %p159 = scmp.eq.s32.totalorder %s37, 1
      %p160 = scmp.ne.s32.totalorder %s155, %s157
      %p161 = scmp.eq.s32.totalorder %s37, 0
      %p162 = por %p160, %p161
      %p163 = scmp.ne.s32.totalorder %s155, %s157
      %p164 = scmp.eq.s32.totalorder %s42, 1
      %p165 = por %p163, %p164
      %p166 = scmp.ne.s32.totalorder %s157, %s158
      %p167 = scmp.eq.s32.totalorder %s42, 0
      %p168 = por %p166, %p167
      %p169 = scmp.ne.s32.totalorder %s157, %s158
      %p170 = scmp.eq.s32.totalorder %s43, 1
      %p171 = por %p169, %p170
      %p173 = scmp.ne.s32.totalorder %s158, %s172
      %p174 = scmp.eq.s32.totalorder %s43, 0
      %p175 = por %p173, %p174
      %s177 = sadd.s32 %s176, 1
      %p180 = scmp.eq.s32.totalorder %s37, 1
      %p181 = scmp.ne.s32.totalorder %s176, %s178
      %p182 = scmp.eq.s32.totalorder %s37, 0
      %p183 = por %p181, %p182
      %p184 = scmp.ne.s32.totalorder %s176, %s178
      %p185 = scmp.eq.s32.totalorder %s42, 1
      %p186 = por %p184, %p185
      %p187 = scmp.ne.s32.totalorder %s178, %s179
      %p188 = scmp.eq.s32.totalorder %s42, 0
      %p189 = por %p187, %p188
      %p190 = scmp.ne.s32.totalorder %s178, %s179
      %p191 = scmp.eq.s32.totalorder %s43, 1
      %p192 = por %p190, %p191
      %p194 = scmp.ne.s32.totalorder %s179, %s193
      %p195 = scmp.eq.s32.totalorder %s43, 0
      %p196 = por %p194, %p195
      %s198 = sadd.s32 %s197, 1
      %p201 = scmp.eq.s32.totalorder %s37, 1
      %p202 = scmp.ne.s32.totalorder %s197, %s199
      %p203 = scmp.eq.s32.totalorder %s37, 0
      %p204 = por %p202, %p203
      %p205 = scmp.ne.s32.totalorder %s197, %s199
      %p206 = scmp.eq.s32.totalorder %s42, 1
      %p207 = por %p205, %p206
      %p208 = scmp.ne.s32.totalorder %s199, %s200
      %p209 = scmp.eq.s32.totalorder %s42, 0
      %p210 = por %p208, %p209
      %p211 = scmp.ne.s32.totalorder %s199, %s200
      %p212 = scmp.eq.s32.totalorder %s43, 1
      %p213 = por %p211, %p212
      %p215 = scmp.ne.s32.totalorder %s200, %s214
      %p216 = scmp.eq.s32.totalorder %s43, 0
      %p217 = por %p215, %p216
      %s219 = sadd.s32 %s218, 1
      %p222 = scmp.eq.s32.totalorder %s37, 1
      %p223 = scmp.ne.s32.totalorder %s218, %s220
      %p224 = scmp.eq.s32.totalorder %s37, 0
      %p225 = por %p223, %p224
      %p226 = scmp.ne.s32.totalorder %s218, %s220
      %p227 = scmp.eq.s32.totalorder %s42, 1
      %p228 = por %p226, %p227
      %p229 = scmp.ne.s32.totalorder %s220, %s221
      %p230 = scmp.eq.s32.totalorder %s42, 0
      %p231 = por %p229, %p230
      %p232 = scmp.ne.s32.totalorder %s220, %s221
      %p233 = scmp.eq.s32.totalorder %s43, 1
      %p234 = por %p232, %p233
      %p236 = scmp.ne.s32.totalorder %s221, %s235
      %p237 = scmp.eq.s32.totalorder %s43, 0
      %p238 = por %p236, %p237
      %s240 = sadd.s32 %s239, 1
      %p243 = scmp.eq.s32.totalorder %s37, 1
      %p244 = scmp.ne.s32.totalorder %s239, %s241
      %p245 = scmp.eq.s32.totalorder %s37, 0
      %p246 = por %p244, %p245
      %p247 = scmp.ne.s32.totalorder %s239, %s241
      %p248 = scmp.eq.s32.totalorder %s42, 1
      %p249 = por %p247, %p248
      %p250 = scmp.ne.s32.totalorder %s241, %s242
      %p251 = scmp.eq.s32.totalorder %s42, 0
      %p252 = por %p250, %p251
      %p253 = scmp.ne.s32.totalorder %s241, %s242
      %p254 = scmp.eq.s32.totalorder %s43, 1
      %p255 = por %p253, %p254
      %p257 = scmp.ne.s32.totalorder %s242, %s256
      %p258 = scmp.eq.s32.totalorder %s43, 0
      %p259 = por %p257, %p258
      %s261 = sadd.s32 %s260, 1
      %p264 = scmp.eq.s32.totalorder %s37, 1
      %p265 = scmp.ne.s32.totalorder %s260, %s262
      %p266 = scmp.eq.s32.totalorder %s37, 0
      %p267 = por %p265, %p266
      %p268 = scmp.ne.s32.totalorder %s260, %s262
      %p269 = scmp.eq.s32.totalorder %s42, 1
      %p270 = por %p268, %p269
      %p271 = scmp.ne.s32.totalorder %s262, %s263
      %p272 = scmp.eq.s32.totalorder %s42, 0
      %p273 = por %p271, %p272
      %p274 = scmp.ne.s32.totalorder %s262, %s263
      %p275 = scmp.eq.s32.totalorder %s43, 1
      %p276 = por %p274, %p275
      %p278 = scmp.ne.s32.totalorder %s263, %s277
      %p279 = scmp.eq.s32.totalorder %s43, 0
      %p280 = por %p278, %p279
      %s282 = sadd.s32 %s281, 1
      %p285 = scmp.eq.s32.totalorder %s37, 1
      %p286 = scmp.ne.s32.totalorder %s281, %s283
      %p287 = scmp.eq.s32.totalorder %s37, 0
      %p288 = por %p286, %p287
      %p289 = scmp.ne.s32.totalorder %s281, %s283
      %p290 = scmp.eq.s32.totalorder %s42, 1
      %p291 = por %p289, %p290
      %p292 = scmp.ne.s32.totalorder %s283, %s284
      %p293 = scmp.eq.s32.totalorder %s42, 0
      %p294 = por %p292, %p293
      %p295 = scmp.ne.s32.totalorder %s283, %s284
      %p296 = scmp.eq.s32.totalorder %s43, 1
      %p297 = por %p295, %p296
      %p299 = scmp.ne.s32.totalorder %s284, %s298
      %p300 = scmp.eq.s32.totalorder %s43, 0
      %p301 = por %p299, %p300
      %s303 = sadd.s32 %s302, 1
      %p306 = scmp.eq.s32.totalorder %s37, 1
      %p307 = scmp.ne.s32.totalorder %s302, %s304
      %p308 = scmp.eq.s32.totalorder %s37, 0
      %p309 = por %p307, %p308
      %p310 = scmp.ne.s32.totalorder %s302, %s304
      %p311 = scmp.eq.s32.totalorder %s42, 1
      %p312 = por %p310, %p311
      %p313 = scmp.ne.s32.totalorder %s304, %s305
      %p314 = scmp.eq.s32.totalorder %s42, 0
      %p315 = por %p313, %p314
      %p316 = scmp.ne.s32.totalorder %s304, %s305
      %p317 = scmp.eq.s32.totalorder %s43, 1
      %p318 = por %p316, %p317
      %p320 = scmp.ne.s32.totalorder %s305, %s319
      %p321 = scmp.eq.s32.totalorder %s43, 0
      %p322 = por %p320, %p321
      %s324 = sadd.s32 %s323, 1
      %p327 = scmp.eq.s32.totalorder %s37, 1
      %p328 = scmp.ne.s32.totalorder %s323, %s325
      %p329 = scmp.eq.s32.totalorder %s37, 0
      %p330 = por %p328, %p329
      %p331 = scmp.ne.s32.totalorder %s323, %s325
      %p332 = scmp.eq.s32.totalorder %s42, 1
      %p333 = por %p331, %p332
      %p334 = scmp.ne.s32.totalorder %s325, %s326
      %p335 = scmp.eq.s32.totalorder %s42, 0
      %p336 = por %p334, %p335
      %p337 = scmp.ne.s32.totalorder %s325, %s326
      %p338 = scmp.eq.s32.totalorder %s43, 1
      %p339 = por %p337, %p338
      %p341 = scmp.ne.s32.totalorder %s326, %s340
      %p342 = scmp.eq.s32.totalorder %s43, 0
      %p343 = por %p341, %p342
      %s345 = sadd.s32 %s344, 1
      %p348 = scmp.eq.s32.totalorder %s37, 1
      %p349 = scmp.ne.s32.totalorder %s344, %s346
      %p350 = scmp.eq.s32.totalorder %s37, 0
      %p351 = por %p349, %p350
      %p352 = scmp.ne.s32.totalorder %s344, %s346
      %p353 = scmp.eq.s32.totalorder %s42, 1
      %p354 = por %p352, %p353
      %p355 = scmp.ne.s32.totalorder %s346, %s347
      %p356 = scmp.eq.s32.totalorder %s42, 0
      %p357 = por %p355, %p356
      %p358 = scmp.ne.s32.totalorder %s346, %s347
      %p359 = scmp.eq.s32.totalorder %s43, 1
      %p360 = por %p358, %p359
      %p362 = scmp.ne.s32.totalorder %s347, %s361
      %p363 = scmp.eq.s32.totalorder %s43, 0
      %p364 = por %p362, %p363
      %s366 = sadd.s32 %s365, 1
      %p369 = scmp.eq.s32.totalorder %s37, 1
      %p370 = scmp.ne.s32.totalorder %s365, %s367
      %p371 = scmp.eq.s32.totalorder %s37, 0
      %p372 = por %p370, %p371
      %p373 = scmp.ne.s32.totalorder %s365, %s367
      %p374 = scmp.eq.s32.totalorder %s42, 1
      %p375 = por %p373, %p374
      %p376 = scmp.ne.s32.totalorder %s367, %s368
      %p377 = scmp.eq.s32.totalorder %s42, 0
      %p378 = por %p376, %p377
      %p379 = scmp.ne.s32.totalorder %s367, %s368
      %p380 = scmp.eq.s32.totalorder %s43, 1
      %p381 = por %p379, %p380
      %p383 = scmp.ne.s32.totalorder %s368, %s382
      %p384 = scmp.eq.s32.totalorder %s43, 0
      %p385 = por %p383, %p384
      %s387 = sadd.s32 %s386, 1
      %p390 = scmp.eq.s32.totalorder %s37, 1
      %p391 = scmp.ne.s32.totalorder %s386, %s388
      %p392 = scmp.eq.s32.totalorder %s37, 0
      %p393 = por %p391, %p392
      %p394 = scmp.ne.s32.totalorder %s386, %s388
      %p395 = scmp.eq.s32.totalorder %s42, 1
      %p396 = por %p394, %p395
      %p397 = scmp.ne.s32.totalorder %s388, %s389
      %p398 = scmp.eq.s32.totalorder %s42, 0
      %p399 = por %p397, %p398
      %p400 = scmp.ne.s32.totalorder %s388, %s389
      %p401 = scmp.eq.s32.totalorder %s43, 1
      %p402 = por %p400, %p401
      %p404 = scmp.ne.s32.totalorder %s389, %s403
      %p405 = scmp.eq.s32.totalorder %s43, 0
      %p406 = por %p404, %p405
      %s408 = sadd.s32 %s407, 1
      %p411 = scmp.eq.s32.totalorder %s37, 1
      %p412 = scmp.ne.s32.totalorder %s407, %s409
      %p413 = scmp.eq.s32.totalorder %s37, 0
      %p414 = por %p412, %p413
      %p415 = scmp.ne.s32.totalorder %s407, %s409
      %p416 = scmp.eq.s32.totalorder %s42, 1
      %p417 = por %p415, %p416
      %p418 = scmp.ne.s32.totalorder %s409, %s410
      %p419 = scmp.eq.s32.totalorder %s42, 0
      %p420 = por %p418, %p419
      %p421 = scmp.ne.s32.totalorder %s409, %s410
      %p422 = scmp.eq.s32.totalorder %s43, 1
      %p423 = por %p421, %p422
      %p425 = scmp.ne.s32.totalorder %s410, %s424
      %p426 = scmp.eq.s32.totalorder %s43, 0
      %p427 = por %p425, %p426
      %s429 = sadd.s32 %s428, 1
      %p432 = scmp.eq.s32.totalorder %s37, 1
      %p433 = scmp.ne.s32.totalorder %s428, %s430
      %p434 = scmp.eq.s32.totalorder %s37, 0
      %p435 = por %p433, %p434
      %p436 = scmp.ne.s32.totalorder %s428, %s430
      %p437 = scmp.eq.s32.totalorder %s42, 1
      %p438 = por %p436, %p437
      %p439 = scmp.ne.s32.totalorder %s430, %s431
      %p440 = scmp.eq.s32.totalorder %s42, 0
      %p441 = por %p439, %p440
      %p442 = scmp.ne.s32.totalorder %s430, %s431
      %p443 = scmp.eq.s32.totalorder %s43, 1
      %p444 = por %p442, %p443
      %p446 = scmp.ne.s32.totalorder %s431, %s445
      %p447 = scmp.eq.s32.totalorder %s43, 0
      %p448 = por %p446, %p447
      %s450 = sadd.s32 %s449, 1
      %p453 = scmp.eq.s32.totalorder %s37, 1
      %p454 = scmp.ne.s32.totalorder %s449, %s451
      %p455 = scmp.eq.s32.totalorder %s37, 0
      %p456 = por %p454, %p455
      %p457 = scmp.ne.s32.totalorder %s449, %s451
      %p458 = scmp.eq.s32.totalorder %s42, 1
      %p459 = por %p457, %p458
      %p460 = scmp.ne.s32.totalorder %s451, %s452
      %p461 = scmp.eq.s32.totalorder %s42, 0
      %p462 = por %p460, %p461
      %p463 = scmp.ne.s32.totalorder %s451, %s452
      %p464 = scmp.eq.s32.totalorder %s43, 1
      %p465 = por %p463, %p464
      %p467 = scmp.ne.s32.totalorder %s452, %s466
      %p468 = scmp.eq.s32.totalorder %s43, 0
      %p469 = por %p467, %p468
      %s470 = ssub.s32 %s37, %s44
      %p471 = scmp.eq.s32.totalorder %s470, 0
      %s473 = sadd.s32 %s472, 1
      %s474 = scalar_select %p471, %s472, %s473
      %p477 = pneg %p471
      %p478 = scmp.eq.s32.totalorder %s37, 1
      %p479 = por %p477, %p478
      %p480 = scmp.ne.s32.totalorder %s472, %s475
      %p481 = scmp.eq.s32.totalorder %s37, 0
      %p482 = por %p480, %p481
      %p483 = scmp.ne.s32.totalorder %s472, %s475
      %p484 = scmp.eq.s32.totalorder %s42, 1
      %p485 = por %p483, %p484
      %p486 = scmp.ne.s32.totalorder %s475, %s476
      %p487 = scmp.eq.s32.totalorder %s42, 0
      %p488 = por %p486, %p487
      %p489 = scmp.ne.s32.totalorder %s475, %s476
      %p490 = scmp.eq.s32.totalorder %s43, 1
      %p491 = por %p489, %p490
      %p493 = scmp.ne.s32.totalorder %s476, %s492
      %p494 = scmp.eq.s32.totalorder %s43, 0
      %p495 = por %p493, %p494
      %p496 = scmp.le.s32.totalorder 1, %s37
      %p497 = scmp.lt.s32.totalorder %s37, 3
      %p498 = pnand %p496, %p497
      %p499 = pneg %p498
      // Predicated region
      $region9: #{bert_forward.1} parent=5 // pred_check
        _
      $region10: #{bert_forward.1} parent=5 // pred_check_branch
        %501 = sbr.rel (%p498) target = $region12
      $region11: #{bert_forward.1} parent=5 // pred_region
        %s502 = ssub.s32 %s37, 1
        // Predicated region
        $region13: #{bert_forward.1} parent=11 // pred_check
          %p503 = pneg %p84
        $region14: #{bert_forward.1} parent=11 // pred_check_branch
          %505 = sbr.rel (%p503) target = $region16
        $region15: #{bert_forward.1} parent=11 // pred_region
          %s507 = ssub.s32 8192, 8192
          %508 = vsyncadd [#allocation6], %s507
          %s509 = sshll.u32 [#allocation5], 4
          %s510 = int_to_ptr.vmem [resolvable:$true] %s509
          %515 = dma.hbm_to_vmem [thread:$0]  %s2, 8192, %s510, [#allocation6], 128, 128, 8
        $region16: #{bert_forward.1} parent=11 // pred_fallthru
          _
        // Predicated region
        $region17: #{bert_forward.1} parent=11 // pred_check
          %p516 = pneg %p105
        $region18: #{bert_forward.1} parent=11 // pred_check_branch
          %518 = sbr.rel (%p516) target = $region20
        $region19: #{bert_forward.1} parent=11 // pred_region
          _
        $region20: #{bert_forward.1} parent=11 // pred_fallthru
          _
        // Predicated region
        $region21: #{bert_forward.1} parent=11 // pred_check
          %p519 = pneg %p126
        $region22: #{bert_forward.1} parent=11 // pred_check_branch
          %521 = sbr.rel (%p519) target = $region24
        $region23: #{bert_forward.1} parent=11 // pred_region
          _
        $region24: #{bert_forward.1} parent=11 // pred_fallthru
          _
        // Predicated region
        $region25: #{bert_forward.1} parent=11 // pred_check
          %p522 = pneg %p147
        $region26: #{bert_forward.1} parent=11 // pred_check_branch
          %524 = sbr.rel (%p522) target = $region28
        $region27: #{bert_forward.1} parent=11 // pred_region
          _
        $region28: #{bert_forward.1} parent=11 // pred_fallthru
          _
        // Predicated region
        $region29: #{bert_forward.1} parent=11 // pred_check
          %p525 = pneg %p168
        $region30: #{bert_forward.1} parent=11 // pred_check_branch
          %527 = sbr.rel (%p525) target = $region32
        $region31: #{bert_forward.1} parent=11 // pred_region
          _
        $region32: #{bert_forward.1} parent=11 // pred_fallthru
          _
        // Predicated region
        $region33: #{bert_forward.1} parent=11 // pred_check
          %p528 = pneg %p189
        $region34: #{bert_forward.1} parent=11 // pred_check_branch
          %530 = sbr.rel (%p528) target = $region36
        $region35: #{bert_forward.1} parent=11 // pred_region
          %s532 = ssub.s32 6144, 6144
          %533 = vsyncadd [#allocation8], %s532
          %s534 = sshll.u32 [#allocation7], 4
          %s535 = int_to_ptr.vmem [resolvable:$true] %s534
          %540 = dma.hbm_to_vmem [thread:$0]  %s7, 6144, %s535, [#allocation8], 192, 192, 12
        $region36: #{bert_forward.1} parent=11 // pred_fallthru
          _
        // Predicated region
        $region37: #{bert_forward.1} parent=11 // pred_check
          %p541 = pneg %p210
        $region38: #{bert_forward.1} parent=11 // pred_check_branch
          %543 = sbr.rel (%p541) target = $region40
        $region39: #{bert_forward.1} parent=11 // pred_region
          _
        $region40: #{bert_forward.1} parent=11 // pred_fallthru
          _
        // Predicated region
        $region41: #{bert_forward.1} parent=11 // pred_check
          %p544 = pneg %p231
        $region42: #{bert_forward.1} parent=11 // pred_check_branch
          %546 = sbr.rel (%p544) target = $region44
        $region43: #{bert_forward.1} parent=11 // pred_region
          %s548 = ssub.s32 2048, 2048
          %549 = vsyncadd [#allocation8], %s548
          %s550 = sshll.u32 [#allocation9], 4
          %s551 = int_to_ptr.vmem [resolvable:$true] %s550
          %556 = dma.hbm_to_vmem [thread:$0]  %s9, 2048, %s551, [#allocation8], 64, 64, 4
        $region44: #{bert_forward.1} parent=11 // pred_fallthru
          _
        // Predicated region
        $region45: #{bert_forward.1} parent=11 // pred_check
          %p557 = pneg %p252
        $region46: #{bert_forward.1} parent=11 // pred_check_branch
          %559 = sbr.rel (%p557) target = $region48
        $region47: #{bert_forward.1} parent=11 // pred_region
          _
        $region48: #{bert_forward.1} parent=11 // pred_fallthru
          _
        // Predicated region
        $region49: #{bert_forward.1} parent=11 // pred_check
          %p560 = pneg %p273
        $region50: #{bert_forward.1} parent=11 // pred_check_branch
          %562 = sbr.rel (%p560) target = $region52
        $region51: #{bert_forward.1} parent=11 // pred_region
          _
        $region52: #{bert_forward.1} parent=11 // pred_fallthru
          _
        // Predicated region
        $region53: #{bert_forward.1} parent=11 // pred_check
          %p563 = pneg %p294
        $region54: #{bert_forward.1} parent=11 // pred_check_branch
          %565 = sbr.rel (%p563) target = $region56
        $region55: #{bert_forward.1} parent=11 // pred_region
          _
        $region56: #{bert_forward.1} parent=11 // pred_fallthru
          _
        // Predicated region
        $region57: #{bert_forward.1} parent=11 // pred_check
          %p566 = pneg %p315
        $region58: #{bert_forward.1} parent=11 // pred_check_branch
          %568 = sbr.rel (%p566) target = $region60
        $region59: #{bert_forward.1} parent=11 // pred_region
          %s570 = ssub.s32 4096, 4096
          %571 = vsyncadd [#allocation11], %s570
          %s572 = sshll.u32 [#allocation10], 4
          %s573 = int_to_ptr.vmem [resolvable:$true] %s572
          %578 = dma.hbm_to_vmem [thread:$0]  %s13, 4096, %s573, [#allocation11], 128, 128, 8
        $region60: #{bert_forward.1} parent=11 // pred_fallthru
          _
        // Predicated region
        $region61: #{bert_forward.1} parent=11 // pred_check
          %p579 = pneg %p336
        $region62: #{bert_forward.1} parent=11 // pred_check_branch
          %581 = sbr.rel (%p579) target = $region64
        $region63: #{bert_forward.1} parent=11 // pred_region
          _
        $region64: #{bert_forward.1} parent=11 // pred_fallthru
          _
        // Predicated region
        $region65: #{bert_forward.1} parent=11 // pred_check
          %p582 = pneg %p357
        $region66: #{bert_forward.1} parent=11 // pred_check_branch
          %584 = sbr.rel (%p582) target = $region68
        $region67: #{bert_forward.1} parent=11 // pred_region
          %s586 = ssub.s32 4096, 4096
          %587 = vsyncadd [#allocation11], %s586
          %s588 = sshll.u32 [#allocation12], 4
          %s589 = int_to_ptr.vmem [resolvable:$true] %s588
          %594 = dma.hbm_to_vmem [thread:$0]  %s15, 4096, %s589, [#allocation11], 64, 64, 4
        $region68: #{bert_forward.1} parent=11 // pred_fallthru
          _
        // Predicated region
        $region69: #{bert_forward.1} parent=11 // pred_check
          %p595 = pneg %p378
        $region70: #{bert_forward.1} parent=11 // pred_check_branch
          %597 = sbr.rel (%p595) target = $region72
        $region71: #{bert_forward.1} parent=11 // pred_region
          _
        $region72: #{bert_forward.1} parent=11 // pred_fallthru
          _
        // Predicated region
        $region73: #{bert_forward.1} parent=11 // pred_check
          %p598 = pneg %p399
        $region74: #{bert_forward.1} parent=11 // pred_check_branch
          %600 = sbr.rel (%p598) target = $region76
        $region75: #{bert_forward.1} parent=11 // pred_region
          _
        $region76: #{bert_forward.1} parent=11 // pred_fallthru
          _
        // Predicated region
        $region77: #{bert_forward.1} parent=11 // pred_check
          %p601 = pneg %p420
        $region78: #{bert_forward.1} parent=11 // pred_check_branch
          %603 = sbr.rel (%p601) target = $region80
        $region79: #{bert_forward.1} parent=11 // pred_region
          _
        $region80: #{bert_forward.1} parent=11 // pred_fallthru
          _
        // Predicated region
        $region81: #{bert_forward.1} parent=11 // pred_check
          %p604 = pneg %p441
        $region82: #{bert_forward.1} parent=11 // pred_check_branch
          %606 = sbr.rel (%p604) target = $region84
        $region83: #{bert_forward.1} parent=11 // pred_region
          %s608 = ssub.s32 1024, 1024
          %609 = vsyncadd [#allocation14], %s608
          %s610 = sshll.u32 [#allocation13], 4
          %s611 = int_to_ptr.vmem [resolvable:$true] %s610
          %616 = dma.hbm_to_vmem [thread:$0]  %s19, 1024, %s611, [#allocation14], 64, 64, 4
        $region84: #{bert_forward.1} parent=11 // pred_fallthru
          _
        // Predicated region
        $region85: #{bert_forward.1} parent=11 // pred_check
          %p617 = pneg %p462
        $region86: #{bert_forward.1} parent=11 // pred_check_branch
          %619 = sbr.rel (%p617) target = $region88
        $region87: #{bert_forward.1} parent=11 // pred_region
          _
        $region88: #{bert_forward.1} parent=11 // pred_fallthru
          _
      $region12: #{bert_forward.1} parent=5 // pred_fallthru
        _
      %p620 = scmp.lt.s32.totalorder %s37, 2
      // Predicated region
      $region89: #{bert_forward.1} parent=5 // pred_check
        %p621 = pneg %p620
      $region90: #{bert_forward.1} parent=5 // pred_check_branch
        %623 = sbr.rel (%p621) target = $region92
      $region91: #{bert_forward.1} parent=5 // pred_region
        // Predicated region
        $region93: #{bert_forward.1} parent=91 // pred_check
          %p624 = pneg %p57
        $region94: #{bert_forward.1} parent=91 // pred_check_branch
          %626 = sbr.rel (%p624) target = $region96
        $region95: #{bert_forward.1} parent=91 // pred_region
          %s627 = smul.u32 4, %s37
          %p628 = scmp.lt.s32.totalorder %s627, 7
          %s629 = scalar_select %p628, %s627, 7
          %s630 = scalar_lea.vmem %s1, %s629
          %s631 = smul.u32 4, %s37
        $region96: #{bert_forward.1} parent=91 // pred_fallthru
          _
      $region92: #{bert_forward.1} parent=5 // pred_fallthru
        _
      %p632 = scmp.le.s32.totalorder 1, %s37
      %p633 = scmp.lt.s32.totalorder %s37, 3
      %p634 = pnand %p632, %p633
      %p635 = pneg %p634
      // Predicated region
      $region97: #{bert_forward.1} parent=5 // pred_check
        _
      $region98: #{bert_forward.1} parent=5 // pred_check_branch
        %637 = sbr.rel (%p634) target = $region100
      $region99: #{bert_forward.1} parent=5 // pred_region
        %s638 = ssub.s32 %s37, 1
        // Predicated region
        $region101: #{bert_forward.1} parent=99 // pred_check
          %p639 = pneg %p84
        $region102: #{bert_forward.1} parent=99 // pred_check_branch
          %641 = sbr.rel (%p639) target = $region104
        $region103: #{bert_forward.1} parent=99 // pred_region
          %642 = dma.done [#allocation6], 8192
        $region104: #{bert_forward.1} parent=99 // pred_fallthru
          _
        // Predicated region
        $region105: #{bert_forward.1} parent=99 // pred_check
          %p643 = pneg %p189
        $region106: #{bert_forward.1} parent=99 // pred_check_branch
          %645 = sbr.rel (%p643) target = $region108
        $region107: #{bert_forward.1} parent=99 // pred_region
          %646 = dma.done [#allocation8], 6144
        $region108: #{bert_forward.1} parent=99 // pred_fallthru
          _
        // Predicated region
        $region109: #{bert_forward.1} parent=99 // pred_check
          %p647 = pneg %p231
        $region110: #{bert_forward.1} parent=99 // pred_check_branch
          %649 = sbr.rel (%p647) target = $region112
        $region111: #{bert_forward.1} parent=99 // pred_region
          %650 = dma.done [#allocation8], 2048
        $region112: #{bert_forward.1} parent=99 // pred_fallthru
          _
        // Predicated region
        $region113: #{bert_forward.1} parent=99 // pred_check
          %p651 = pneg %p315
        $region114: #{bert_forward.1} parent=99 // pred_check_branch
          %653 = sbr.rel (%p651) target = $region116
        $region115: #{bert_forward.1} parent=99 // pred_region
          %654 = dma.done [#allocation11], 4096
        $region116: #{bert_forward.1} parent=99 // pred_fallthru
          _
        // Predicated region
        $region117: #{bert_forward.1} parent=99 // pred_check
          %p655 = pneg %p357
        $region118: #{bert_forward.1} parent=99 // pred_check_branch
          %657 = sbr.rel (%p655) target = $region120
        $region119: #{bert_forward.1} parent=99 // pred_region
          %658 = dma.done [#allocation11], 4096
        $region120: #{bert_forward.1} parent=99 // pred_fallthru
          _
        // Predicated region
        $region121: #{bert_forward.1} parent=99 // pred_check
          %p659 = pneg %p441
        $region122: #{bert_forward.1} parent=99 // pred_check_branch
          %661 = sbr.rel (%p659) target = $region124
        $region123: #{bert_forward.1} parent=99 // pred_region
          %662 = dma.done [#allocation14], 1024
        $region124: #{bert_forward.1} parent=99 // pred_fallthru
          _
        %s663 = smul.u32 4, %s42
        %p664 = scmp.lt.s32.totalorder %s663, 7
        %s665 = scalar_select %p664, %s663, 7
        %s666 = scalar_lea.vmem %s1, %s665
        %p667 = pneg %p63
        %p668 = pneg %p60
        %p669 = pneg %p84
        %p670 = pneg %p81
        %p671 = pneg %p105
        %p672 = pneg %p102
        %p673 = pneg %p126
        %p674 = pneg %p123
        %p675 = pneg %p147
        %p676 = pneg %p144
        %p677 = pneg %p168
        %p678 = pneg %p165
        %p679 = pneg %p189
        %p680 = pneg %p186
        %p681 = pneg %p210
        %p682 = pneg %p207
        %p683 = pneg %p231
        %p684 = pneg %p228
        %p685 = pneg %p252
        %p686 = pneg %p249
        %p687 = pneg %p273
        %p688 = pneg %p270
        %p689 = pneg %p294
        %p690 = pneg %p291
        %p691 = pneg %p315
        %p692 = pneg %p312
        %p693 = pneg %p336
        %p694 = pneg %p333
        %p695 = pneg %p357
        %p696 = pneg %p354
        %p697 = pneg %p378
        %p698 = pneg %p375
        %p699 = pneg %p399
        %p700 = pneg %p396
        %p701 = pneg %p420
        %p702 = pneg %p417
        %p703 = pneg %p441
        %p704 = pneg %p438
        %p705 = pneg %p462
        %p706 = pneg %p459
        %p707 = pneg %p488
        %p708 = pneg %p485
        %p709 = scmp.lt.s32.totalorder %s42, 1
        %s710 = scalar_select %p709, %s42, 1
        %s711 = smul.addr %s710, 4
        %s712 = scalar_lea.vmem %s21, %s711
        %s713 = smul.u32 4, %s42
        %p714 = scmp.lt.s32.totalorder %s713, 7
        %s715 = scalar_select %p714, %s713, 7
        %s716 = scalar_lea.vmem %s1, %s715
        %s717 = smul.u32 4, %s42
        %p718 = scmp.lt.s32.totalorder %s42, 1
        %s719 = scalar_select %p718, %s42, 1
        %s720 = smul.addr %s719, 4
        %s721 = scalar_lea.vmem %s21, %s720
        %s723 = smul.u32 %s42, 4
        %s724 = smul.u32 %s723, 128
        %s725 = sld [smem:[#allocation4 + %s724]]
        %s726 = scalar_lea.vmem [#allocation5], %s725
        %v727 = vld [vmem:[%s726] sm:$0x1]
        %728 = vst [vmem:[#allocation2] sm:$0x1] %v727
        %s729 = sadd.s32 %s724, 1
        %s730 = sld [smem:[#allocation4 + %s729]]
        %s731 = scalar_lea.vmem [#allocation5], %s730
        %v732 = vld [vmem:[%s731] sm:$0x1]
        %733 = vst [vmem:[#allocation2 + $0x1] sm:$0x1] %v732
        %s734 = sadd.s32 %s724, 2
        %s735 = sld [smem:[#allocation4 + %s734]]
        %s736 = scalar_lea.vmem [#allocation5], %s735
        %v737 = vld [vmem:[%s736] sm:$0x1]
        %738 = vst [vmem:[#allocation2 + $0x2] sm:$0x1] %v737
        %s739 = sadd.s32 %s724, 3
        %s740 = sld [smem:[#allocation4 + %s739]]
        %s741 = scalar_lea.vmem [#allocation5], %s740
        %v742 = vld [vmem:[%s741] sm:$0x1]
        %743 = vst [vmem:[#allocation2 + $0x3] sm:$0x1] %v742
        %s744 = sadd.s32 %s724, 4
        %s745 = sld [smem:[#allocation4 + %s744]]
        %s746 = scalar_lea.vmem [#allocation5], %s745
        %v747 = vld [vmem:[%s746] sm:$0x1]
        %748 = vst [vmem:[#allocation2 + $0x4] sm:$0x1] %v747
        %s749 = sadd.s32 %s724, 5
        %s750 = sld [smem:[#allocation4 + %s749]]
        %s751 = scalar_lea.vmem [#allocation5], %s750
        %v752 = vld [vmem:[%s751] sm:$0x1]
        %753 = vst [vmem:[#allocation2 + $0x5] sm:$0x1] %v752
        %s754 = sadd.s32 %s724, 6
        %s755 = sld [smem:[#allocation4 + %s754]]
        %s756 = scalar_lea.vmem [#allocation5], %s755
        %v757 = vld [vmem:[%s756] sm:$0x1]
        %758 = vst [vmem:[#allocation2 + $0x6] sm:$0x1] %v757
        %s759 = sadd.s32 %s724, 7
        %s760 = sld [smem:[#allocation4 + %s759]]
        %s761 = scalar_lea.vmem [#allocation5], %s760
        %v762 = vld [vmem:[%s761] sm:$0x1]
        %763 = vst [vmem:[#allocation2 + $0x7] sm:$0x1] %v762
        %s764 = sadd.s32 %s723, 1
        %s765 = smul.u32 %s764, 128
        %s766 = sld [smem:[#allocation4 + %s765]]
        %s767 = scalar_lea.vmem [#allocation5], %s766
        %v768 = vld [vmem:[%s767] sm:$0x1]
        %769 = vst [vmem:[#allocation2 + $0x8] sm:$0x1] %v768
        %s770 = sadd.s32 %s765, 1
        %s771 = sld [smem:[#allocation4 + %s770]]
        %s772 = scalar_lea.vmem [#allocation5], %s771
        %v773 = vld [vmem:[%s772] sm:$0x1]
        %774 = vst [vmem:[#allocation2 + $0x9] sm:$0x1] %v773
        %s775 = sadd.s32 %s765, 2
        %s776 = sld [smem:[#allocation4 + %s775]]
        %s777 = scalar_lea.vmem [#allocation5], %s776
        %v778 = vld [vmem:[%s777] sm:$0x1]
        %779 = vst [vmem:[#allocation2 + $0xa] sm:$0x1] %v778
        %s780 = sadd.s32 %s765, 3
        %s781 = sld [smem:[#allocation4 + %s780]]
        %s782 = scalar_lea.vmem [#allocation5], %s781
        %v783 = vld [vmem:[%s782] sm:$0x1]
        %784 = vst [vmem:[#allocation2 + $0xb] sm:$0x1] %v783
        %s785 = sadd.s32 %s765, 4
        %s786 = sld [smem:[#allocation4 + %s785]]
        %s787 = scalar_lea.vmem [#allocation5], %s786
        %v788 = vld [vmem:[%s787] sm:$0x1]
        %789 = vst [vmem:[#allocation2 + $0xc] sm:$0x1] %v788
        %s790 = sadd.s32 %s765, 5
        %s791 = sld [smem:[#allocation4 + %s790]]
        %s792 = scalar_lea.vmem [#allocation5], %s791
        %v793 = vld [vmem:[%s792] sm:$0x1]
        %794 = vst [vmem:[#allocation2 + $0xd] sm:$0x1] %v793
        %s795 = sadd.s32 %s765, 6
        %s796 = sld [smem:[#allocation4 + %s795]]
        %s797 = scalar_lea.vmem [#allocation5], %s796
        %v798 = vld [vmem:[%s797] sm:$0x1]
        %799 = vst [vmem:[#allocation2 + $0xe] sm:$0x1] %v798
        %s800 = sadd.s32 %s765, 7
        %s801 = sld [smem:[#allocation4 + %s800]]
        %s802 = scalar_lea.vmem [#allocation5], %s801
        %v803 = vld [vmem:[%s802] sm:$0x1]
        %804 = vst [vmem:[#allocation2 + $0xf] sm:$0x1] %v803
        %s805 = sadd.s32 %s723, 2
        %s806 = smul.u32 %s805, 128
        %s807 = sld [smem:[#allocation4 + %s806]]
        %s808 = scalar_lea.vmem [#allocation5], %s807
        %v809 = vld [vmem:[%s808] sm:$0x1]
        %810 = vst [vmem:[#allocation2 + $0x10] sm:$0x1] %v809
        %s811 = sadd.s32 %s806, 1
        %s812 = sld [smem:[#allocation4 + %s811]]
        %s813 = scalar_lea.vmem [#allocation5], %s812
        %v814 = vld [vmem:[%s813] sm:$0x1]
        %815 = vst [vmem:[#allocation2 + $0x11] sm:$0x1] %v814
        %s816 = sadd.s32 %s806, 2
        %s817 = sld [smem:[#allocation4 + %s816]]
        %s818 = scalar_lea.vmem [#allocation5], %s817
        %v819 = vld [vmem:[%s818] sm:$0x1]
        %820 = vst [vmem:[#allocation2 + $0x12] sm:$0x1] %v819
        %s821 = sadd.s32 %s806, 3
        %s822 = sld [smem:[#allocation4 + %s821]]
        %s823 = scalar_lea.vmem [#allocation5], %s822
        %v824 = vld [vmem:[%s823] sm:$0x1]
        %825 = vst [vmem:[#allocation2 + $0x13] sm:$0x1] %v824
        %s826 = sadd.s32 %s806, 4
        %s827 = sld [smem:[#allocation4 + %s826]]
        %s828 = scalar_lea.vmem [#allocation5], %s827
        %v829 = vld [vmem:[%s828] sm:$0x1]
        %830 = vst [vmem:[#allocation2 + $0x14] sm:$0x1] %v829
        %s831 = sadd.s32 %s806, 5
        %s832 = sld [smem:[#allocation4 + %s831]]
        %s833 = scalar_lea.vmem [#allocation5], %s832
        %v834 = vld [vmem:[%s833] sm:$0x1]
        %835 = vst [vmem:[#allocation2 + $0x15] sm:$0x1] %v834
        %s836 = sadd.s32 %s806, 6
        %s837 = sld [smem:[#allocation4 + %s836]]
        %s838 = scalar_lea.vmem [#allocation5], %s837
        %v839 = vld [vmem:[%s838] sm:$0x1]
        %840 = vst [vmem:[#allocation2 + $0x16] sm:$0x1] %v839
        %s841 = sadd.s32 %s806, 7
        %s842 = sld [smem:[#allocation4 + %s841]]
        %s843 = scalar_lea.vmem [#allocation5], %s842
        %v844 = vld [vmem:[%s843] sm:$0x1]
        %845 = vst [vmem:[#allocation2 + $0x17] sm:$0x1] %v844
        %s846 = sadd.s32 %s723, 3
        %s847 = smul.u32 %s846, 128
        %s848 = sld [smem:[#allocation4 + %s847]]
        %s849 = scalar_lea.vmem [#allocation5], %s848
        %v850 = vld [vmem:[%s849] sm:$0x1]
        %851 = vst [vmem:[#allocation2 + $0x18] sm:$0x1] %v850
        %s852 = sadd.s32 %s847, 1
        %s853 = sld [smem:[#allocation4 + %s852]]
        %s854 = scalar_lea.vmem [#allocation5], %s853
        %v855 = vld [vmem:[%s854] sm:$0x1]
        %856 = vst [vmem:[#allocation2 + $0x19] sm:$0x1] %v855
        %s857 = sadd.s32 %s847, 2
        %s858 = sld [smem:[#allocation4 + %s857]]
        %s859 = scalar_lea.vmem [#allocation5], %s858
        %v860 = vld [vmem:[%s859] sm:$0x1]
        %861 = vst [vmem:[#allocation2 + $0x1a] sm:$0x1] %v860
        %s862 = sadd.s32 %s847, 3
        %s863 = sld [smem:[#allocation4 + %s862]]
        %s864 = scalar_lea.vmem [#allocation5], %s863
        %v865 = vld [vmem:[%s864] sm:$0x1]
        %866 = vst [vmem:[#allocation2 + $0x1b] sm:$0x1] %v865
        %s867 = sadd.s32 %s847, 4
        %s868 = sld [smem:[#allocation4 + %s867]]
        %s869 = scalar_lea.vmem [#allocation5], %s868
        %v870 = vld [vmem:[%s869] sm:$0x1]
        %871 = vst [vmem:[#allocation2 + $0x1c] sm:$0x1] %v870
        %s872 = sadd.s32 %s847, 5
        %s873 = sld [smem:[#allocation4 + %s872]]
        %s874 = scalar_lea.vmem [#allocation5], %s873
        %v875 = vld [vmem:[%s874] sm:$0x1]
        %876 = vst [vmem:[#allocation2 + $0x1d] sm:$0x1] %v875
        %s877 = sadd.s32 %s847, 6
        %s878 = sld [smem:[#allocation4 + %s877]]
        %s879 = scalar_lea.vmem [#allocation5], %s878
        %v880 = vld [vmem:[%s879] sm:$0x1]
        %881 = vst [vmem:[#allocation2 + $0x1e] sm:$0x1] %v880
        %s882 = sadd.s32 %s847, 7
        %s883 = sld [smem:[#allocation4 + %s882]]
        %s884 = scalar_lea.vmem [#allocation5], %s883
        %v885 = vld [vmem:[%s884] sm:$0x1]
        %886 = vst [vmem:[#allocation2 + $0x1f] sm:$0x1] %v885
        %v887 = vld [vmem:[%s3] sm:$0xff]
        %v888 = vld [vmem:[%s4] sm:$0x1]
        %v889 = vlaneseq
        %v890 = vshrl.u32 %v889, 7
        %v891 = vsub.s32 0, %v890
        %v892 = vrot.slane %v888, %v891
        %v893 = vadd.f32 %v887, %v892
        %v894 = vld [vmem:[#allocation2] sm:$0xff]
        %v895 = vld [vmem:[#allocation2 + $0x8] sm:$0xff]
        %v896 = vld [vmem:[#allocation2 + $0x10] sm:$0xff]
        %v897 = vld [vmem:[#allocation2 + $0x18] sm:$0xff]
        %v898 = vadd.f32 %v894, %v893
        %v899 = vadd.f32 %v895, %v893
        %v900 = vadd.f32 %v896, %v893
        %v901 = vadd.f32 %v897, %v893
        %v902 = vld [vmem:[%s5] sm:$0x1]
        %v903 = vld [vmem:[%s6] sm:$0x1]
        %904 = vadd.xlane.f32.xlu0 %v898
        %v905 = vpop.xlane.xlu0 %904
        %906 = vadd.xlane.f32.xlu0 %v899
        %v907 = vpop.xlane.xlu0 %906
        %908 = vadd.xlane.f32.xlu0 %v900
        %v909 = vpop.xlane.xlu0 %908
        %910 = vadd.xlane.f32.xlu0 %v901
        %v911 = vpop.xlane.xlu0 %910
        %v912 = vrcp.pop 128.0
        %v913 = vmul.f32 %v905, %v912
        %v914 = vmul.f32 %v907, %v912
        %v915 = vmul.f32 %v909, %v912
        %v916 = vmul.f32 %v911, %v912
        %v917 = vsub.f32 %v898, %v913
        %v918 = vsub.f32 %v899, %v914
        %v919 = vsub.f32 %v900, %v915
        %v920 = vsub.f32 %v901, %v916
        %v921 = vmul.f32 %v917, %v917
        %v922 = vmul.f32 %v918, %v918
        %v923 = vmul.f32 %v919, %v919
        %v924 = vmul.f32 %v920, %v920
        %925 = vadd.xlane.f32.xlu0 %v921
        %v926 = vpop.xlane.xlu0 %925
        %927 = vadd.xlane.f32.xlu0 %v922
        %v928 = vpop.xlane.xlu0 %927
        %929 = vadd.xlane.f32.xlu0 %v923
        %v930 = vpop.xlane.xlu0 %929
        %931 = vadd.xlane.f32.xlu0 %v924
        %v932 = vpop.xlane.xlu0 %931
        %v933 = vmul.f32 %v926, %v912
        %v934 = vmul.f32 %v928, %v912
        %v935 = vmul.f32 %v930, %v912
        %v936 = vmul.f32 %v932, %v912
        %v937 = vadd.f32 %v933, 1e-12
        %v938 = vadd.f32 %v934, 1e-12
        %v939 = vadd.f32 %v935, 1e-12
        %v940 = vadd.f32 %v936, 1e-12
        %v941 = vrsqrt.pop %v937
        %v942 = vrsqrt.pop %v938
        %v943 = vrsqrt.pop %v939
        %v944 = vrsqrt.pop %v940
        %v945 = vmul.f32 %v917, %v941
        %v946 = vmul.f32 %v918, %v942
        %v947 = vmul.f32 %v919, %v943
        %v948 = vmul.f32 %v920, %v944
        %v950 = vlaneseq
        %v951 = vshrl.u32 %v950, 7
        %v952 = vsub.s32 0, %v951
        %v953 = vrot.slane %v902, %v952
        %v955 = vmul.f32 %v945, %v953
        %v956 = vmul.f32 %v946, %v953
        %v957 = vmul.f32 %v947, %v953
        %v958 = vmul.f32 %v948, %v953
        %v960 = vlaneseq
        %v961 = vshrl.u32 %v960, 7
        %v962 = vsub.s32 0, %v961
        %v963 = vrot.slane %v903, %v962
        %v965 = vadd.f32 %v955, %v963
        %v966 = vadd.f32 %v956, %v963
        %v967 = vadd.f32 %v957, %v963
        %v968 = vadd.f32 %v958, %v963
        %v969 = vld [vmem:[%s716] sm:$0x1]
        %v970 = vld [vmem:[%s716 + $0x1] sm:$0x1]
        %v971 = vld [vmem:[%s716 + $0x2] sm:$0x1]
        %v972 = vld [vmem:[%s716 + $0x3] sm:$0x1]
        %v973 = vld [vmem:[#allocation7] sm:$0xff]
        %v974 = vld [vmem:[#allocation7 + $0x8] sm:$0xf]
        %v975 = vld [vmem:[#allocation7 + $0xc] sm:$0xff]
        %v976 = vld [vmem:[#allocation7 + $0x14] sm:$0xf]
        %v977 = vld [vmem:[#allocation7 + $0x18] sm:$0xff]
        %v978 = vld [vmem:[#allocation7 + $0x20] sm:$0xf]
        %v979 = vld [vmem:[#allocation7 + $0x24] sm:$0xff]
        %v980 = vld [vmem:[#allocation7 + $0x2c] sm:$0xf]
        %v981 = vld [vmem:[#allocation7 + $0x30] sm:$0xff]
        %v982 = vld [vmem:[#allocation7 + $0x38] sm:$0xf]
        %v983 = vld [vmem:[#allocation7 + $0x3c] sm:$0xff]
        %v984 = vld [vmem:[#allocation7 + $0x44] sm:$0xf]
        %v985 = vld [vmem:[#allocation7 + $0x48] sm:$0xff]
        %v986 = vld [vmem:[#allocation7 + $0x50] sm:$0xf]
        %v987 = vld [vmem:[#allocation7 + $0x54] sm:$0xff]
        %v988 = vld [vmem:[#allocation7 + $0x5c] sm:$0xf]
        %v989 = vld [vmem:[#allocation7 + $0x60] sm:$0xff]
        %v990 = vld [vmem:[#allocation7 + $0x68] sm:$0xf]
        %v991 = vld [vmem:[#allocation7 + $0x6c] sm:$0xff]
        %v992 = vld [vmem:[#allocation7 + $0x74] sm:$0xf]
        %v993 = vld [vmem:[#allocation7 + $0x78] sm:$0xff]
        %v994 = vld [vmem:[#allocation7 + $0x80] sm:$0xf]
        %v995 = vld [vmem:[#allocation7 + $0x84] sm:$0xff]
        %v996 = vld [vmem:[#allocation7 + $0x8c] sm:$0xf]
        %v997 = vld [vmem:[#allocation7 + $0x90] sm:$0xff]
        %v998 = vld [vmem:[#allocation7 + $0x98] sm:$0xf]
        %v999 = vld [vmem:[#allocation7 + $0x9c] sm:$0xff]
        %v1000 = vld [vmem:[#allocation7 + $0xa4] sm:$0xf]
        %v1001 = vld [vmem:[#allocation7 + $0xa8] sm:$0xff]
        %v1002 = vld [vmem:[#allocation7 + $0xb0] sm:$0xf]
        %v1003 = vld [vmem:[#allocation7 + $0xb4] sm:$0xff]
        %v1004 = vld [vmem:[#allocation7 + $0xbc] sm:$0xf]
        %v1005 = vpack.c.bf16 %v966, %v965
        %v1006 = vpack.c.bf16 %v968, %v967
        %v1007 = vld [vmem:[%s8] sm:$0x7]
        %v1009 = vlaneseq
        %v1010 = vshrl.u32 %v1009, 7
        %v1011 = vsub.s32 0, %v1010
        %v1012 = vrot.slane %v1007, %v1011
        %v1013 = vlaneseq
        %v1014 = vshrl.u32 %v1013, 7
        %v1015 = vsub.s32 1, %v1014
        %v1016 = vrot.slane %v1007, %v1015
        %v1017 = vlaneseq
        %v1018 = vshrl.u32 %v1017, 7
        %v1019 = vsub.s32 2, %v1018
        %v1020 = vrot.slane %v1007, %v1019
        %v1056 = vunpack.c.l.b16 %v973
        %v1057 = vunpack.c.h.b16 %v973
        %v1058 = vunpack.c.l.b16 %v974
        %v1059 = vunpack.c.l.b16 %v975
        %v1060 = vunpack.c.h.b16 %v975
        %v1061 = vunpack.c.l.b16 %v976
        %v1062 = vunpack.c.l.b16 %v977
        %v1063 = vunpack.c.h.b16 %v977
        %v1064 = vunpack.c.l.b16 %v978
        %v1065 = vunpack.c.l.b16 %v979
        %v1066 = vunpack.c.h.b16 %v979
        %v1067 = vunpack.c.l.b16 %v980
        %v1068 = vunpack.c.l.b16 %v981
        %v1069 = vunpack.c.h.b16 %v981
        %v1070 = vunpack.c.l.b16 %v982
        %v1071 = vunpack.c.l.b16 %v983
        %v1072 = vunpack.c.h.b16 %v983
        %v1073 = vunpack.c.l.b16 %v984
        %v1074 = vunpack.c.l.b16 %v985
        %v1075 = vunpack.c.h.b16 %v985
        %v1076 = vunpack.c.l.b16 %v986
        %v1077 = vunpack.c.l.b16 %v987
        %v1078 = vunpack.c.h.b16 %v987
        %v1079 = vunpack.c.l.b16 %v988
        %v1080 = vunpack.c.l.b16 %v989
        %v1081 = vunpack.c.h.b16 %v989
        %v1082 = vunpack.c.l.b16 %v990
        %v1083 = vunpack.c.l.b16 %v991
        %v1084 = vunpack.c.h.b16 %v991
        %v1085 = vunpack.c.l.b16 %v992
        %v1086 = vunpack.c.l.b16 %v993
        %v1087 = vunpack.c.h.b16 %v993
        %v1088 = vunpack.c.l.b16 %v994
        %v1089 = vunpack.c.l.b16 %v995
        %v1090 = vunpack.c.h.b16 %v995
        %v1091 = vunpack.c.l.b16 %v996
        %v1092 = vunpack.c.l.b16 %v997
        %v1093 = vunpack.c.h.b16 %v997
        %v1094 = vunpack.c.l.b16 %v998
        %v1095 = vunpack.c.l.b16 %v999
        %v1096 = vunpack.c.h.b16 %v999
        %v1097 = vunpack.c.l.b16 %v1000
        %v1098 = vunpack.c.l.b16 %v1001
        %v1099 = vunpack.c.h.b16 %v1001
        %v1100 = vunpack.c.l.b16 %v1002
        %v1101 = vunpack.c.l.b16 %v1003
        %v1102 = vunpack.c.h.b16 %v1003
        %v1103 = vunpack.c.l.b16 %v1004
        %v1104 = vpack.c.b16 %v1059, %v1056
        %v1105 = vpack.c.b16 %v1060, %v1057
        %v1106 = vpack.c.b16 %v1061, %v1058
        %v1107 = vpack.c.b16 %v1065, %v1062
        %v1108 = vpack.c.b16 %v1066, %v1063
        %v1109 = vpack.c.b16 %v1067, %v1064
        %v1110 = vpack.c.b16 %v1071, %v1068
        %v1111 = vpack.c.b16 %v1072, %v1069
        %v1112 = vpack.c.b16 %v1073, %v1070
        %v1113 = vpack.c.b16 %v1077, %v1074
        %v1114 = vpack.c.b16 %v1078, %v1075
        %v1115 = vpack.c.b16 %v1079, %v1076
        %v1116 = vpack.c.b16 %v1083, %v1080
        %v1117 = vpack.c.b16 %v1084, %v1081
        %v1118 = vpack.c.b16 %v1085, %v1082
        %v1119 = vpack.c.b16 %v1089, %v1086
        %v1120 = vpack.c.b16 %v1090, %v1087
        %v1121 = vpack.c.b16 %v1091, %v1088
        %v1122 = vpack.c.b16 %v1095, %v1092
        %v1123 = vpack.c.b16 %v1096, %v1093
        %v1124 = vpack.c.b16 %v1097, %v1094
        %v1125 = vpack.c.b16 %v1101, %v1098
        %v1126 = vpack.c.b16 %v1102, %v1099
        %v1127 = vpack.c.b16 %v1103, %v1100
        %1152 = vmatprep.subr.bf16.mxu0 %v1105
        %1153 = vmatpush1.bf16.msra.mxu0 %v1104
        %1154 = vmatprep.subr.bf16.mxu0 %v1108
        %1155 = vmatpush1.bf16.msra.mxu0 %v1107
        %1156 = vmatprep.subr.bf16.mxu0 %v1111
        %1157 = vmatpush1.bf16.msra.mxu0 %v1110
        %1158 = vmatprep.subr.bf16.mxu0 %v1114
        %1159 = vmatpush1.bf16.msra.mxu0 %v1113
        %1160 = vmatprep.subr.bf16.mxu0 %v1117
        %1161 = vmatpush1.bf16.msra.mxu0 %v1116
        %1162 = vmatprep.subr.bf16.mxu0 %v1120
        %1163 = vmatpush1.bf16.msra.mxu0 %v1119
        %1164 = vmatprep.subr.bf16.mxu0 %v1123
        %1165 = vmatpush1.bf16.msra.mxu0 %v1122
        %1166 = vmatprep.subr.bf16.mxu0 %v1126
        %1167 = vmatpush1.bf16.msra.mxu0 %v1125
        %1168 = vmatprep.subr.bf16.mxu0 0
        %1169 = vmatpush1.bf16.msra.mxu0 0
        %1170 = vmatprep.subr.bf16.mxu0 0
        %1171 = vmatpush1.bf16.msra.mxu0 0
        %1172 = vmatprep.subr.bf16.mxu0 0
        %1173 = vmatpush1.bf16.msra.mxu0 0
        %1174 = vmatprep.subr.bf16.mxu0 0
        %1175 = vmatpush1.bf16.msra.mxu0 0
        %1176 = vmatprep.subr.bf16.mxu0 0
        %1177 = vmatpush1.bf16.msra.mxu0 0
        %1178 = vmatprep.subr.bf16.mxu0 0
        %1179 = vmatpush1.bf16.msra.mxu0 0
        %1180 = vmatprep.subr.bf16.mxu0 0
        %1181 = vmatpush1.bf16.msra.mxu0 0
        %1182 = vmatprep.subr.bf16.mxu0 0
        %1183 = vmatpush1.bf16.msra.mxu0 0
        %1184 = vmatprep.mubr.bf16.mxu0 0
        %1185 = vmatmul.mubr.bf16.gmra.mrb[0].mxu0 %v1005
        %v1186 = vpop.f32.mrb[0].mxu0
        %v1187 = vadd.f32 %v1012, %v1186
        %v1188 = vpop.f32.mrb[0].mxu0
        %v1189 = vadd.f32 %v1016, %v1188
        %v1190 = vpop.f32.mrb[0].mxu0
        %v1191 = vadd.f32 %v1012, %v1190
        %v1192 = vpop.f32.mrb[0].mxu0
        %v1193 = vadd.f32 %v1016, %v1192
        %1194 = vmatprep.mubr.bf16.mxu0 0
        %1195 = vmatmul.mubr.bf16.gmra.mrb[0].mxu0 %v1006
        %v1196 = vpop.f32.mrb[0].mxu0
        %v1197 = vadd.f32 %v1012, %v1196
        %v1198 = vpop.f32.mrb[0].mxu0
        %v1199 = vadd.f32 %v1016, %v1198
        %v1200 = vpop.f32.mrb[0].mxu0
        %v1201 = vadd.f32 %v1012, %v1200
        %v1202 = vpop.f32.mrb[0].mxu0
        %v1203 = vadd.f32 %v1016, %v1202
        %1204 = vdwg.mxu0
        %1205 = vmatprep.subr.bf16.mxu0 0
        %1206 = vmatpush1.bf16.msra.mxu0 %v1106
        %1207 = vmatprep.subr.bf16.mxu0 0
        %1208 = vmatpush1.bf16.msra.mxu0 %v1109
        %1209 = vmatprep.subr.bf16.mxu0 0
        %1210 = vmatpush1.bf16.msra.mxu0 %v1112
        %1211 = vmatprep.subr.bf16.mxu0 0
        %1212 = vmatpush1.bf16.msra.mxu0 %v1115
        %1213 = vmatprep.subr.bf16.mxu0 0
        %1214 = vmatpush1.bf16.msra.mxu0 %v1118
        %1215 = vmatprep.subr.bf16.mxu0 0
        %1216 = vmatpush1.bf16.msra.mxu0 %v1121
        %1217 = vmatprep.subr.bf16.mxu0 0
        %1218 = vmatpush1.bf16.msra.mxu0 %v1124
        %1219 = vmatprep.subr.bf16.mxu0 0
        %1220 = vmatpush1.bf16.msra.mxu0 %v1127
        %1221 = vmatprep.subr.bf16.mxu0 0
        %1222 = vmatpush1.bf16.msra.mxu0 0
        %1223 = vmatprep.subr.bf16.mxu0 0
        %1224 = vmatpush1.bf16.msra.mxu0 0
        %1225 = vmatprep.subr.bf16.mxu0 0
        %1226 = vmatpush1.bf16.msra.mxu0 0
        %1227 = vmatprep.subr.bf16.mxu0 0
        %1228 = vmatpush1.bf16.msra.mxu0 0
        %1229 = vmatprep.subr.bf16.mxu0 0
        %1230 = vmatpush1.bf16.msra.mxu0 0
        %1231 = vmatprep.subr.bf16.mxu0 0
        %1232 = vmatpush1.bf16.msra.mxu0 0
        %1233 = vmatprep.subr.bf16.mxu0 0
        %1234 = vmatpush1.bf16.msra.mxu0 0
        %1235 = vmatprep.subr.bf16.mxu0 0
        %1236 = vmatpush1.bf16.msra.mxu0 0
        %1237 = vmatprep.mubr.bf16.mxu0 0
        %1238 = vmatmul.mubr.bf16.gmra.mrb[0].mxu0 %v1005
        %v1239 = vpop.f32.mrb[0].mxu0
        %v1240 = vadd.f32 %v1020, %v1239
        %v1241 = vpop.f32.mrb[0].mxu0
        %v1242 = vpop.f32.mrb[0].mxu0
        %v1243 = vadd.f32 %v1020, %v1242
        %v1244 = vpop.f32.mrb[0].mxu0
        %1245 = vmatprep.mubr.bf16.mxu0 0
        %1246 = vmatmul.mubr.bf16.gmra.mrb[0].mxu0 %v1006
        %v1247 = vpop.f32.mrb[0].mxu0
        %v1248 = vadd.f32 %v1020, %v1247
        %v1249 = vpop.f32.mrb[0].mxu0
        %v1250 = vpop.f32.mrb[0].mxu0
        %v1251 = vadd.f32 %v1020, %v1250
        %v1252 = vpop.f32.mrb[0].mxu0
        %1253 = vdwg.mxu0
        %v1254 = vpack.c.bf16 %v1187, %v1187
        %v1255 = vpack.c.bf16 %v1191, %v1191
        %v1256 = vpack.c.bf16 %v1197, %v1197
        %v1257 = vpack.c.bf16 %v1201, %v1201
        %v1258 = vpack.c.bf16 %v1189, %v1189
        %v1259 = vpack.c.bf16 %v1193, %v1193
        %v1260 = vpack.c.bf16 %v1199, %v1199
        %v1261 = vpack.c.bf16 %v1203, %v1203
        %vm1262 = vcmask 523264
        %v1264 = vsel %vm1262, %v1254, 0
        %v1267 = vsel %vm1262, %v1258, 0
        %1269 = vmatprep.subr.bf16.mxu0 0
        %1270 = vmatpush1.bf16.xpose.msra.mxu0 %v1267
        %1271 = vmatprep.subr.bf16.mxu0 0
        %1272 = vmatpush1.bf16.xpose.msra.mxu0 0
        %1273 = vmatprep.subr.bf16.mxu0 0
        %1274 = vmatpush1.bf16.xpose.msra.mxu0 0
        %1275 = vmatprep.subr.bf16.mxu0 0
        %1276 = vmatpush1.bf16.xpose.msra.mxu0 0
        %1277 = vmatprep.subr.bf16.mxu0 0
        %1278 = vmatpush1.bf16.xpose.msra.mxu0 0
        %1279 = vmatprep.subr.bf16.mxu0 0
        %1280 = vmatpush1.bf16.xpose.msra.mxu0 0
        %1281 = vmatprep.subr.bf16.mxu0 0
        %1282 = vmatpush1.bf16.xpose.msra.mxu0 0
        %1283 = vmatprep.subr.bf16.mxu0 0
        %1284 = vmatpush1.bf16.xpose.msra.mxu0 0
        %1285 = vmatprep.subr.bf16.mxu0 0
        %1286 = vmatpush1.bf16.xpose.msra.mxu0 0
        %1287 = vmatprep.subr.bf16.mxu0 0
        %1288 = vmatpush1.bf16.xpose.msra.mxu0 0
        %1289 = vmatprep.subr.bf16.mxu0 0
        %1290 = vmatpush1.bf16.xpose.msra.mxu0 0
        %1291 = vmatprep.subr.bf16.mxu0 0
        %1292 = vmatpush1.bf16.xpose.msra.mxu0 0
        %1293 = vmatprep.subr.bf16.mxu0 0
        %1294 = vmatpush1.bf16.xpose.msra.mxu0 0
        %1295 = vmatprep.subr.bf16.mxu0 0
        %1296 = vmatpush1.bf16.xpose.msra.mxu0 0
        %1297 = vmatprep.subr.bf16.mxu0 0
        %1298 = vmatpush1.bf16.xpose.msra.mxu0 0
        %1299 = vmatprep.subr.bf16.mxu0 0
        %1300 = vmatpush1.bf16.xpose.msra.mxu0 0
        %1301 = vmatprep.mubr.bf16.mxu0 0
        %1302 = vmatmul.mubr.bf16.gmra.mrb[0].mxu0 %v1264
        %v1303 = vpop.f32.mrb[0].mxu0
        %v1304 = vadd.f32 0.0, %v1303
        %v1305 = vpop.f32.mrb[0].mxu0
        %v1306 = vpop.f32.mrb[0].mxu0
        %v1307 = vpop.f32.mrb[0].mxu0
        %1308 = vdwg.mxu0
        %v1310 = vsel %vm1262, %v1255, 0
        %v1313 = vsel %vm1262, %v1259, 0
        %1315 = vmatprep.subr.bf16.mxu0 0
        %1316 = vmatpush1.bf16.xpose.msra.mxu0 %v1313
        %1317 = vmatprep.subr.bf16.mxu0 0
        %1318 = vmatpush1.bf16.xpose.msra.mxu0 0
        %1319 = vmatprep.subr.bf16.mxu0 0
        %1320 = vmatpush1.bf16.xpose.msra.mxu0 0
        %1321 = vmatprep.subr.bf16.mxu0 0
        %1322 = vmatpush1.bf16.xpose.msra.mxu0 0
        %1323 = vmatprep.subr.bf16.mxu0 0
        %1324 = vmatpush1.bf16.xpose.msra.mxu0 0
        %1325 = vmatprep.subr.bf16.mxu0 0
        %1326 = vmatpush1.bf16.xpose.msra.mxu0 0
        %1327 = vmatprep.subr.bf16.mxu0 0
        %1328 = vmatpush1.bf16.xpose.msra.mxu0 0
        %1329 = vmatprep.subr.bf16.mxu0 0
        %1330 = vmatpush1.bf16.xpose.msra.mxu0 0
        %1331 = vmatprep.subr.bf16.mxu0 0
        %1332 = vmatpush1.bf16.xpose.msra.mxu0 0
        %1333 = vmatprep.subr.bf16.mxu0 0
        %1334 = vmatpush1.bf16.xpose.msra.mxu0 0
        %1335 = vmatprep.subr.bf16.mxu0 0
        %1336 = vmatpush1.bf16.xpose.msra.mxu0 0
        %1337 = vmatprep.subr.bf16.mxu0 0
        %1338 = vmatpush1.bf16.xpose.msra.mxu0 0
        %1339 = vmatprep.subr.bf16.mxu0 0
        %1340 = vmatpush1.bf16.xpose.msra.mxu0 0
        %1341 = vmatprep.subr.bf16.mxu0 0
        %1342 = vmatpush1.bf16.xpose.msra.mxu0 0
        %1343 = vmatprep.subr.bf16.mxu0 0
        %1344 = vmatpush1.bf16.xpose.msra.mxu0 0
        %1345 = vmatprep.subr.bf16.mxu0 0
        %1346 = vmatpush1.bf16.xpose.msra.mxu0 0
        %1347 = vmatprep.mubr.bf16.mxu0 0
        %1348 = vmatmul.mubr.bf16.gmra.mrb[0].mxu0 %v1310
        %v1349 = vpop.f32.mrb[0].mxu0
        %v1350 = vadd.f32 0.0, %v1349
        %v1351 = vpop.f32.mrb[0].mxu0
        %v1352 = vpop.f32.mrb[0].mxu0
        %v1353 = vpop.f32.mrb[0].mxu0
        %1354 = vdwg.mxu0
        %v1356 = vsel %vm1262, %v1256, 0
        %v1359 = vsel %vm1262, %v1260, 0
        %1361 = vmatprep.subr.bf16.mxu0 0
        %1362 = vmatpush1.bf16.xpose.msra.mxu0 %v1359
        %1363 = vmatprep.subr.bf16.mxu0 0
        %1364 = vmatpush1.bf16.xpose.msra.mxu0 0
        %1365 = vmatprep.subr.bf16.mxu0 0
        %1366 = vmatpush1.bf16.xpose.msra.mxu0 0
        %1367 = vmatprep.subr.bf16.mxu0 0
        %1368 = vmatpush1.bf16.xpose.msra.mxu0 0
        %1369 = vmatprep.subr.bf16.mxu0 0
        %1370 = vmatpush1.bf16.xpose.msra.mxu0 0
        %1371 = vmatprep.subr.bf16.mxu0 0
        %1372 = vmatpush1.bf16.xpose.msra.mxu0 0
        %1373 = vmatprep.subr.bf16.mxu0 0
        %1374 = vmatpush1.bf16.xpose.msra.mxu0 0
        %1375 = vmatprep.subr.bf16.mxu0 0
        %1376 = vmatpush1.bf16.xpose.msra.mxu0 0
        %1377 = vmatprep.subr.bf16.mxu0 0
        %1378 = vmatpush1.bf16.xpose.msra.mxu0 0
        %1379 = vmatprep.subr.bf16.mxu0 0
        %1380 = vmatpush1.bf16.xpose.msra.mxu0 0
        %1381 = vmatprep.subr.bf16.mxu0 0
        %1382 = vmatpush1.bf16.xpose.msra.mxu0 0
        %1383 = vmatprep.subr.bf16.mxu0 0
        %1384 = vmatpush1.bf16.xpose.msra.mxu0 0
        %1385 = vmatprep.subr.bf16.mxu0 0
        %1386 = vmatpush1.bf16.xpose.msra.mxu0 0
        %1387 = vmatprep.subr.bf16.mxu0 0
        %1388 = vmatpush1.bf16.xpose.msra.mxu0 0
        %1389 = vmatprep.subr.bf16.mxu0 0
        %1390 = vmatpush1.bf16.xpose.msra.mxu0 0
        %1391 = vmatprep.subr.bf16.mxu0 0
        %1392 = vmatpush1.bf16.xpose.msra.mxu0 0
        %1393 = vmatprep.mubr.bf16.mxu0 0
        %1394 = vmatmul.mubr.bf16.gmra.mrb[0].mxu0 %v1356
        %v1395 = vpop.f32.mrb[0].mxu0
        %v1396 = vadd.f32 0.0, %v1395
        %v1397 = vpop.f32.mrb[0].mxu0
        %v1398 = vpop.f32.mrb[0].mxu0
        %v1399 = vpop.f32.mrb[0].mxu0
        %1400 = vdwg.mxu0
        %v1402 = vsel %vm1262, %v1257, 0
        %v1405 = vsel %vm1262, %v1261, 0
        %1407 = vmatprep.subr.bf16.mxu0 0
        %1408 = vmatpush1.bf16.xpose.msra.mxu0 %v1405
        %1409 = vmatprep.subr.bf16.mxu0 0
        %1410 = vmatpush1.bf16.xpose.msra.mxu0 0
        %1411 = vmatprep.subr.bf16.mxu0 0
        %1412 = vmatpush1.bf16.xpose.msra.mxu0 0
        %1413 = vmatprep.subr.bf16.mxu0 0
        %1414 = vmatpush1.bf16.xpose.msra.mxu0 0
        %1415 = vmatprep.subr.bf16.mxu0 0
        %1416 = vmatpush1.bf16.xpose.msra.mxu0 0
        %1417 = vmatprep.subr.bf16.mxu0 0
        %1418 = vmatpush1.bf16.xpose.msra.mxu0 0
        %1419 = vmatprep.subr.bf16.mxu0 0
        %1420 = vmatpush1.bf16.xpose.msra.mxu0 0
        %1421 = vmatprep.subr.bf16.mxu0 0
        %1422 = vmatpush1.bf16.xpose.msra.mxu0 0
        %1423 = vmatprep.subr.bf16.mxu0 0
        %1424 = vmatpush1.bf16.xpose.msra.mxu0 0
        %1425 = vmatprep.subr.bf16.mxu0 0
        %1426 = vmatpush1.bf16.xpose.msra.mxu0 0
        %1427 = vmatprep.subr.bf16.mxu0 0
        %1428 = vmatpush1.bf16.xpose.msra.mxu0 0
        %1429 = vmatprep.subr.bf16.mxu0 0
        %1430 = vmatpush1.bf16.xpose.msra.mxu0 0
        %1431 = vmatprep.subr.bf16.mxu0 0
        %1432 = vmatpush1.bf16.xpose.msra.mxu0 0
        %1433 = vmatprep.subr.bf16.mxu0 0
        %1434 = vmatpush1.bf16.xpose.msra.mxu0 0
        %1435 = vmatprep.subr.bf16.mxu0 0
        %1436 = vmatpush1.bf16.xpose.msra.mxu0 0
        %1437 = vmatprep.subr.bf16.mxu0 0
        %1438 = vmatpush1.bf16.xpose.msra.mxu0 0
        %1439 = vmatprep.mubr.bf16.mxu0 0
        %1440 = vmatmul.mubr.bf16.gmra.mrb[0].mxu0 %v1402
        %v1441 = vpop.f32.mrb[0].mxu0
        %v1442 = vadd.f32 0.0, %v1441
        %v1443 = vpop.f32.mrb[0].mxu0
        %v1444 = vpop.f32.mrb[0].mxu0
        %v1445 = vpop.f32.mrb[0].mxu0
        %1446 = vdwg.mxu0
        %v1447 = vmul.f32 %v1304, 0.125
        %v1448 = vmul.f32 %v1350, 0.125
        %v1449 = vmul.f32 %v1396, 0.125
        %v1450 = vmul.f32 %v1442, 0.125
        %v1455 = vlaneseq
        %v1456 = vshrl.u32 %v1455, 7
        %v1457 = vsub.s32 0, %v1456
        %v1458 = vrot.slane %v969, %v1457
        %v1459 = vlaneseq
        %v1460 = vshrl.u32 %v1459, 7
        %v1461 = vsub.s32 0, %v1460
        %v1462 = vrot.slane %v970, %v1461
        %v1463 = vlaneseq
        %v1464 = vshrl.u32 %v1463, 7
        %v1465 = vsub.s32 0, %v1464
        %v1466 = vrot.slane %v971, %v1465
        %v1467 = vlaneseq
        %v1468 = vshrl.u32 %v1467, 7
        %v1469 = vsub.s32 0, %v1468
        %v1470 = vrot.slane %v972, %v1469
        %v1475 = vadd.f32 %v1447, %v1458
        %v1476 = vadd.f32 %v1448, %v1462
        %v1477 = vadd.f32 %v1449, %v1466
        %v1478 = vadd.f32 %v1450, %v1470
        %vm1479 = vcmask 64512
        %v1480 = vsel %vm1479, %v1475, -inf
        %1481 = vmax.xlane.f32.xlu0 %v1480
        %v1482 = vpop.xlane.xlu0 %1481
        %v1483 = vsel %vm1479, %v1476, -inf
        %1484 = vmax.xlane.f32.xlu0 %v1483
        %v1485 = vpop.xlane.xlu0 %1484
        %v1486 = vsel %vm1479, %v1477, -inf
        %1487 = vmax.xlane.f32.xlu0 %v1486
        %v1488 = vpop.xlane.xlu0 %1487
        %v1489 = vsel %vm1479, %v1478, -inf
        %1490 = vmax.xlane.f32.xlu0 %v1489
        %v1491 = vpop.xlane.xlu0 %1490
        %v1492 = vsub.f32 %v1475, %v1482
        %v1493 = vsub.f32 %v1476, %v1485
        %v1494 = vsub.f32 %v1477, %v1488
        %v1495 = vsub.f32 %v1478, %v1491
        %v1496 = vmul.f32 %v1492, 1.442695
        %v1497 = vpow.pop %v1496
        %v1498 = vmul.f32 %v1493, 1.442695
        %v1499 = vpow.pop %v1498
        %v1500 = vmul.f32 %v1494, 1.442695
        %v1501 = vpow.pop %v1500
        %v1502 = vmul.f32 %v1495, 1.442695
        %v1503 = vpow.pop %v1502
        %v1504 = vsel %vm1479, %v1497, 0.0
        %1505 = vadd.xlane.f32.xlu0 %v1504
        %v1506 = vpop.xlane.xlu0 %1505
        %v1507 = vsel %vm1479, %v1499, 0.0
        %1508 = vadd.xlane.f32.xlu0 %v1507
        %v1509 = vpop.xlane.xlu0 %1508
        %v1510 = vsel %vm1479, %v1501, 0.0
        %1511 = vadd.xlane.f32.xlu0 %v1510
        %v1512 = vpop.xlane.xlu0 %1511
        %v1513 = vsel %vm1479, %v1503, 0.0
        %1514 = vadd.xlane.f32.xlu0 %v1513
        %v1515 = vpop.xlane.xlu0 %1514
        %v1516 = vrcp.pop %v1506
        %v1517 = vrcp.pop %v1509
        %v1518 = vrcp.pop %v1512
        %v1519 = vrcp.pop %v1515
        %v1520 = vmul.f32 %v1497, %v1516
        %v1521 = vmul.f32 %v1499, %v1517
        %v1522 = vmul.f32 %v1501, %v1518
        %v1523 = vmul.f32 %v1503, %v1519
        %v1524 = vpack.c.bf16 %v1520, %v1520
        %v1525 = vpack.c.bf16 %v1521, %v1521
        %v1526 = vpack.c.bf16 %v1522, %v1522
        %v1527 = vpack.c.bf16 %v1523, %v1523
        %v1528 = vpack.c.bf16 %v1240, %v1240
        %v1529 = vpack.c.bf16 %v1243, %v1243
        %v1530 = vpack.c.bf16 %v1248, %v1248
        %v1531 = vpack.c.bf16 %v1251, %v1251
        %v1533 = vsel %vm1479, %v1524, 0
        %vm1535 = vcmask 1043456
        %v1537 = vsel %vm1535, %v1528, 0
        %1539 = vmatprep.subr.bf16.mxu0 0
        %1540 = vmatpush1.bf16.msra.mxu0 %v1537
        %1541 = vmatprep.subr.bf16.mxu0 0
        %1542 = vmatpush1.bf16.msra.mxu0 0
        %1543 = vmatprep.subr.bf16.mxu0 0
        %1544 = vmatpush1.bf16.msra.mxu0 0
        %1545 = vmatprep.subr.bf16.mxu0 0
        %1546 = vmatpush1.bf16.msra.mxu0 0
        %1547 = vmatprep.subr.bf16.mxu0 0
        %1548 = vmatpush1.bf16.msra.mxu0 0
        %1549 = vmatprep.subr.bf16.mxu0 0
        %1550 = vmatpush1.bf16.msra.mxu0 0
        %1551 = vmatprep.subr.bf16.mxu0 0
        %1552 = vmatpush1.bf16.msra.mxu0 0
        %1553 = vmatprep.subr.bf16.mxu0 0
        %1554 = vmatpush1.bf16.msra.mxu0 0
        %1555 = vmatprep.subr.bf16.mxu0 0
        %1556 = vmatpush1.bf16.msra.mxu0 0
        %1557 = vmatprep.subr.bf16.mxu0 0
        %1558 = vmatpush1.bf16.msra.mxu0 0
        %1559 = vmatprep.subr.bf16.mxu0 0
        %1560 = vmatpush1.bf16.msra.mxu0 0
        %1561 = vmatprep.subr.bf16.mxu0 0
        %1562 = vmatpush1.bf16.msra.mxu0 0
        %1563 = vmatprep.subr.bf16.mxu0 0
        %1564 = vmatpush1.bf16.msra.mxu0 0
        %1565 = vmatprep.subr.bf16.mxu0 0
        %1566 = vmatpush1.bf16.msra.mxu0 0
        %1567 = vmatprep.subr.bf16.mxu0 0
        %1568 = vmatpush1.bf16.msra.mxu0 0
        %1569 = vmatprep.subr.bf16.mxu0 0
        %1570 = vmatpush1.bf16.msra.mxu0 0
        %1571 = vmatprep.mubr.bf16.mxu0 0
        %1572 = vmatmul.mubr.bf16.gmra.mrb[0].mxu0 %v1533
        %v1573 = vpop.f32.mrb[0].mxu0
        %v1574 = vadd.f32 0.0, %v1573
        %v1575 = vpop.f32.mrb[0].mxu0
        %v1576 = vpop.f32.mrb[0].mxu0
        %v1577 = vpop.f32.mrb[0].mxu0
        %1578 = vdwg.mxu0
        %v1580 = vsel %vm1479, %v1525, 0
        %v1583 = vsel %vm1535, %v1529, 0
        %1585 = vmatprep.subr.bf16.mxu0 0
        %1586 = vmatpush1.bf16.msra.mxu0 %v1583
        %1587 = vmatprep.subr.bf16.mxu0 0
        %1588 = vmatpush1.bf16.msra.mxu0 0
        %1589 = vmatprep.subr.bf16.mxu0 0
        %1590 = vmatpush1.bf16.msra.mxu0 0
        %1591 = vmatprep.subr.bf16.mxu0 0
        %1592 = vmatpush1.bf16.msra.mxu0 0
        %1593 = vmatprep.subr.bf16.mxu0 0
        %1594 = vmatpush1.bf16.msra.mxu0 0
        %1595 = vmatprep.subr.bf16.mxu0 0
        %1596 = vmatpush1.bf16.msra.mxu0 0
        %1597 = vmatprep.subr.bf16.mxu0 0
        %1598 = vmatpush1.bf16.msra.mxu0 0
        %1599 = vmatprep.subr.bf16.mxu0 0
        %1600 = vmatpush1.bf16.msra.mxu0 0
        %1601 = vmatprep.subr.bf16.mxu0 0
        %1602 = vmatpush1.bf16.msra.mxu0 0
        %1603 = vmatprep.subr.bf16.mxu0 0
        %1604 = vmatpush1.bf16.msra.mxu0 0
        %1605 = vmatprep.subr.bf16.mxu0 0
        %1606 = vmatpush1.bf16.msra.mxu0 0
        %1607 = vmatprep.subr.bf16.mxu0 0
        %1608 = vmatpush1.bf16.msra.mxu0 0
        %1609 = vmatprep.subr.bf16.mxu0 0
        %1610 = vmatpush1.bf16.msra.mxu0 0
        %1611 = vmatprep.subr.bf16.mxu0 0
        %1612 = vmatpush1.bf16.msra.mxu0 0
        %1613 = vmatprep.subr.bf16.mxu0 0
        %1614 = vmatpush1.bf16.msra.mxu0 0
        %1615 = vmatprep.subr.bf16.mxu0 0
        %1616 = vmatpush1.bf16.msra.mxu0 0
        %1617 = vmatprep.mubr.bf16.mxu0 0
        %1618 = vmatmul.mubr.bf16.gmra.mrb[0].mxu0 %v1580
        %v1619 = vpop.f32.mrb[0].mxu0
        %v1620 = vadd.f32 0.0, %v1619
        %v1621 = vpop.f32.mrb[0].mxu0
        %v1622 = vpop.f32.mrb[0].mxu0
        %v1623 = vpop.f32.mrb[0].mxu0
        %1624 = vdwg.mxu0
        %v1626 = vsel %vm1479, %v1526, 0
        %v1629 = vsel %vm1535, %v1530, 0
        %1631 = vmatprep.subr.bf16.mxu0 0
        %1632 = vmatpush1.bf16.msra.mxu0 %v1629
        %1633 = vmatprep.subr.bf16.mxu0 0
        %1634 = vmatpush1.bf16.msra.mxu0 0
        %1635 = vmatprep.subr.bf16.mxu0 0
        %1636 = vmatpush1.bf16.msra.mxu0 0
        %1637 = vmatprep.subr.bf16.mxu0 0
        %1638 = vmatpush1.bf16.msra.mxu0 0
        %1639 = vmatprep.subr.bf16.mxu0 0
        %1640 = vmatpush1.bf16.msra.mxu0 0
        %1641 = vmatprep.subr.bf16.mxu0 0
        %1642 = vmatpush1.bf16.msra.mxu0 0
        %1643 = vmatprep.subr.bf16.mxu0 0
        %1644 = vmatpush1.bf16.msra.mxu0 0
        %1645 = vmatprep.subr.bf16.mxu0 0
        %1646 = vmatpush1.bf16.msra.mxu0 0
        %1647 = vmatprep.subr.bf16.mxu0 0
        %1648 = vmatpush1.bf16.msra.mxu0 0
        %1649 = vmatprep.subr.bf16.mxu0 0
        %1650 = vmatpush1.bf16.msra.mxu0 0
        %1651 = vmatprep.subr.bf16.mxu0 0
        %1652 = vmatpush1.bf16.msra.mxu0 0
        %1653 = vmatprep.subr.bf16.mxu0 0
        %1654 = vmatpush1.bf16.msra.mxu0 0
        %1655 = vmatprep.subr.bf16.mxu0 0
        %1656 = vmatpush1.bf16.msra.mxu0 0
        %1657 = vmatprep.subr.bf16.mxu0 0
        %1658 = vmatpush1.bf16.msra.mxu0 0
        %1659 = vmatprep.subr.bf16.mxu0 0
        %1660 = vmatpush1.bf16.msra.mxu0 0
        %1661 = vmatprep.subr.bf16.mxu0 0
        %1662 = vmatpush1.bf16.msra.mxu0 0
        %1663 = vmatprep.mubr.bf16.mxu0 0
        %1664 = vmatmul.mubr.bf16.gmra.mrb[0].mxu0 %v1626
        %v1665 = vpop.f32.mrb[0].mxu0
        %v1666 = vadd.f32 0.0, %v1665
        %v1667 = vpop.f32.mrb[0].mxu0
        %v1668 = vpop.f32.mrb[0].mxu0
        %v1669 = vpop.f32.mrb[0].mxu0
        %1670 = vdwg.mxu0
        %v1672 = vsel %vm1479, %v1527, 0
        %v1675 = vsel %vm1535, %v1531, 0
        %1677 = vmatprep.subr.bf16.mxu0 0
        %1678 = vmatpush1.bf16.msra.mxu0 %v1675
        %1679 = vmatprep.subr.bf16.mxu0 0
        %1680 = vmatpush1.bf16.msra.mxu0 0
        %1681 = vmatprep.subr.bf16.mxu0 0
        %1682 = vmatpush1.bf16.msra.mxu0 0
        %1683 = vmatprep.subr.bf16.mxu0 0
        %1684 = vmatpush1.bf16.msra.mxu0 0
        %1685 = vmatprep.subr.bf16.mxu0 0
        %1686 = vmatpush1.bf16.msra.mxu0 0
        %1687 = vmatprep.subr.bf16.mxu0 0
        %1688 = vmatpush1.bf16.msra.mxu0 0
        %1689 = vmatprep.subr.bf16.mxu0 0
        %1690 = vmatpush1.bf16.msra.mxu0 0
        %1691 = vmatprep.subr.bf16.mxu0 0
        %1692 = vmatpush1.bf16.msra.mxu0 0
        %1693 = vmatprep.subr.bf16.mxu0 0
        %1694 = vmatpush1.bf16.msra.mxu0 0
        %1695 = vmatprep.subr.bf16.mxu0 0
        %1696 = vmatpush1.bf16.msra.mxu0 0
        %1697 = vmatprep.subr.bf16.mxu0 0
        %1698 = vmatpush1.bf16.msra.mxu0 0
        %1699 = vmatprep.subr.bf16.mxu0 0
        %1700 = vmatpush1.bf16.msra.mxu0 0
        %1701 = vmatprep.subr.bf16.mxu0 0
        %1702 = vmatpush1.bf16.msra.mxu0 0
        %1703 = vmatprep.subr.bf16.mxu0 0
        %1704 = vmatpush1.bf16.msra.mxu0 0
        %1705 = vmatprep.subr.bf16.mxu0 0
        %1706 = vmatpush1.bf16.msra.mxu0 0
        %1707 = vmatprep.subr.bf16.mxu0 0
        %1708 = vmatpush1.bf16.msra.mxu0 0
        %1709 = vmatprep.mubr.bf16.mxu0 0
        %1710 = vmatmul.mubr.bf16.gmra.mrb[0].mxu0 %v1672
        %v1711 = vpop.f32.mrb[0].mxu0
        %v1712 = vadd.f32 0.0, %v1711
        %v1713 = vpop.f32.mrb[0].mxu0
        %v1714 = vpop.f32.mrb[0].mxu0
        %v1715 = vpop.f32.mrb[0].mxu0
        %1716 = vdwg.mxu0
        %v1717 = vld [vmem:[#allocation9] sm:$0xf]
        %v1718 = vld [vmem:[#allocation9 + $0x4] sm:$0xf]
        %v1719 = vld [vmem:[#allocation9 + $0x8] sm:$0xf]
        %v1720 = vld [vmem:[#allocation9 + $0xc] sm:$0xf]
        %v1721 = vld [vmem:[#allocation9 + $0x10] sm:$0xf]
        %v1722 = vld [vmem:[#allocation9 + $0x14] sm:$0xf]
        %v1723 = vld [vmem:[#allocation9 + $0x18] sm:$0xf]
        %v1724 = vld [vmem:[#allocation9 + $0x1c] sm:$0xf]
        %v1725 = vpack.c.bf16 %v1620, %v1574
        %v1726 = vpack.c.bf16 %v1712, %v1666
        %1728 = vrot.lane.b32.xlu0 %v1254, 64
        %v1729 = vpop.permute.xlu0 %1728
        %1731 = vrot.lane.b32.xlu0 %v1258, 64
        %v1732 = vpop.permute.xlu0 %1731
        %v1734 = vsel %vm1262, %v1729, 0
        %v1737 = vsel %vm1262, %v1732, 0
        %1739 = vmatprep.subr.bf16.mxu0 0
        %1740 = vmatpush1.bf16.xpose.msra.mxu0 %v1737
        %1741 = vmatprep.subr.bf16.mxu0 0
        %1742 = vmatpush1.bf16.xpose.msra.mxu0 0
        %1743 = vmatprep.subr.bf16.mxu0 0
        %1744 = vmatpush1.bf16.xpose.msra.mxu0 0
        %1745 = vmatprep.subr.bf16.mxu0 0
        %1746 = vmatpush1.bf16.xpose.msra.mxu0 0
        %1747 = vmatprep.subr.bf16.mxu0 0
        %1748 = vmatpush1.bf16.xpose.msra.mxu0 0
        %1749 = vmatprep.subr.bf16.mxu0 0
        %1750 = vmatpush1.bf16.xpose.msra.mxu0 0
        %1751 = vmatprep.subr.bf16.mxu0 0
        %1752 = vmatpush1.bf16.xpose.msra.mxu0 0
        %1753 = vmatprep.subr.bf16.mxu0 0
        %1754 = vmatpush1.bf16.xpose.msra.mxu0 0
        %1755 = vmatprep.subr.bf16.mxu0 0
        %1756 = vmatpush1.bf16.xpose.msra.mxu0 0
        %1757 = vmatprep.subr.bf16.mxu0 0
        %1758 = vmatpush1.bf16.xpose.msra.mxu0 0
        %1759 = vmatprep.subr.bf16.mxu0 0
        %1760 = vmatpush1.bf16.xpose.msra.mxu0 0
        %1761 = vmatprep.subr.bf16.mxu0 0
        %1762 = vmatpush1.bf16.xpose.msra.mxu0 0
        %1763 = vmatprep.subr.bf16.mxu0 0
        %1764 = vmatpush1.bf16.xpose.msra.mxu0 0
        %1765 = vmatprep.subr.bf16.mxu0 0
        %1766 = vmatpush1.bf16.xpose.msra.mxu0 0
        %1767 = vmatprep.subr.bf16.mxu0 0
        %1768 = vmatpush1.bf16.xpose.msra.mxu0 0
        %1769 = vmatprep.subr.bf16.mxu0 0
        %1770 = vmatpush1.bf16.xpose.msra.mxu0 0
        %1771 = vmatprep.mubr.bf16.mxu0 0
        %1772 = vmatmul.mubr.bf16.gmra.mrb[0].mxu0 %v1734
        %v1773 = vpop.f32.mrb[0].mxu0
        %v1774 = vadd.f32 0.0, %v1773
        %v1775 = vpop.f32.mrb[0].mxu0
        %v1776 = vpop.f32.mrb[0].mxu0
        %v1777 = vpop.f32.mrb[0].mxu0
        %1778 = vdwg.mxu0
        %1780 = vrot.lane.b32.xlu0 %v1255, 64
        %v1781 = vpop.permute.xlu0 %1780
        %1783 = vrot.lane.b32.xlu0 %v1259, 64
        %v1784 = vpop.permute.xlu0 %1783
        %v1786 = vsel %vm1262, %v1781, 0
        %v1789 = vsel %vm1262, %v1784, 0
        %1791 = vmatprep.subr.bf16.mxu0 0
        %1792 = vmatpush1.bf16.xpose.msra.mxu0 %v1789
        %1793 = vmatprep.subr.bf16.mxu0 0
        %1794 = vmatpush1.bf16.xpose.msra.mxu0 0
        %1795 = vmatprep.subr.bf16.mxu0 0
        %1796 = vmatpush1.bf16.xpose.msra.mxu0 0
        %1797 = vmatprep.subr.bf16.mxu0 0
        %1798 = vmatpush1.bf16.xpose.msra.mxu0 0
        %1799 = vmatprep.subr.bf16.mxu0 0
        %1800 = vmatpush1.bf16.xpose.msra.mxu0 0
        %1801 = vmatprep.subr.bf16.mxu0 0
        %1802 = vmatpush1.bf16.xpose.msra.mxu0 0
        %1803 = vmatprep.subr.bf16.mxu0 0
        %1804 = vmatpush1.bf16.xpose.msra.mxu0 0
        %1805 = vmatprep.subr.bf16.mxu0 0
        %1806 = vmatpush1.bf16.xpose.msra.mxu0 0
        %1807 = vmatprep.subr.bf16.mxu0 0
        %1808 = vmatpush1.bf16.xpose.msra.mxu0 0
        %1809 = vmatprep.subr.bf16.mxu0 0
        %1810 = vmatpush1.bf16.xpose.msra.mxu0 0
        %1811 = vmatprep.subr.bf16.mxu0 0
        %1812 = vmatpush1.bf16.xpose.msra.mxu0 0
        %1813 = vmatprep.subr.bf16.mxu0 0
        %1814 = vmatpush1.bf16.xpose.msra.mxu0 0
        %1815 = vmatprep.subr.bf16.mxu0 0
        %1816 = vmatpush1.bf16.xpose.msra.mxu0 0
        %1817 = vmatprep.subr.bf16.mxu0 0
        %1818 = vmatpush1.bf16.xpose.msra.mxu0 0
        %1819 = vmatprep.subr.bf16.mxu0 0
        %1820 = vmatpush1.bf16.xpose.msra.mxu0 0
        %1821 = vmatprep.subr.bf16.mxu0 0
        %1822 = vmatpush1.bf16.xpose.msra.mxu0 0
        %1823 = vmatprep.mubr.bf16.mxu0 0
        %1824 = vmatmul.mubr.bf16.gmra.mrb[0].mxu0 %v1786
        %v1825 = vpop.f32.mrb[0].mxu0
        %v1826 = vadd.f32 0.0, %v1825
        %v1827 = vpop.f32.mrb[0].mxu0
        %v1828 = vpop.f32.mrb[0].mxu0
        %v1829 = vpop.f32.mrb[0].mxu0
        %1830 = vdwg.mxu0
        %1832 = vrot.lane.b32.xlu0 %v1256, 64
        %v1833 = vpop.permute.xlu0 %1832
        %1835 = vrot.lane.b32.xlu0 %v1260, 64
        %v1836 = vpop.permute.xlu0 %1835
        %v1838 = vsel %vm1262, %v1833, 0
        %v1841 = vsel %vm1262, %v1836, 0
        %1843 = vmatprep.subr.bf16.mxu0 0
        %1844 = vmatpush1.bf16.xpose.msra.mxu0 %v1841
        %1845 = vmatprep.subr.bf16.mxu0 0
        %1846 = vmatpush1.bf16.xpose.msra.mxu0 0
        %1847 = vmatprep.subr.bf16.mxu0 0
        %1848 = vmatpush1.bf16.xpose.msra.mxu0 0
        %1849 = vmatprep.subr.bf16.mxu0 0
        %1850 = vmatpush1.bf16.xpose.msra.mxu0 0
        %1851 = vmatprep.subr.bf16.mxu0 0
        %1852 = vmatpush1.bf16.xpose.msra.mxu0 0
        %1853 = vmatprep.subr.bf16.mxu0 0
        %1854 = vmatpush1.bf16.xpose.msra.mxu0 0
        %1855 = vmatprep.subr.bf16.mxu0 0
        %1856 = vmatpush1.bf16.xpose.msra.mxu0 0
        %1857 = vmatprep.subr.bf16.mxu0 0
        %1858 = vmatpush1.bf16.xpose.msra.mxu0 0
        %1859 = vmatprep.subr.bf16.mxu0 0
        %1860 = vmatpush1.bf16.xpose.msra.mxu0 0
        %1861 = vmatprep.subr.bf16.mxu0 0
        %1862 = vmatpush1.bf16.xpose.msra.mxu0 0
        %1863 = vmatprep.subr.bf16.mxu0 0
        %1864 = vmatpush1.bf16.xpose.msra.mxu0 0
        %1865 = vmatprep.subr.bf16.mxu0 0
        %1866 = vmatpush1.bf16.xpose.msra.mxu0 0
        %1867 = vmatprep.subr.bf16.mxu0 0
        %1868 = vmatpush1.bf16.xpose.msra.mxu0 0
        %1869 = vmatprep.subr.bf16.mxu0 0
        %1870 = vmatpush1.bf16.xpose.msra.mxu0 0
        %1871 = vmatprep.subr.bf16.mxu0 0
        %1872 = vmatpush1.bf16.xpose.msra.mxu0 0
        %1873 = vmatprep.subr.bf16.mxu0 0
        %1874 = vmatpush1.bf16.xpose.msra.mxu0 0
        %1875 = vmatprep.mubr.bf16.mxu0 0
        %1876 = vmatmul.mubr.bf16.gmra.mrb[0].mxu0 %v1838
        %v1877 = vpop.f32.mrb[0].mxu0
        %v1878 = vadd.f32 0.0, %v1877
        %v1879 = vpop.f32.mrb[0].mxu0
        %v1880 = vpop.f32.mrb[0].mxu0
        %v1881 = vpop.f32.mrb[0].mxu0
        %1882 = vdwg.mxu0
        %1884 = vrot.lane.b32.xlu0 %v1257, 64
        %v1885 = vpop.permute.xlu0 %1884
        %1887 = vrot.lane.b32.xlu0 %v1261, 64
        %v1888 = vpop.permute.xlu0 %1887
        %v1890 = vsel %vm1262, %v1885, 0
        %v1893 = vsel %vm1262, %v1888, 0
        %1895 = vmatprep.subr.bf16.mxu0 0
        %1896 = vmatpush1.bf16.xpose.msra.mxu0 %v1893
        %1897 = vmatprep.subr.bf16.mxu0 0
        %1898 = vmatpush1.bf16.xpose.msra.mxu0 0
        %1899 = vmatprep.subr.bf16.mxu0 0
        %1900 = vmatpush1.bf16.xpose.msra.mxu0 0
        %1901 = vmatprep.subr.bf16.mxu0 0
        %1902 = vmatpush1.bf16.xpose.msra.mxu0 0
        %1903 = vmatprep.subr.bf16.mxu0 0
        %1904 = vmatpush1.bf16.xpose.msra.mxu0 0
        %1905 = vmatprep.subr.bf16.mxu0 0
        %1906 = vmatpush1.bf16.xpose.msra.mxu0 0
        %1907 = vmatprep.subr.bf16.mxu0 0
        %1908 = vmatpush1.bf16.xpose.msra.mxu0 0
        %1909 = vmatprep.subr.bf16.mxu0 0
        %1910 = vmatpush1.bf16.xpose.msra.mxu0 0
        %1911 = vmatprep.subr.bf16.mxu0 0
        %1912 = vmatpush1.bf16.xpose.msra.mxu0 0
        %1913 = vmatprep.subr.bf16.mxu0 0
        %1914 = vmatpush1.bf16.xpose.msra.mxu0 0
        %1915 = vmatprep.subr.bf16.mxu0 0
        %1916 = vmatpush1.bf16.xpose.msra.mxu0 0
        %1917 = vmatprep.subr.bf16.mxu0 0
        %1918 = vmatpush1.bf16.xpose.msra.mxu0 0
        %1919 = vmatprep.subr.bf16.mxu0 0
        %1920 = vmatpush1.bf16.xpose.msra.mxu0 0
        %1921 = vmatprep.subr.bf16.mxu0 0
        %1922 = vmatpush1.bf16.xpose.msra.mxu0 0
        %1923 = vmatprep.subr.bf16.mxu0 0
        %1924 = vmatpush1.bf16.xpose.msra.mxu0 0
        %1925 = vmatprep.subr.bf16.mxu0 0
        %1926 = vmatpush1.bf16.xpose.msra.mxu0 0
        %1927 = vmatprep.mubr.bf16.mxu0 0
        %1928 = vmatmul.mubr.bf16.gmra.mrb[0].mxu0 %v1890
        %v1929 = vpop.f32.mrb[0].mxu0
        %v1930 = vadd.f32 0.0, %v1929
        %v1931 = vpop.f32.mrb[0].mxu0
        %v1932 = vpop.f32.mrb[0].mxu0
        %v1933 = vpop.f32.mrb[0].mxu0
        %1934 = vdwg.mxu0
        %v1935 = vmul.f32 %v1774, 0.125
        %v1936 = vmul.f32 %v1826, 0.125
        %v1937 = vmul.f32 %v1878, 0.125
        %v1938 = vmul.f32 %v1930, 0.125
        %v1939 = vadd.f32 %v1935, %v1458
        %v1940 = vadd.f32 %v1936, %v1462
        %v1941 = vadd.f32 %v1937, %v1466
        %v1942 = vadd.f32 %v1938, %v1470
        %v1943 = vsel %vm1479, %v1939, -inf
        %1944 = vmax.xlane.f32.xlu0 %v1943
        %v1945 = vpop.xlane.xlu0 %1944
        %v1946 = vsel %vm1479, %v1940, -inf
        %1947 = vmax.xlane.f32.xlu0 %v1946
        %v1948 = vpop.xlane.xlu0 %1947
        %v1949 = vsel %vm1479, %v1941, -inf
        %1950 = vmax.xlane.f32.xlu0 %v1949
        %v1951 = vpop.xlane.xlu0 %1950
        %v1952 = vsel %vm1479, %v1942, -inf
        %1953 = vmax.xlane.f32.xlu0 %v1952
        %v1954 = vpop.xlane.xlu0 %1953
        %v1955 = vsub.f32 %v1939, %v1945
        %v1956 = vsub.f32 %v1940, %v1948
        %v1957 = vsub.f32 %v1941, %v1951
        %v1958 = vsub.f32 %v1942, %v1954
        %v1959 = vmul.f32 %v1955, 1.442695
        %v1960 = vpow.pop %v1959
        %v1961 = vmul.f32 %v1956, 1.442695
        %v1962 = vpow.pop %v1961
        %v1963 = vmul.f32 %v1957, 1.442695
        %v1964 = vpow.pop %v1963
        %v1965 = vmul.f32 %v1958, 1.442695
        %v1966 = vpow.pop %v1965
        %v1967 = vsel %vm1479, %v1960, 0.0
        %1968 = vadd.xlane.f32.xlu0 %v1967
        %v1969 = vpop.xlane.xlu0 %1968
        %v1970 = vsel %vm1479, %v1962, 0.0
        %1971 = vadd.xlane.f32.xlu0 %v1970
        %v1972 = vpop.xlane.xlu0 %1971
        %v1973 = vsel %vm1479, %v1964, 0.0
        %1974 = vadd.xlane.f32.xlu0 %v1973
        %v1975 = vpop.xlane.xlu0 %1974
        %v1976 = vsel %vm1479, %v1966, 0.0
        %1977 = vadd.xlane.f32.xlu0 %v1976
        %v1978 = vpop.xlane.xlu0 %1977
        %v1979 = vrcp.pop %v1969
        %v1980 = vrcp.pop %v1972
        %v1981 = vrcp.pop %v1975
        %v1982 = vrcp.pop %v1978
        %v1983 = vmul.f32 %v1960, %v1979
        %v1984 = vmul.f32 %v1962, %v1980
        %v1985 = vmul.f32 %v1964, %v1981
        %v1986 = vmul.f32 %v1966, %v1982
        %v1987 = vpack.c.bf16 %v1983, %v1983
        %v1988 = vpack.c.bf16 %v1984, %v1984
        %v1989 = vpack.c.bf16 %v1985, %v1985
        %v1990 = vpack.c.bf16 %v1986, %v1986
        %1992 = vrot.lane.b32.xlu0 %v1528, 64
        %v1993 = vpop.permute.xlu0 %1992
        %v1995 = vsel %vm1479, %v1987, 0
        %v1998 = vsel %vm1535, %v1993, 0
        %2000 = vmatprep.subr.bf16.mxu0 0
        %2001 = vmatpush1.bf16.msra.mxu0 %v1998
        %2002 = vmatprep.subr.bf16.mxu0 0
        %2003 = vmatpush1.bf16.msra.mxu0 0
        %2004 = vmatprep.subr.bf16.mxu0 0
        %2005 = vmatpush1.bf16.msra.mxu0 0
        %2006 = vmatprep.subr.bf16.mxu0 0
        %2007 = vmatpush1.bf16.msra.mxu0 0
        %2008 = vmatprep.subr.bf16.mxu0 0
        %2009 = vmatpush1.bf16.msra.mxu0 0
        %2010 = vmatprep.subr.bf16.mxu0 0
        %2011 = vmatpush1.bf16.msra.mxu0 0
        %2012 = vmatprep.subr.bf16.mxu0 0
        %2013 = vmatpush1.bf16.msra.mxu0 0
        %2014 = vmatprep.subr.bf16.mxu0 0
        %2015 = vmatpush1.bf16.msra.mxu0 0
        %2016 = vmatprep.subr.bf16.mxu0 0
        %2017 = vmatpush1.bf16.msra.mxu0 0
        %2018 = vmatprep.subr.bf16.mxu0 0
        %2019 = vmatpush1.bf16.msra.mxu0 0
        %2020 = vmatprep.subr.bf16.mxu0 0
        %2021 = vmatpush1.bf16.msra.mxu0 0
        %2022 = vmatprep.subr.bf16.mxu0 0
        %2023 = vmatpush1.bf16.msra.mxu0 0
        %2024 = vmatprep.subr.bf16.mxu0 0
        %2025 = vmatpush1.bf16.msra.mxu0 0
        %2026 = vmatprep.subr.bf16.mxu0 0
        %2027 = vmatpush1.bf16.msra.mxu0 0
        %2028 = vmatprep.subr.bf16.mxu0 0
        %2029 = vmatpush1.bf16.msra.mxu0 0
        %2030 = vmatprep.subr.bf16.mxu0 0
        %2031 = vmatpush1.bf16.msra.mxu0 0
        %2032 = vmatprep.mubr.bf16.mxu0 0
        %2033 = vmatmul.mubr.bf16.gmra.mrb[0].mxu0 %v1995
        %v2034 = vpop.f32.mrb[0].mxu0
        %v2035 = vadd.f32 0.0, %v2034
        %v2036 = vpop.f32.mrb[0].mxu0
        %v2037 = vpop.f32.mrb[0].mxu0
        %v2038 = vpop.f32.mrb[0].mxu0
        %2039 = vdwg.mxu0
        %2041 = vrot.lane.b32.xlu0 %v1529, 64
        %v2042 = vpop.permute.xlu0 %2041
        %v2044 = vsel %vm1479, %v1988, 0
        %v2047 = vsel %vm1535, %v2042, 0
        %2049 = vmatprep.subr.bf16.mxu0 0
        %2050 = vmatpush1.bf16.msra.mxu0 %v2047
        %2051 = vmatprep.subr.bf16.mxu0 0
        %2052 = vmatpush1.bf16.msra.mxu0 0
        %2053 = vmatprep.subr.bf16.mxu0 0
        %2054 = vmatpush1.bf16.msra.mxu0 0
        %2055 = vmatprep.subr.bf16.mxu0 0
        %2056 = vmatpush1.bf16.msra.mxu0 0
        %2057 = vmatprep.subr.bf16.mxu0 0
        %2058 = vmatpush1.bf16.msra.mxu0 0
        %2059 = vmatprep.subr.bf16.mxu0 0
        %2060 = vmatpush1.bf16.msra.mxu0 0
        %2061 = vmatprep.subr.bf16.mxu0 0
        %2062 = vmatpush1.bf16.msra.mxu0 0
        %2063 = vmatprep.subr.bf16.mxu0 0
        %2064 = vmatpush1.bf16.msra.mxu0 0
        %2065 = vmatprep.subr.bf16.mxu0 0
        %2066 = vmatpush1.bf16.msra.mxu0 0
        %2067 = vmatprep.subr.bf16.mxu0 0
        %2068 = vmatpush1.bf16.msra.mxu0 0
        %2069 = vmatprep.subr.bf16.mxu0 0
        %2070 = vmatpush1.bf16.msra.mxu0 0
        %2071 = vmatprep.subr.bf16.mxu0 0
        %2072 = vmatpush1.bf16.msra.mxu0 0
        %2073 = vmatprep.subr.bf16.mxu0 0
        %2074 = vmatpush1.bf16.msra.mxu0 0
        %2075 = vmatprep.subr.bf16.mxu0 0
        %2076 = vmatpush1.bf16.msra.mxu0 0
        %2077 = vmatprep.subr.bf16.mxu0 0
        %2078 = vmatpush1.bf16.msra.mxu0 0
        %2079 = vmatprep.subr.bf16.mxu0 0
        %2080 = vmatpush1.bf16.msra.mxu0 0
        %2081 = vmatprep.mubr.bf16.mxu0 0
        %2082 = vmatmul.mubr.bf16.gmra.mrb[0].mxu0 %v2044
        %v2083 = vpop.f32.mrb[0].mxu0
        %v2084 = vadd.f32 0.0, %v2083
        %v2085 = vpop.f32.mrb[0].mxu0
        %v2086 = vpop.f32.mrb[0].mxu0
        %v2087 = vpop.f32.mrb[0].mxu0
        %2088 = vdwg.mxu0
        %2090 = vrot.lane.b32.xlu0 %v1530, 64
        %v2091 = vpop.permute.xlu0 %2090
        %v2093 = vsel %vm1479, %v1989, 0
        %v2096 = vsel %vm1535, %v2091, 0
        %2098 = vmatprep.subr.bf16.mxu0 0
        %2099 = vmatpush1.bf16.msra.mxu0 %v2096
        %2100 = vmatprep.subr.bf16.mxu0 0
        %2101 = vmatpush1.bf16.msra.mxu0 0
        %2102 = vmatprep.subr.bf16.mxu0 0
        %2103 = vmatpush1.bf16.msra.mxu0 0
        %2104 = vmatprep.subr.bf16.mxu0 0
        %2105 = vmatpush1.bf16.msra.mxu0 0
        %2106 = vmatprep.subr.bf16.mxu0 0
        %2107 = vmatpush1.bf16.msra.mxu0 0
        %2108 = vmatprep.subr.bf16.mxu0 0
        %2109 = vmatpush1.bf16.msra.mxu0 0
        %2110 = vmatprep.subr.bf16.mxu0 0
        %2111 = vmatpush1.bf16.msra.mxu0 0
        %2112 = vmatprep.subr.bf16.mxu0 0
        %2113 = vmatpush1.bf16.msra.mxu0 0
        %2114 = vmatprep.subr.bf16.mxu0 0
        %2115 = vmatpush1.bf16.msra.mxu0 0
        %2116 = vmatprep.subr.bf16.mxu0 0
        %2117 = vmatpush1.bf16.msra.mxu0 0
        %2118 = vmatprep.subr.bf16.mxu0 0
        %2119 = vmatpush1.bf16.msra.mxu0 0
        %2120 = vmatprep.subr.bf16.mxu0 0
        %2121 = vmatpush1.bf16.msra.mxu0 0
        %2122 = vmatprep.subr.bf16.mxu0 0
        %2123 = vmatpush1.bf16.msra.mxu0 0
        %2124 = vmatprep.subr.bf16.mxu0 0
        %2125 = vmatpush1.bf16.msra.mxu0 0
        %2126 = vmatprep.subr.bf16.mxu0 0
        %2127 = vmatpush1.bf16.msra.mxu0 0
        %2128 = vmatprep.subr.bf16.mxu0 0
        %2129 = vmatpush1.bf16.msra.mxu0 0
        %2130 = vmatprep.mubr.bf16.mxu0 0
        %2131 = vmatmul.mubr.bf16.gmra.mrb[0].mxu0 %v2093
        %v2132 = vpop.f32.mrb[0].mxu0
        %v2133 = vadd.f32 0.0, %v2132
        %v2134 = vpop.f32.mrb[0].mxu0
        %v2135 = vpop.f32.mrb[0].mxu0
        %v2136 = vpop.f32.mrb[0].mxu0
        %2137 = vdwg.mxu0
        %2139 = vrot.lane.b32.xlu0 %v1531, 64
        %v2140 = vpop.permute.xlu0 %2139
        %v2142 = vsel %vm1479, %v1990, 0
        %v2145 = vsel %vm1535, %v2140, 0
        %2147 = vmatprep.subr.bf16.mxu0 0
        %2148 = vmatpush1.bf16.msra.mxu0 %v2145
        %2149 = vmatprep.subr.bf16.mxu0 0
        %2150 = vmatpush1.bf16.msra.mxu0 0
        %2151 = vmatprep.subr.bf16.mxu0 0
        %2152 = vmatpush1.bf16.msra.mxu0 0
        %2153 = vmatprep.subr.bf16.mxu0 0
        %2154 = vmatpush1.bf16.msra.mxu0 0
        %2155 = vmatprep.subr.bf16.mxu0 0
        %2156 = vmatpush1.bf16.msra.mxu0 0
        %2157 = vmatprep.subr.bf16.mxu0 0
        %2158 = vmatpush1.bf16.msra.mxu0 0
        %2159 = vmatprep.subr.bf16.mxu0 0
        %2160 = vmatpush1.bf16.msra.mxu0 0
        %2161 = vmatprep.subr.bf16.mxu0 0
        %2162 = vmatpush1.bf16.msra.mxu0 0
        %2163 = vmatprep.subr.bf16.mxu0 0
        %2164 = vmatpush1.bf16.msra.mxu0 0
        %2165 = vmatprep.subr.bf16.mxu0 0
        %2166 = vmatpush1.bf16.msra.mxu0 0
        %2167 = vmatprep.subr.bf16.mxu0 0
        %2168 = vmatpush1.bf16.msra.mxu0 0
        %2169 = vmatprep.subr.bf16.mxu0 0
        %2170 = vmatpush1.bf16.msra.mxu0 0
        %2171 = vmatprep.subr.bf16.mxu0 0
        %2172 = vmatpush1.bf16.msra.mxu0 0
        %2173 = vmatprep.subr.bf16.mxu0 0
        %2174 = vmatpush1.bf16.msra.mxu0 0
        %2175 = vmatprep.subr.bf16.mxu0 0
        %2176 = vmatpush1.bf16.msra.mxu0 0
        %2177 = vmatprep.subr.bf16.mxu0 0
        %2178 = vmatpush1.bf16.msra.mxu0 0
        %2179 = vmatprep.mubr.bf16.mxu0 0
        %2180 = vmatmul.mubr.bf16.gmra.mrb[0].mxu0 %v2142
        %v2181 = vpop.f32.mrb[0].mxu0
        %v2182 = vadd.f32 0.0, %v2181
        %v2183 = vpop.f32.mrb[0].mxu0
        %v2184 = vpop.f32.mrb[0].mxu0
        %v2185 = vpop.f32.mrb[0].mxu0
        %2186 = vdwg.mxu0
        %s2187 = scalar_lea.vmem [#allocation9], 32
        %v2188 = vld [vmem:[%s2187] sm:$0xf]
        %v2189 = vld [vmem:[%s2187 + $0x4] sm:$0xf]
        %v2190 = vld [vmem:[%s2187 + $0x8] sm:$0xf]
        %v2191 = vld [vmem:[%s2187 + $0xc] sm:$0xf]
        %v2192 = vld [vmem:[%s2187 + $0x10] sm:$0xf]
        %v2193 = vld [vmem:[%s2187 + $0x14] sm:$0xf]
        %v2194 = vld [vmem:[%s2187 + $0x18] sm:$0xf]
        %v2195 = vld [vmem:[%s2187 + $0x1c] sm:$0xf]
        %v2196 = vpack.c.bf16 %v2084, %v2035
        %v2197 = vpack.c.bf16 %v2182, %v2133
        %v2206 = vunpack.c.l.b16 %v2188
        %v2207 = vunpack.c.l.b16 %v2189
        %v2208 = vunpack.c.l.b16 %v2190
        %v2209 = vunpack.c.l.b16 %v2191
        %v2210 = vunpack.c.l.b16 %v2192
        %v2211 = vunpack.c.l.b16 %v2193
        %v2212 = vunpack.c.l.b16 %v2194
        %v2213 = vunpack.c.l.b16 %v2195
        %v2214 = vpack.c.b16 %v2207, %v2206
        %v2215 = vpack.c.b16 %v2209, %v2208
        %v2216 = vpack.c.b16 %v2211, %v2210
        %v2217 = vpack.c.b16 %v2213, %v2212
        %v2223 = vsel %vm1262, %v2196, 0
        %v2226 = vsel %vm1262, %v2197, 0
        %2228 = vmatprep.subr.bf16.mxu0 0
        %2229 = vmatpush1.bf16.msra.mxu0 %v2214
        %2230 = vmatprep.subr.bf16.mxu0 0
        %2231 = vmatpush1.bf16.msra.mxu0 %v2215
        %2232 = vmatprep.subr.bf16.mxu0 0
        %2233 = vmatpush1.bf16.msra.mxu0 %v2216
        %2234 = vmatprep.subr.bf16.mxu0 0
        %2235 = vmatpush1.bf16.msra.mxu0 %v2217
        %2236 = vmatprep.subr.bf16.mxu0 0
        %2237 = vmatpush1.bf16.msra.mxu0 0
        %2238 = vmatprep.subr.bf16.mxu0 0
        %2239 = vmatpush1.bf16.msra.mxu0 0
        %2240 = vmatprep.subr.bf16.mxu0 0
        %2241 = vmatpush1.bf16.msra.mxu0 0
        %2242 = vmatprep.subr.bf16.mxu0 0
        %2243 = vmatpush1.bf16.msra.mxu0 0
        %2244 = vmatprep.subr.bf16.mxu0 0
        %2245 = vmatpush1.bf16.msra.mxu0 0
        %2246 = vmatprep.subr.bf16.mxu0 0
        %2247 = vmatpush1.bf16.msra.mxu0 0
        %2248 = vmatprep.subr.bf16.mxu0 0
        %2249 = vmatpush1.bf16.msra.mxu0 0
        %2250 = vmatprep.subr.bf16.mxu0 0
        %2251 = vmatpush1.bf16.msra.mxu0 0
        %2252 = vmatprep.subr.bf16.mxu0 0
        %2253 = vmatpush1.bf16.msra.mxu0 0
        %2254 = vmatprep.subr.bf16.mxu0 0
        %2255 = vmatpush1.bf16.msra.mxu0 0
        %2256 = vmatprep.subr.bf16.mxu0 0
        %2257 = vmatpush1.bf16.msra.mxu0 0
        %2258 = vmatprep.subr.bf16.mxu0 0
        %2259 = vmatpush1.bf16.msra.mxu0 0
        %2260 = vmatprep.mubr.bf16.mxu0 0
        %2261 = vmatmul.mubr.bf16.gmra.mrb[0].mxu0 %v2223
        %v2262 = vpop.f32.mrb[0].mxu0
        %v2263 = vadd.f32 0.0, %v2262
        %v2264 = vpop.f32.mrb[0].mxu0
        %v2265 = vpop.f32.mrb[0].mxu0
        %v2266 = vadd.f32 0.0, %v2265
        %v2267 = vpop.f32.mrb[0].mxu0
        %2268 = vmatprep.mubr.bf16.mxu0 0
        %2269 = vmatmul.mubr.bf16.gmra.mrb[0].mxu0 %v2226
        %v2270 = vpop.f32.mrb[0].mxu0
        %v2271 = vadd.f32 0.0, %v2270
        %v2272 = vpop.f32.mrb[0].mxu0
        %v2273 = vpop.f32.mrb[0].mxu0
        %v2274 = vadd.f32 0.0, %v2273
        %v2275 = vpop.f32.mrb[0].mxu0
        %2276 = vdwg.mxu0
        %v2285 = vunpack.c.l.b16 %v1717
        %v2286 = vunpack.c.l.b16 %v1718
        %v2287 = vunpack.c.l.b16 %v1719
        %v2288 = vunpack.c.l.b16 %v1720
        %v2289 = vunpack.c.l.b16 %v1721
        %v2290 = vunpack.c.l.b16 %v1722
        %v2291 = vunpack.c.l.b16 %v1723
        %v2292 = vunpack.c.l.b16 %v1724
        %v2293 = vpack.c.b16 %v2286, %v2285
        %v2294 = vpack.c.b16 %v2288, %v2287
        %v2295 = vpack.c.b16 %v2290, %v2289
        %v2296 = vpack.c.b16 %v2292, %v2291
        %v2302 = vsel %vm1262, %v1725, 0
        %v2305 = vsel %vm1262, %v1726, 0
        %2307 = vmatprep.subr.bf16.mxu0 0
        %2308 = vmatpush1.bf16.msra.mxu0 %v2293
        %2309 = vmatprep.subr.bf16.mxu0 0
        %2310 = vmatpush1.bf16.msra.mxu0 %v2294
        %2311 = vmatprep.subr.bf16.mxu0 0
        %2312 = vmatpush1.bf16.msra.mxu0 %v2295
        %2313 = vmatprep.subr.bf16.mxu0 0
        %2314 = vmatpush1.bf16.msra.mxu0 %v2296
        %2315 = vmatprep.subr.bf16.mxu0 0
        %2316 = vmatpush1.bf16.msra.mxu0 0
        %2317 = vmatprep.subr.bf16.mxu0 0
        %2318 = vmatpush1.bf16.msra.mxu0 0
        %2319 = vmatprep.subr.bf16.mxu0 0
        %2320 = vmatpush1.bf16.msra.mxu0 0
        %2321 = vmatprep.subr.bf16.mxu0 0
        %2322 = vmatpush1.bf16.msra.mxu0 0
        %2323 = vmatprep.subr.bf16.mxu0 0
        %2324 = vmatpush1.bf16.msra.mxu0 0
        %2325 = vmatprep.subr.bf16.mxu0 0
        %2326 = vmatpush1.bf16.msra.mxu0 0
        %2327 = vmatprep.subr.bf16.mxu0 0
        %2328 = vmatpush1.bf16.msra.mxu0 0
        %2329 = vmatprep.subr.bf16.mxu0 0
        %2330 = vmatpush1.bf16.msra.mxu0 0
        %2331 = vmatprep.subr.bf16.mxu0 0
        %2332 = vmatpush1.bf16.msra.mxu0 0
        %2333 = vmatprep.subr.bf16.mxu0 0
        %2334 = vmatpush1.bf16.msra.mxu0 0
        %2335 = vmatprep.subr.bf16.mxu0 0
        %2336 = vmatpush1.bf16.msra.mxu0 0
        %2337 = vmatprep.subr.bf16.mxu0 0
        %2338 = vmatpush1.bf16.msra.mxu0 0
        %2339 = vmatprep.mubr.bf16.mxu0 0
        %2340 = vmatmul.mubr.bf16.gmra.mrb[0].mxu0 %v2302
        %v2341 = vpop.f32.mrb[0].mxu0
        %v2342 = vadd.f32 %v2263, %v2341
        %v2343 = vpop.f32.mrb[0].mxu0
        %v2344 = vpop.f32.mrb[0].mxu0
        %v2345 = vadd.f32 %v2266, %v2344
        %v2346 = vpop.f32.mrb[0].mxu0
        %2347 = vmatprep.mubr.bf16.mxu0 0
        %2348 = vmatmul.mubr.bf16.gmra.mrb[0].mxu0 %v2305
        %v2349 = vpop.f32.mrb[0].mxu0
        %v2350 = vadd.f32 %v2271, %v2349
        %v2351 = vpop.f32.mrb[0].mxu0
        %v2352 = vpop.f32.mrb[0].mxu0
        %v2353 = vadd.f32 %v2274, %v2352
        %v2354 = vpop.f32.mrb[0].mxu0
        %2355 = vdwg.mxu0
        %v2356 = vld [vmem:[%s10] sm:$0x1]
        %v2358 = vlaneseq
        %v2359 = vshrl.u32 %v2358, 7
        %v2360 = vsub.s32 0, %v2359
        %v2361 = vrot.slane %v2356, %v2360
        %v2363 = vadd.f32 %v2342, %v2361
        %v2364 = vadd.f32 %v2345, %v2361
        %v2365 = vadd.f32 %v2350, %v2361
        %v2366 = vadd.f32 %v2353, %v2361
        %v2367 = vadd.f32 %v2363, %v965
        %v2368 = vadd.f32 %v2364, %v966
        %v2369 = vadd.f32 %v2365, %v967
        %v2370 = vadd.f32 %v2366, %v968
        %v2371 = vld [vmem:[%s11] sm:$0x1]
        %v2372 = vld [vmem:[%s12] sm:$0x1]
        %2373 = vadd.xlane.f32.xlu0 %v2367
        %v2374 = vpop.xlane.xlu0 %2373
        %2375 = vadd.xlane.f32.xlu0 %v2368
        %v2376 = vpop.xlane.xlu0 %2375
        %2377 = vadd.xlane.f32.xlu0 %v2369
        %v2378 = vpop.xlane.xlu0 %2377
        %2379 = vadd.xlane.f32.xlu0 %v2370
        %v2380 = vpop.xlane.xlu0 %2379
        %v2381 = vmul.f32 %v2374, %v912
        %v2382 = vmul.f32 %v2376, %v912
        %v2383 = vmul.f32 %v2378, %v912
        %v2384 = vmul.f32 %v2380, %v912
        %v2385 = vsub.f32 %v2367, %v2381
        %v2386 = vsub.f32 %v2368, %v2382
        %v2387 = vsub.f32 %v2369, %v2383
        %v2388 = vsub.f32 %v2370, %v2384
        %v2389 = vmul.f32 %v2385, %v2385
        %v2390 = vmul.f32 %v2386, %v2386
        %v2391 = vmul.f32 %v2387, %v2387
        %v2392 = vmul.f32 %v2388, %v2388
        %2393 = vadd.xlane.f32.xlu0 %v2389
        %v2394 = vpop.xlane.xlu0 %2393
        %2395 = vadd.xlane.f32.xlu0 %v2390
        %v2396 = vpop.xlane.xlu0 %2395
        %2397 = vadd.xlane.f32.xlu0 %v2391
        %v2398 = vpop.xlane.xlu0 %2397
        %2399 = vadd.xlane.f32.xlu0 %v2392
        %v2400 = vpop.xlane.xlu0 %2399
        %v2401 = vmul.f32 %v2394, %v912
        %v2402 = vmul.f32 %v2396, %v912
        %v2403 = vmul.f32 %v2398, %v912
        %v2404 = vmul.f32 %v2400, %v912
        %v2405 = vadd.f32 %v2401, 1e-12
        %v2406 = vadd.f32 %v2402, 1e-12
        %v2407 = vadd.f32 %v2403, 1e-12
        %v2408 = vadd.f32 %v2404, 1e-12
        %v2409 = vrsqrt.pop %v2405
        %v2410 = vrsqrt.pop %v2406
        %v2411 = vrsqrt.pop %v2407
        %v2412 = vrsqrt.pop %v2408
        %v2413 = vmul.f32 %v2385, %v2409
        %v2414 = vmul.f32 %v2386, %v2410
        %v2415 = vmul.f32 %v2387, %v2411
        %v2416 = vmul.f32 %v2388, %v2412
        %v2418 = vlaneseq
        %v2419 = vshrl.u32 %v2418, 7
        %v2420 = vsub.s32 0, %v2419
        %v2421 = vrot.slane %v2371, %v2420
        %v2423 = vmul.f32 %v2413, %v2421
        %v2424 = vmul.f32 %v2414, %v2421
        %v2425 = vmul.f32 %v2415, %v2421
        %v2426 = vmul.f32 %v2416, %v2421
        %v2428 = vlaneseq
        %v2429 = vshrl.u32 %v2428, 7
        %v2430 = vsub.s32 0, %v2429
        %v2431 = vrot.slane %v2372, %v2430
        %v2433 = vadd.f32 %v2423, %v2431
        %v2434 = vadd.f32 %v2424, %v2431
        %v2435 = vadd.f32 %v2425, %v2431
        %v2436 = vadd.f32 %v2426, %v2431
        %v2437 = vld [vmem:[#allocation10] sm:$0xff]
        %v2438 = vld [vmem:[#allocation10 + $0x8] sm:$0xff]
        %v2439 = vld [vmem:[#allocation10 + $0x10] sm:$0xff]
        %v2440 = vld [vmem:[#allocation10 + $0x18] sm:$0xff]
        %v2441 = vld [vmem:[#allocation10 + $0x20] sm:$0xff]
        %v2442 = vld [vmem:[#allocation10 + $0x28] sm:$0xff]
        %v2443 = vld [vmem:[#allocation10 + $0x30] sm:$0xff]
        %v2444 = vld [vmem:[#allocation10 + $0x38] sm:$0xff]
        %v2445 = vld [vmem:[#allocation10 + $0x40] sm:$0xff]
        %v2446 = vld [vmem:[#allocation10 + $0x48] sm:$0xff]
        %v2447 = vld [vmem:[#allocation10 + $0x50] sm:$0xff]
        %v2448 = vld [vmem:[#allocation10 + $0x58] sm:$0xff]
        %v2449 = vld [vmem:[#allocation10 + $0x60] sm:$0xff]
        %v2450 = vld [vmem:[#allocation10 + $0x68] sm:$0xff]
        %v2451 = vld [vmem:[#allocation10 + $0x70] sm:$0xff]
        %v2452 = vld [vmem:[#allocation10 + $0x78] sm:$0xff]
        %v2453 = vpack.c.bf16 %v2434, %v2433
        %v2454 = vpack.c.bf16 %v2436, %v2435
        %v2455 = vld [vmem:[%s14] sm:$0x3]
        %v2457 = vlaneseq
        %v2458 = vshrl.u32 %v2457, 7
        %v2459 = vsub.s32 0, %v2458
        %v2460 = vrot.slane %v2455, %v2459
        %v2461 = vlaneseq
        %v2462 = vshrl.u32 %v2461, 7
        %v2463 = vsub.s32 1, %v2462
        %v2464 = vrot.slane %v2455, %v2463
        %v2483 = vunpack.c.l.b16 %v2437
        %v2484 = vunpack.c.h.b16 %v2437
        %v2485 = vunpack.c.l.b16 %v2438
        %v2486 = vunpack.c.h.b16 %v2438
        %v2487 = vunpack.c.l.b16 %v2439
        %v2488 = vunpack.c.h.b16 %v2439
        %v2489 = vunpack.c.l.b16 %v2440
        %v2490 = vunpack.c.h.b16 %v2440
        %v2491 = vunpack.c.l.b16 %v2441
        %v2492 = vunpack.c.h.b16 %v2441
        %v2493 = vunpack.c.l.b16 %v2442
        %v2494 = vunpack.c.h.b16 %v2442
        %v2495 = vunpack.c.l.b16 %v2443
        %v2496 = vunpack.c.h.b16 %v2443
        %v2497 = vunpack.c.l.b16 %v2444
        %v2498 = vunpack.c.h.b16 %v2444
        %v2499 = vunpack.c.l.b16 %v2445
        %v2500 = vunpack.c.h.b16 %v2445
        %v2501 = vunpack.c.l.b16 %v2446
        %v2502 = vunpack.c.h.b16 %v2446
        %v2503 = vunpack.c.l.b16 %v2447
        %v2504 = vunpack.c.h.b16 %v2447
        %v2505 = vunpack.c.l.b16 %v2448
        %v2506 = vunpack.c.h.b16 %v2448
        %v2507 = vunpack.c.l.b16 %v2449
        %v2508 = vunpack.c.h.b16 %v2449
        %v2509 = vunpack.c.l.b16 %v2450
        %v2510 = vunpack.c.h.b16 %v2450
        %v2511 = vunpack.c.l.b16 %v2451
        %v2512 = vunpack.c.h.b16 %v2451
        %v2513 = vunpack.c.l.b16 %v2452
        %v2514 = vunpack.c.h.b16 %v2452
        %v2515 = vpack.c.b16 %v2485, %v2483
        %v2516 = vpack.c.b16 %v2486, %v2484
        %v2517 = vpack.c.b16 %v2489, %v2487
        %v2518 = vpack.c.b16 %v2490, %v2488
        %v2519 = vpack.c.b16 %v2493, %v2491
        %v2520 = vpack.c.b16 %v2494, %v2492
        %v2521 = vpack.c.b16 %v2497, %v2495
        %v2522 = vpack.c.b16 %v2498, %v2496
        %v2523 = vpack.c.b16 %v2501, %v2499
        %v2524 = vpack.c.b16 %v2502, %v2500
        %v2525 = vpack.c.b16 %v2505, %v2503
        %v2526 = vpack.c.b16 %v2506, %v2504
        %v2527 = vpack.c.b16 %v2509, %v2507
        %v2528 = vpack.c.b16 %v2510, %v2508
        %v2529 = vpack.c.b16 %v2513, %v2511
        %v2530 = vpack.c.b16 %v2514, %v2512
        %2547 = vmatprep.subr.bf16.mxu0 %v2516
        %2548 = vmatpush1.bf16.msra.mxu0 %v2515
        %2549 = vmatprep.subr.bf16.mxu0 %v2518
        %2550 = vmatpush1.bf16.msra.mxu0 %v2517
        %2551 = vmatprep.subr.bf16.mxu0 %v2520
        %2552 = vmatpush1.bf16.msra.mxu0 %v2519
        %2553 = vmatprep.subr.bf16.mxu0 %v2522
        %2554 = vmatpush1.bf16.msra.mxu0 %v2521
        %2555 = vmatprep.subr.bf16.mxu0 %v2524
        %2556 = vmatpush1.bf16.msra.mxu0 %v2523
        %2557 = vmatprep.subr.bf16.mxu0 %v2526
        %2558 = vmatpush1.bf16.msra.mxu0 %v2525
        %2559 = vmatprep.subr.bf16.mxu0 %v2528
        %2560 = vmatpush1.bf16.msra.mxu0 %v2527
        %2561 = vmatprep.subr.bf16.mxu0 %v2530
        %2562 = vmatpush1.bf16.msra.mxu0 %v2529
        %2563 = vmatprep.subr.bf16.mxu0 0
        %2564 = vmatpush1.bf16.msra.mxu0 0
        %2565 = vmatprep.subr.bf16.mxu0 0
        %2566 = vmatpush1.bf16.msra.mxu0 0
        %2567 = vmatprep.subr.bf16.mxu0 0
        %2568 = vmatpush1.bf16.msra.mxu0 0
        %2569 = vmatprep.subr.bf16.mxu0 0
        %2570 = vmatpush1.bf16.msra.mxu0 0
        %2571 = vmatprep.subr.bf16.mxu0 0
        %2572 = vmatpush1.bf16.msra.mxu0 0
        %2573 = vmatprep.subr.bf16.mxu0 0
        %2574 = vmatpush1.bf16.msra.mxu0 0
        %2575 = vmatprep.subr.bf16.mxu0 0
        %2576 = vmatpush1.bf16.msra.mxu0 0
        %2577 = vmatprep.subr.bf16.mxu0 0
        %2578 = vmatpush1.bf16.msra.mxu0 0
        %2579 = vmatprep.mubr.bf16.mxu0 0
        %2580 = vmatmul.mubr.bf16.gmra.mrb[0].mxu0 %v2453
        %v2581 = vpop.f32.mrb[0].mxu0
        %v2582 = vadd.f32 %v2460, %v2581
        %v2583 = vpop.f32.mrb[0].mxu0
        %v2584 = vadd.f32 %v2464, %v2583
        %v2585 = vpop.f32.mrb[0].mxu0
        %v2586 = vadd.f32 %v2460, %v2585
        %v2587 = vpop.f32.mrb[0].mxu0
        %v2588 = vadd.f32 %v2464, %v2587
        %2589 = vmatprep.mubr.bf16.mxu0 0
        %2590 = vmatmul.mubr.bf16.gmra.mrb[0].mxu0 %v2454
        %v2591 = vpop.f32.mrb[0].mxu0
        %v2592 = vadd.f32 %v2460, %v2591
        %v2593 = vpop.f32.mrb[0].mxu0
        %v2594 = vadd.f32 %v2464, %v2593
        %v2595 = vpop.f32.mrb[0].mxu0
        %v2596 = vadd.f32 %v2460, %v2595
        %v2597 = vpop.f32.mrb[0].mxu0
        %v2598 = vadd.f32 %v2464, %v2597
        %2599 = vdwg.mxu0
        %v2600 = vmul.f32 %v2582, 0.5
        %v2601 = vmul.f32 %v2584, 0.5
        %v2602 = vmul.f32 %v2586, 0.5
        %v2603 = vmul.f32 %v2588, 0.5
        %v2604 = vmul.f32 %v2592, 0.5
        %v2605 = vmul.f32 %v2594, 0.5
        %v2606 = vmul.f32 %v2596, 0.5
        %v2607 = vmul.f32 %v2598, 0.5
        %v2608 = vmul.f32 %v2582, 0.044715
        %v2609 = vmul.f32 %v2584, 0.044715
        %v2610 = vmul.f32 %v2586, 0.044715
        %v2611 = vmul.f32 %v2588, 0.044715
        %v2612 = vmul.f32 %v2592, 0.044715
        %v2613 = vmul.f32 %v2594, 0.044715
        %v2614 = vmul.f32 %v2596, 0.044715
        %v2615 = vmul.f32 %v2598, 0.044715
        %v2616 = vmul.f32 %v2608, %v2582
        %v2617 = vmul.f32 %v2609, %v2584
        %v2618 = vmul.f32 %v2610, %v2586
        %v2619 = vmul.f32 %v2611, %v2588
        %v2620 = vmul.f32 %v2612, %v2592
        %v2621 = vmul.f32 %v2613, %v2594
        %v2622 = vmul.f32 %v2614, %v2596
        %v2623 = vmul.f32 %v2615, %v2598
        %v2624 = vmul.f32 %v2616, %v2582
        %v2625 = vmul.f32 %v2617, %v2584
        %v2626 = vmul.f32 %v2618, %v2586
        %v2627 = vmul.f32 %v2619, %v2588
        %v2628 = vmul.f32 %v2620, %v2592
        %v2629 = vmul.f32 %v2621, %v2594
        %v2630 = vmul.f32 %v2622, %v2596
        %v2631 = vmul.f32 %v2623, %v2598
        %v2632 = vadd.f32 %v2582, %v2624
        %v2633 = vadd.f32 %v2584, %v2625
        %v2634 = vadd.f32 %v2586, %v2626
        %v2635 = vadd.f32 %v2588, %v2627
        %v2636 = vadd.f32 %v2592, %v2628
        %v2637 = vadd.f32 %v2594, %v2629
        %v2638 = vadd.f32 %v2596, %v2630
        %v2639 = vadd.f32 %v2598, %v2631
        %v2640 = vmul.f32 %v2632, 0.7978846
        %v2641 = vmul.f32 %v2633, 0.7978846
        %v2642 = vmul.f32 %v2634, 0.7978846
        %v2643 = vmul.f32 %v2635, 0.7978846
        %v2644 = vmul.f32 %v2636, 0.7978846
        %v2645 = vmul.f32 %v2637, 0.7978846
        %v2646 = vmul.f32 %v2638, 0.7978846
        %v2647 = vmul.f32 %v2639, 0.7978846
        %v2648 = vtanh.pop %v2640
        %v2649 = vtanh.pop %v2641
        %v2650 = vtanh.pop %v2642
        %v2651 = vtanh.pop %v2643
        %v2652 = vtanh.pop %v2644
        %v2653 = vtanh.pop %v2645
        %v2654 = vtanh.pop %v2646
        %v2655 = vtanh.pop %v2647
        %v2656 = vadd.f32 %v2648, 1.0
        %v2657 = vadd.f32 %v2649, 1.0
        %v2658 = vadd.f32 %v2650, 1.0
        %v2659 = vadd.f32 %v2651, 1.0
        %v2660 = vadd.f32 %v2652, 1.0
        %v2661 = vadd.f32 %v2653, 1.0
        %v2662 = vadd.f32 %v2654, 1.0
        %v2663 = vadd.f32 %v2655, 1.0
        %v2664 = vmul.f32 %v2600, %v2656
        %v2665 = vmul.f32 %v2601, %v2657
        %v2666 = vmul.f32 %v2602, %v2658
        %v2667 = vmul.f32 %v2603, %v2659
        %v2668 = vmul.f32 %v2604, %v2660
        %v2669 = vmul.f32 %v2605, %v2661
        %v2670 = vmul.f32 %v2606, %v2662
        %v2671 = vmul.f32 %v2607, %v2663
        %v2672 = vld [vmem:[#allocation12] sm:$0xf]
        %v2673 = vld [vmem:[#allocation12 + $0x4] sm:$0xf]
        %v2674 = vld [vmem:[#allocation12 + $0x8] sm:$0xf]
        %v2675 = vld [vmem:[#allocation12 + $0xc] sm:$0xf]
        %v2676 = vld [vmem:[#allocation12 + $0x10] sm:$0xf]
        %v2677 = vld [vmem:[#allocation12 + $0x14] sm:$0xf]
        %v2678 = vld [vmem:[#allocation12 + $0x18] sm:$0xf]
        %v2679 = vld [vmem:[#allocation12 + $0x1c] sm:$0xf]
        %v2680 = vld [vmem:[#allocation12 + $0x20] sm:$0xf]
        %v2681 = vld [vmem:[#allocation12 + $0x24] sm:$0xf]
        %v2682 = vld [vmem:[#allocation12 + $0x28] sm:$0xf]
        %v2683 = vld [vmem:[#allocation12 + $0x2c] sm:$0xf]
        %v2684 = vld [vmem:[#allocation12 + $0x30] sm:$0xf]
        %v2685 = vld [vmem:[#allocation12 + $0x34] sm:$0xf]
        %v2686 = vld [vmem:[#allocation12 + $0x38] sm:$0xf]
        %v2687 = vld [vmem:[#allocation12 + $0x3c] sm:$0xf]
        %v2688 = vld [vmem:[#allocation12 + $0x40] sm:$0xf]
        %v2689 = vld [vmem:[#allocation12 + $0x44] sm:$0xf]
        %v2690 = vld [vmem:[#allocation12 + $0x48] sm:$0xf]
        %v2691 = vld [vmem:[#allocation12 + $0x4c] sm:$0xf]
        %v2692 = vld [vmem:[#allocation12 + $0x50] sm:$0xf]
        %v2693 = vld [vmem:[#allocation12 + $0x54] sm:$0xf]
        %v2694 = vld [vmem:[#allocation12 + $0x58] sm:$0xf]
        %v2695 = vld [vmem:[#allocation12 + $0x5c] sm:$0xf]
        %v2696 = vld [vmem:[#allocation12 + $0x60] sm:$0xf]
        %v2697 = vld [vmem:[#allocation12 + $0x64] sm:$0xf]
        %v2698 = vld [vmem:[#allocation12 + $0x68] sm:$0xf]
        %v2699 = vld [vmem:[#allocation12 + $0x6c] sm:$0xf]
        %v2700 = vld [vmem:[#allocation12 + $0x70] sm:$0xf]
        %v2701 = vld [vmem:[#allocation12 + $0x74] sm:$0xf]
        %v2702 = vld [vmem:[#allocation12 + $0x78] sm:$0xf]
        %v2703 = vld [vmem:[#allocation12 + $0x7c] sm:$0xf]
        %v2704 = vpack.c.bf16 %v2666, %v2664
        %v2705 = vpack.c.bf16 %v2667, %v2665
        %v2706 = vpack.c.bf16 %v2670, %v2668
        %v2707 = vpack.c.bf16 %v2671, %v2669
        %v2708 = vld [vmem:[%s16] sm:$0x1]
        %v2710 = vlaneseq
        %v2711 = vshrl.u32 %v2710, 7
        %v2712 = vsub.s32 0, %v2711
        %v2713 = vrot.slane %v2708, %v2712
        %v2747 = vunpack.c.l.b16 %v2672
        %v2748 = vunpack.c.l.b16 %v2673
        %v2749 = vunpack.c.l.b16 %v2674
        %v2750 = vunpack.c.l.b16 %v2675
        %v2751 = vunpack.c.l.b16 %v2676
        %v2752 = vunpack.c.l.b16 %v2677
        %v2753 = vunpack.c.l.b16 %v2678
        %v2754 = vunpack.c.l.b16 %v2679
        %v2755 = vunpack.c.l.b16 %v2680
        %v2756 = vunpack.c.l.b16 %v2681
        %v2757 = vunpack.c.l.b16 %v2682
        %v2758 = vunpack.c.l.b16 %v2683
        %v2759 = vunpack.c.l.b16 %v2684
        %v2760 = vunpack.c.l.b16 %v2685
        %v2761 = vunpack.c.l.b16 %v2686
        %v2762 = vunpack.c.l.b16 %v2687
        %v2763 = vunpack.c.l.b16 %v2688
        %v2764 = vunpack.c.l.b16 %v2689
        %v2765 = vunpack.c.l.b16 %v2690
        %v2766 = vunpack.c.l.b16 %v2691
        %v2767 = vunpack.c.l.b16 %v2692
        %v2768 = vunpack.c.l.b16 %v2693
        %v2769 = vunpack.c.l.b16 %v2694
        %v2770 = vunpack.c.l.b16 %v2695
        %v2771 = vunpack.c.l.b16 %v2696
        %v2772 = vunpack.c.l.b16 %v2697
        %v2773 = vunpack.c.l.b16 %v2698
        %v2774 = vunpack.c.l.b16 %v2699
        %v2775 = vunpack.c.l.b16 %v2700
        %v2776 = vunpack.c.l.b16 %v2701
        %v2777 = vunpack.c.l.b16 %v2702
        %v2778 = vunpack.c.l.b16 %v2703
        %v2779 = vpack.c.b16 %v2748, %v2747
        %v2780 = vpack.c.b16 %v2750, %v2749
        %v2781 = vpack.c.b16 %v2752, %v2751
        %v2782 = vpack.c.b16 %v2754, %v2753
        %v2783 = vpack.c.b16 %v2756, %v2755
        %v2784 = vpack.c.b16 %v2758, %v2757
        %v2785 = vpack.c.b16 %v2760, %v2759
        %v2786 = vpack.c.b16 %v2762, %v2761
        %v2787 = vpack.c.b16 %v2764, %v2763
        %v2788 = vpack.c.b16 %v2766, %v2765
        %v2789 = vpack.c.b16 %v2768, %v2767
        %v2790 = vpack.c.b16 %v2770, %v2769
        %v2791 = vpack.c.b16 %v2772, %v2771
        %v2792 = vpack.c.b16 %v2774, %v2773
        %v2793 = vpack.c.b16 %v2776, %v2775
        %v2794 = vpack.c.b16 %v2778, %v2777
        %2811 = vmatprep.subr.bf16.mxu0 0
        %2812 = vmatpush1.bf16.msra.mxu0 %v2779
        %2813 = vmatprep.subr.bf16.mxu0 0
        %2814 = vmatpush1.bf16.msra.mxu0 %v2780
        %2815 = vmatprep.subr.bf16.mxu0 0
        %2816 = vmatpush1.bf16.msra.mxu0 %v2781
        %2817 = vmatprep.subr.bf16.mxu0 0
        %2818 = vmatpush1.bf16.msra.mxu0 %v2782
        %2819 = vmatprep.subr.bf16.mxu0 0
        %2820 = vmatpush1.bf16.msra.mxu0 %v2783
        %2821 = vmatprep.subr.bf16.mxu0 0
        %2822 = vmatpush1.bf16.msra.mxu0 %v2784
        %2823 = vmatprep.subr.bf16.mxu0 0
        %2824 = vmatpush1.bf16.msra.mxu0 %v2785
        %2825 = vmatprep.subr.bf16.mxu0 0
        %2826 = vmatpush1.bf16.msra.mxu0 %v2786
        %2827 = vmatprep.subr.bf16.mxu0 0
        %2828 = vmatpush1.bf16.msra.mxu0 %v2787
        %2829 = vmatprep.subr.bf16.mxu0 0
        %2830 = vmatpush1.bf16.msra.mxu0 %v2788
        %2831 = vmatprep.subr.bf16.mxu0 0
        %2832 = vmatpush1.bf16.msra.mxu0 %v2789
        %2833 = vmatprep.subr.bf16.mxu0 0
        %2834 = vmatpush1.bf16.msra.mxu0 %v2790
        %2835 = vmatprep.subr.bf16.mxu0 0
        %2836 = vmatpush1.bf16.msra.mxu0 %v2791
        %2837 = vmatprep.subr.bf16.mxu0 0
        %2838 = vmatpush1.bf16.msra.mxu0 %v2792
        %2839 = vmatprep.subr.bf16.mxu0 0
        %2840 = vmatpush1.bf16.msra.mxu0 %v2793
        %2841 = vmatprep.subr.bf16.mxu0 0
        %2842 = vmatpush1.bf16.msra.mxu0 %v2794
        %2843 = vmatprep.mubr.bf16.mxu0 %v2705
        %2844 = vmatmul.mubr.bf16.gmra.mrb[0].mxu0 %v2704
        %v2845 = vpop.f32.mrb[0].mxu0
        %v2846 = vadd.f32 %v2713, %v2845
        %v2847 = vpop.f32.mrb[0].mxu0
        %v2848 = vpop.f32.mrb[0].mxu0
        %v2849 = vadd.f32 %v2713, %v2848
        %v2850 = vpop.f32.mrb[0].mxu0
        %2851 = vmatprep.mubr.bf16.mxu0 %v2707
        %2852 = vmatmul.mubr.bf16.gmra.mrb[0].mxu0 %v2706
        %v2853 = vpop.f32.mrb[0].mxu0
        %v2854 = vadd.f32 %v2713, %v2853
        %v2855 = vpop.f32.mrb[0].mxu0
        %v2856 = vpop.f32.mrb[0].mxu0
        %v2857 = vadd.f32 %v2713, %v2856
        %v2858 = vpop.f32.mrb[0].mxu0
        %2859 = vdwg.mxu0
        %v2860 = vadd.f32 %v2846, %v2433
        %v2861 = vadd.f32 %v2849, %v2434
        %v2862 = vadd.f32 %v2854, %v2435
        %v2863 = vadd.f32 %v2857, %v2436
        %v2864 = vld [vmem:[%s17] sm:$0x1]
        %v2865 = vld [vmem:[%s18] sm:$0x1]
        %2866 = vadd.xlane.f32.xlu0 %v2860
        %v2867 = vpop.xlane.xlu0 %2866
        %2868 = vadd.xlane.f32.xlu0 %v2861
        %v2869 = vpop.xlane.xlu0 %2868
        %2870 = vadd.xlane.f32.xlu0 %v2862
        %v2871 = vpop.xlane.xlu0 %2870
        %2872 = vadd.xlane.f32.xlu0 %v2863
        %v2873 = vpop.xlane.xlu0 %2872
        %v2874 = vmul.f32 %v2867, %v912
        %v2875 = vmul.f32 %v2869, %v912
        %v2876 = vmul.f32 %v2871, %v912
        %v2877 = vmul.f32 %v2873, %v912
        %v2878 = vsub.f32 %v2860, %v2874
        %v2879 = vsub.f32 %v2861, %v2875
        %v2880 = vsub.f32 %v2862, %v2876
        %v2881 = vsub.f32 %v2863, %v2877
        %v2882 = vmul.f32 %v2878, %v2878
        %v2883 = vmul.f32 %v2879, %v2879
        %v2884 = vmul.f32 %v2880, %v2880
        %v2885 = vmul.f32 %v2881, %v2881
        %2886 = vadd.xlane.f32.xlu0 %v2882
        %v2887 = vpop.xlane.xlu0 %2886
        %2888 = vadd.xlane.f32.xlu0 %v2883
        %v2889 = vpop.xlane.xlu0 %2888
        %2890 = vadd.xlane.f32.xlu0 %v2884
        %v2891 = vpop.xlane.xlu0 %2890
        %2892 = vadd.xlane.f32.xlu0 %v2885
        %v2893 = vpop.xlane.xlu0 %2892
        %v2894 = vmul.f32 %v2887, %v912
        %v2895 = vmul.f32 %v2889, %v912
        %v2896 = vmul.f32 %v2891, %v912
        %v2897 = vmul.f32 %v2893, %v912
        %v2898 = vadd.f32 %v2894, 1e-12
        %v2899 = vadd.f32 %v2895, 1e-12
        %v2900 = vadd.f32 %v2896, 1e-12
        %v2901 = vadd.f32 %v2897, 1e-12
        %v2902 = vrsqrt.pop %v2898
        %v2903 = vrsqrt.pop %v2899
        %v2904 = vrsqrt.pop %v2900
        %v2905 = vrsqrt.pop %v2901
        %v2906 = vmul.f32 %v2878, %v2902
        %v2907 = vmul.f32 %v2879, %v2903
        %v2908 = vmul.f32 %v2880, %v2904
        %v2909 = vmul.f32 %v2881, %v2905
        %v2911 = vlaneseq
        %v2912 = vshrl.u32 %v2911, 7
        %v2913 = vsub.s32 0, %v2912
        %v2914 = vrot.slane %v2864, %v2913
        %v2916 = vmul.f32 %v2906, %v2914
        %v2917 = vmul.f32 %v2907, %v2914
        %v2918 = vmul.f32 %v2908, %v2914
        %v2919 = vmul.f32 %v2909, %v2914
        %v2921 = vlaneseq
        %v2922 = vshrl.u32 %v2921, 7
        %v2923 = vsub.s32 0, %v2922
        %v2924 = vrot.slane %v2865, %v2923
        %v2926 = vadd.f32 %v2916, %v2924
        %v2927 = vadd.f32 %v2917, %v2924
        %v2928 = vadd.f32 %v2918, %v2924
        %v2929 = vadd.f32 %v2919, %v2924
        %s2930 = scalar_lea.vmem [#allocation7], 192
        %v2931 = vld [vmem:[%s2930] sm:$0xff]
        %v2932 = vld [vmem:[%s2930 + $0x8] sm:$0xf]
        %v2933 = vld [vmem:[%s2930 + $0xc] sm:$0xff]
        %v2934 = vld [vmem:[%s2930 + $0x14] sm:$0xf]
        %v2935 = vld [vmem:[%s2930 + $0x18] sm:$0xff]
        %v2936 = vld [vmem:[%s2930 + $0x20] sm:$0xf]
        %v2937 = vld [vmem:[%s2930 + $0x24] sm:$0xff]
        %v2938 = vld [vmem:[%s2930 + $0x2c] sm:$0xf]
        %v2939 = vld [vmem:[%s2930 + $0x30] sm:$0xff]
        %v2940 = vld [vmem:[%s2930 + $0x38] sm:$0xf]
        %v2941 = vld [vmem:[%s2930 + $0x3c] sm:$0xff]
        %v2942 = vld [vmem:[%s2930 + $0x44] sm:$0xf]
        %v2943 = vld [vmem:[%s2930 + $0x48] sm:$0xff]
        %v2944 = vld [vmem:[%s2930 + $0x50] sm:$0xf]
        %v2945 = vld [vmem:[%s2930 + $0x54] sm:$0xff]
        %v2946 = vld [vmem:[%s2930 + $0x5c] sm:$0xf]
        %v2947 = vld [vmem:[%s2930 + $0x60] sm:$0xff]
        %v2948 = vld [vmem:[%s2930 + $0x68] sm:$0xf]
        %v2949 = vld [vmem:[%s2930 + $0x6c] sm:$0xff]
        %v2950 = vld [vmem:[%s2930 + $0x74] sm:$0xf]
        %v2951 = vld [vmem:[%s2930 + $0x78] sm:$0xff]
        %v2952 = vld [vmem:[%s2930 + $0x80] sm:$0xf]
        %v2953 = vld [vmem:[%s2930 + $0x84] sm:$0xff]
        %v2954 = vld [vmem:[%s2930 + $0x8c] sm:$0xf]
        %v2955 = vld [vmem:[%s2930 + $0x90] sm:$0xff]
        %v2956 = vld [vmem:[%s2930 + $0x98] sm:$0xf]
        %v2957 = vld [vmem:[%s2930 + $0x9c] sm:$0xff]
        %v2958 = vld [vmem:[%s2930 + $0xa4] sm:$0xf]
        %v2959 = vld [vmem:[%s2930 + $0xa8] sm:$0xff]
        %v2960 = vld [vmem:[%s2930 + $0xb0] sm:$0xf]
        %v2961 = vld [vmem:[%s2930 + $0xb4] sm:$0xff]
        %v2962 = vld [vmem:[%s2930 + $0xbc] sm:$0xf]
        %v2963 = vpack.c.bf16 %v2927, %v2926
        %v2964 = vpack.c.bf16 %v2929, %v2928
        %s2965 = scalar_lea.vmem %s8, 3
        %v2966 = vld [vmem:[%s2965] sm:$0x7]
        %v2968 = vlaneseq
        %v2969 = vshrl.u32 %v2968, 7
        %v2970 = vsub.s32 0, %v2969
        %v2971 = vrot.slane %v2966, %v2970
        %v2972 = vlaneseq
        %v2973 = vshrl.u32 %v2972, 7
        %v2974 = vsub.s32 1, %v2973
        %v2975 = vrot.slane %v2966, %v2974
        %v2976 = vlaneseq
        %v2977 = vshrl.u32 %v2976, 7
        %v2978 = vsub.s32 2, %v2977
        %v2979 = vrot.slane %v2966, %v2978
        %v3015 = vunpack.c.l.b16 %v2931
        %v3016 = vunpack.c.h.b16 %v2931
        %v3017 = vunpack.c.l.b16 %v2932
        %v3018 = vunpack.c.l.b16 %v2933
        %v3019 = vunpack.c.h.b16 %v2933
        %v3020 = vunpack.c.l.b16 %v2934
        %v3021 = vunpack.c.l.b16 %v2935
        %v3022 = vunpack.c.h.b16 %v2935
        %v3023 = vunpack.c.l.b16 %v2936
        %v3024 = vunpack.c.l.b16 %v2937
        %v3025 = vunpack.c.h.b16 %v2937
        %v3026 = vunpack.c.l.b16 %v2938
        %v3027 = vunpack.c.l.b16 %v2939
        %v3028 = vunpack.c.h.b16 %v2939
        %v3029 = vunpack.c.l.b16 %v2940
        %v3030 = vunpack.c.l.b16 %v2941
        %v3031 = vunpack.c.h.b16 %v2941
        %v3032 = vunpack.c.l.b16 %v2942
        %v3033 = vunpack.c.l.b16 %v2943
        %v3034 = vunpack.c.h.b16 %v2943
        %v3035 = vunpack.c.l.b16 %v2944
        %v3036 = vunpack.c.l.b16 %v2945
        %v3037 = vunpack.c.h.b16 %v2945
        %v3038 = vunpack.c.l.b16 %v2946
        %v3039 = vunpack.c.l.b16 %v2947
        %v3040 = vunpack.c.h.b16 %v2947
        %v3041 = vunpack.c.l.b16 %v2948
        %v3042 = vunpack.c.l.b16 %v2949
        %v3043 = vunpack.c.h.b16 %v2949
        %v3044 = vunpack.c.l.b16 %v2950
        %v3045 = vunpack.c.l.b16 %v2951
        %v3046 = vunpack.c.h.b16 %v2951
        %v3047 = vunpack.c.l.b16 %v2952
        %v3048 = vunpack.c.l.b16 %v2953
        %v3049 = vunpack.c.h.b16 %v2953
        %v3050 = vunpack.c.l.b16 %v2954
        %v3051 = vunpack.c.l.b16 %v2955
        %v3052 = vunpack.c.h.b16 %v2955
        %v3053 = vunpack.c.l.b16 %v2956
        %v3054 = vunpack.c.l.b16 %v2957
        %v3055 = vunpack.c.h.b16 %v2957
        %v3056 = vunpack.c.l.b16 %v2958
        %v3057 = vunpack.c.l.b16 %v2959
        %v3058 = vunpack.c.h.b16 %v2959
        %v3059 = vunpack.c.l.b16 %v2960
        %v3060 = vunpack.c.l.b16 %v2961
        %v3061 = vunpack.c.h.b16 %v2961
        %v3062 = vunpack.c.l.b16 %v2962
        %v3063 = vpack.c.b16 %v3018, %v3015
        %v3064 = vpack.c.b16 %v3019, %v3016
        %v3065 = vpack.c.b16 %v3020, %v3017
        %v3066 = vpack.c.b16 %v3024, %v3021
        %v3067 = vpack.c.b16 %v3025, %v3022
        %v3068 = vpack.c.b16 %v3026, %v3023
        %v3069 = vpack.c.b16 %v3030, %v3027
        %v3070 = vpack.c.b16 %v3031, %v3028
        %v3071 = vpack.c.b16 %v3032, %v3029
        %v3072 = vpack.c.b16 %v3036, %v3033
        %v3073 = vpack.c.b16 %v3037, %v3034
        %v3074 = vpack.c.b16 %v3038, %v3035
        %v3075 = vpack.c.b16 %v3042, %v3039
        %v3076 = vpack.c.b16 %v3043, %v3040
        %v3077 = vpack.c.b16 %v3044, %v3041
        %v3078 = vpack.c.b16 %v3048, %v3045
        %v3079 = vpack.c.b16 %v3049, %v3046
        %v3080 = vpack.c.b16 %v3050, %v3047
        %v3081 = vpack.c.b16 %v3054, %v3051
        %v3082 = vpack.c.b16 %v3055, %v3052
        %v3083 = vpack.c.b16 %v3056, %v3053
        %v3084 = vpack.c.b16 %v3060, %v3057
        %v3085 = vpack.c.b16 %v3061, %v3058
        %v3086 = vpack.c.b16 %v3062, %v3059
        %3111 = vmatprep.subr.bf16.mxu0 %v3064
        %3112 = vmatpush1.bf16.msra.mxu0 %v3063
        %3113 = vmatprep.subr.bf16.mxu0 %v3067
        %3114 = vmatpush1.bf16.msra.mxu0 %v3066
        %3115 = vmatprep.subr.bf16.mxu0 %v3070
        %3116 = vmatpush1.bf16.msra.mxu0 %v3069
        %3117 = vmatprep.subr.bf16.mxu0 %v3073
        %3118 = vmatpush1.bf16.msra.mxu0 %v3072
        %3119 = vmatprep.subr.bf16.mxu0 %v3076
        %3120 = vmatpush1.bf16.msra.mxu0 %v3075
        %3121 = vmatprep.subr.bf16.mxu0 %v3079
        %3122 = vmatpush1.bf16.msra.mxu0 %v3078
        %3123 = vmatprep.subr.bf16.mxu0 %v3082
        %3124 = vmatpush1.bf16.msra.mxu0 %v3081
        %3125 = vmatprep.subr.bf16.mxu0 %v3085
        %3126 = vmatpush1.bf16.msra.mxu0 %v3084
        %3127 = vmatprep.subr.bf16.mxu0 0
        %3128 = vmatpush1.bf16.msra.mxu0 0
        %3129 = vmatprep.subr.bf16.mxu0 0
        %3130 = vmatpush1.bf16.msra.mxu0 0
        %3131 = vmatprep.subr.bf16.mxu0 0
        %3132 = vmatpush1.bf16.msra.mxu0 0
        %3133 = vmatprep.subr.bf16.mxu0 0
        %3134 = vmatpush1.bf16.msra.mxu0 0
        %3135 = vmatprep.subr.bf16.mxu0 0
        %3136 = vmatpush1.bf16.msra.mxu0 0
        %3137 = vmatprep.subr.bf16.mxu0 0
        %3138 = vmatpush1.bf16.msra.mxu0 0
        %3139 = vmatprep.subr.bf16.mxu0 0
        %3140 = vmatpush1.bf16.msra.mxu0 0
        %3141 = vmatprep.subr.bf16.mxu0 0
        %3142 = vmatpush1.bf16.msra.mxu0 0
        %3143 = vmatprep.mubr.bf16.mxu0 0
        %3144 = vmatmul.mubr.bf16.gmra.mrb[0].mxu0 %v2963
        %v3145 = vpop.f32.mrb[0].mxu0
        %v3146 = vadd.f32 %v2971, %v3145
        %v3147 = vpop.f32.mrb[0].mxu0
        %v3148 = vadd.f32 %v2975, %v3147
        %v3149 = vpop.f32.mrb[0].mxu0
        %v3150 = vadd.f32 %v2971, %v3149
        %v3151 = vpop.f32.mrb[0].mxu0
        %v3152 = vadd.f32 %v2975, %v3151
        %3153 = vmatprep.mubr.bf16.mxu0 0
        %3154 = vmatmul.mubr.bf16.gmra.mrb[0].mxu0 %v2964
        %v3155 = vpop.f32.mrb[0].mxu0
        %v3156 = vadd.f32 %v2971, %v3155
        %v3157 = vpop.f32.mrb[0].mxu0
        %v3158 = vadd.f32 %v2975, %v3157
        %v3159 = vpop.f32.mrb[0].mxu0
        %v3160 = vadd.f32 %v2971, %v3159
        %v3161 = vpop.f32.mrb[0].mxu0
        %v3162 = vadd.f32 %v2975, %v3161
        %3163 = vdwg.mxu0
        %3164 = vmatprep.subr.bf16.mxu0 0
        %3165 = vmatpush1.bf16.msra.mxu0 %v3065
        %3166 = vmatprep.subr.bf16.mxu0 0
        %3167 = vmatpush1.bf16.msra.mxu0 %v3068
        %3168 = vmatprep.subr.bf16.mxu0 0
        %3169 = vmatpush1.bf16.msra.mxu0 %v3071
        %3170 = vmatprep.subr.bf16.mxu0 0
        %3171 = vmatpush1.bf16.msra.mxu0 %v3074
        %3172 = vmatprep.subr.bf16.mxu0 0
        %3173 = vmatpush1.bf16.msra.mxu0 %v3077
        %3174 = vmatprep.subr.bf16.mxu0 0
        %3175 = vmatpush1.bf16.msra.mxu0 %v3080
        %3176 = vmatprep.subr.bf16.mxu0 0
        %3177 = vmatpush1.bf16.msra.mxu0 %v3083
        %3178 = vmatprep.subr.bf16.mxu0 0
        %3179 = vmatpush1.bf16.msra.mxu0 %v3086
        %3180 = vmatprep.subr.bf16.mxu0 0
        %3181 = vmatpush1.bf16.msra.mxu0 0
        %3182 = vmatprep.subr.bf16.mxu0 0
        %3183 = vmatpush1.bf16.msra.mxu0 0
        %3184 = vmatprep.subr.bf16.mxu0 0
        %3185 = vmatpush1.bf16.msra.mxu0 0
        %3186 = vmatprep.subr.bf16.mxu0 0
        %3187 = vmatpush1.bf16.msra.mxu0 0
        %3188 = vmatprep.subr.bf16.mxu0 0
        %3189 = vmatpush1.bf16.msra.mxu0 0
        %3190 = vmatprep.subr.bf16.mxu0 0
        %3191 = vmatpush1.bf16.msra.mxu0 0
        %3192 = vmatprep.subr.bf16.mxu0 0
        %3193 = vmatpush1.bf16.msra.mxu0 0
        %3194 = vmatprep.subr.bf16.mxu0 0
        %3195 = vmatpush1.bf16.msra.mxu0 0
        %3196 = vmatprep.mubr.bf16.mxu0 0
        %3197 = vmatmul.mubr.bf16.gmra.mrb[0].mxu0 %v2963
        %v3198 = vpop.f32.mrb[0].mxu0
        %v3199 = vadd.f32 %v2979, %v3198
        %v3200 = vpop.f32.mrb[0].mxu0
        %v3201 = vpop.f32.mrb[0].mxu0
        %v3202 = vadd.f32 %v2979, %v3201
        %v3203 = vpop.f32.mrb[0].mxu0
        %3204 = vmatprep.mubr.bf16.mxu0 0
        %3205 = vmatmul.mubr.bf16.gmra.mrb[0].mxu0 %v2964
        %v3206 = vpop.f32.mrb[0].mxu0
        %v3207 = vadd.f32 %v2979, %v3206
        %v3208 = vpop.f32.mrb[0].mxu0
        %v3209 = vpop.f32.mrb[0].mxu0
        %v3210 = vadd.f32 %v2979, %v3209
        %v3211 = vpop.f32.mrb[0].mxu0
        %3212 = vdwg.mxu0
        %v3213 = vpack.c.bf16 %v3146, %v3146
        %v3214 = vpack.c.bf16 %v3150, %v3150
        %v3215 = vpack.c.bf16 %v3156, %v3156
        %v3216 = vpack.c.bf16 %v3160, %v3160
        %v3217 = vpack.c.bf16 %v3148, %v3148
        %v3218 = vpack.c.bf16 %v3152, %v3152
        %v3219 = vpack.c.bf16 %v3158, %v3158
        %v3220 = vpack.c.bf16 %v3162, %v3162
        %v3222 = vsel %vm1262, %v3213, 0
        %v3225 = vsel %vm1262, %v3217, 0
        %3227 = vmatprep.subr.bf16.mxu0 0
        %3228 = vmatpush1.bf16.xpose.msra.mxu0 %v3225
        %3229 = vmatprep.subr.bf16.mxu0 0
        %3230 = vmatpush1.bf16.xpose.msra.mxu0 0
        %3231 = vmatprep.subr.bf16.mxu0 0
        %3232 = vmatpush1.bf16.xpose.msra.mxu0 0
        %3233 = vmatprep.subr.bf16.mxu0 0
        %3234 = vmatpush1.bf16.xpose.msra.mxu0 0
        %3235 = vmatprep.subr.bf16.mxu0 0
        %3236 = vmatpush1.bf16.xpose.msra.mxu0 0
        %3237 = vmatprep.subr.bf16.mxu0 0
        %3238 = vmatpush1.bf16.xpose.msra.mxu0 0
        %3239 = vmatprep.subr.bf16.mxu0 0
        %3240 = vmatpush1.bf16.xpose.msra.mxu0 0
        %3241 = vmatprep.subr.bf16.mxu0 0
        %3242 = vmatpush1.bf16.xpose.msra.mxu0 0
        %3243 = vmatprep.subr.bf16.mxu0 0
        %3244 = vmatpush1.bf16.xpose.msra.mxu0 0
        %3245 = vmatprep.subr.bf16.mxu0 0
        %3246 = vmatpush1.bf16.xpose.msra.mxu0 0
        %3247 = vmatprep.subr.bf16.mxu0 0
        %3248 = vmatpush1.bf16.xpose.msra.mxu0 0
        %3249 = vmatprep.subr.bf16.mxu0 0
        %3250 = vmatpush1.bf16.xpose.msra.mxu0 0
        %3251 = vmatprep.subr.bf16.mxu0 0
        %3252 = vmatpush1.bf16.xpose.msra.mxu0 0
        %3253 = vmatprep.subr.bf16.mxu0 0
        %3254 = vmatpush1.bf16.xpose.msra.mxu0 0
        %3255 = vmatprep.subr.bf16.mxu0 0
        %3256 = vmatpush1.bf16.xpose.msra.mxu0 0
        %3257 = vmatprep.subr.bf16.mxu0 0
        %3258 = vmatpush1.bf16.xpose.msra.mxu0 0
        %3259 = vmatprep.mubr.bf16.mxu0 0
        %3260 = vmatmul.mubr.bf16.gmra.mrb[0].mxu0 %v3222
        %v3261 = vpop.f32.mrb[0].mxu0
        %v3262 = vadd.f32 0.0, %v3261
        %v3263 = vpop.f32.mrb[0].mxu0
        %v3264 = vpop.f32.mrb[0].mxu0
        %v3265 = vpop.f32.mrb[0].mxu0
        %3266 = vdwg.mxu0
        %v3268 = vsel %vm1262, %v3214, 0
        %v3271 = vsel %vm1262, %v3218, 0
        %3273 = vmatprep.subr.bf16.mxu0 0
        %3274 = vmatpush1.bf16.xpose.msra.mxu0 %v3271
        %3275 = vmatprep.subr.bf16.mxu0 0
        %3276 = vmatpush1.bf16.xpose.msra.mxu0 0
        %3277 = vmatprep.subr.bf16.mxu0 0
        %3278 = vmatpush1.bf16.xpose.msra.mxu0 0
        %3279 = vmatprep.subr.bf16.mxu0 0
        %3280 = vmatpush1.bf16.xpose.msra.mxu0 0
        %3281 = vmatprep.subr.bf16.mxu0 0
        %3282 = vmatpush1.bf16.xpose.msra.mxu0 0
        %3283 = vmatprep.subr.bf16.mxu0 0
        %3284 = vmatpush1.bf16.xpose.msra.mxu0 0
        %3285 = vmatprep.subr.bf16.mxu0 0
        %3286 = vmatpush1.bf16.xpose.msra.mxu0 0
        %3287 = vmatprep.subr.bf16.mxu0 0
        %3288 = vmatpush1.bf16.xpose.msra.mxu0 0
        %3289 = vmatprep.subr.bf16.mxu0 0
        %3290 = vmatpush1.bf16.xpose.msra.mxu0 0
        %3291 = vmatprep.subr.bf16.mxu0 0
        %3292 = vmatpush1.bf16.xpose.msra.mxu0 0
        %3293 = vmatprep.subr.bf16.mxu0 0
        %3294 = vmatpush1.bf16.xpose.msra.mxu0 0
        %3295 = vmatprep.subr.bf16.mxu0 0
        %3296 = vmatpush1.bf16.xpose.msra.mxu0 0
        %3297 = vmatprep.subr.bf16.mxu0 0
        %3298 = vmatpush1.bf16.xpose.msra.mxu0 0
        %3299 = vmatprep.subr.bf16.mxu0 0
        %3300 = vmatpush1.bf16.xpose.msra.mxu0 0
        %3301 = vmatprep.subr.bf16.mxu0 0
        %3302 = vmatpush1.bf16.xpose.msra.mxu0 0
        %3303 = vmatprep.subr.bf16.mxu0 0
        %3304 = vmatpush1.bf16.xpose.msra.mxu0 0
        %3305 = vmatprep.mubr.bf16.mxu0 0
        %3306 = vmatmul.mubr.bf16.gmra.mrb[0].mxu0 %v3268
        %v3307 = vpop.f32.mrb[0].mxu0
        %v3308 = vadd.f32 0.0, %v3307
        %v3309 = vpop.f32.mrb[0].mxu0
        %v3310 = vpop.f32.mrb[0].mxu0
        %v3311 = vpop.f32.mrb[0].mxu0
        %3312 = vdwg.mxu0
        %v3314 = vsel %vm1262, %v3215, 0
        %v3317 = vsel %vm1262, %v3219, 0
        %3319 = vmatprep.subr.bf16.mxu0 0
        %3320 = vmatpush1.bf16.xpose.msra.mxu0 %v3317
        %3321 = vmatprep.subr.bf16.mxu0 0
        %3322 = vmatpush1.bf16.xpose.msra.mxu0 0
        %3323 = vmatprep.subr.bf16.mxu0 0
        %3324 = vmatpush1.bf16.xpose.msra.mxu0 0
        %3325 = vmatprep.subr.bf16.mxu0 0
        %3326 = vmatpush1.bf16.xpose.msra.mxu0 0
        %3327 = vmatprep.subr.bf16.mxu0 0
        %3328 = vmatpush1.bf16.xpose.msra.mxu0 0
        %3329 = vmatprep.subr.bf16.mxu0 0
        %3330 = vmatpush1.bf16.xpose.msra.mxu0 0
        %3331 = vmatprep.subr.bf16.mxu0 0
        %3332 = vmatpush1.bf16.xpose.msra.mxu0 0
        %3333 = vmatprep.subr.bf16.mxu0 0
        %3334 = vmatpush1.bf16.xpose.msra.mxu0 0
        %3335 = vmatprep.subr.bf16.mxu0 0
        %3336 = vmatpush1.bf16.xpose.msra.mxu0 0
        %3337 = vmatprep.subr.bf16.mxu0 0
        %3338 = vmatpush1.bf16.xpose.msra.mxu0 0
        %3339 = vmatprep.subr.bf16.mxu0 0
        %3340 = vmatpush1.bf16.xpose.msra.mxu0 0
        %3341 = vmatprep.subr.bf16.mxu0 0
        %3342 = vmatpush1.bf16.xpose.msra.mxu0 0
        %3343 = vmatprep.subr.bf16.mxu0 0
        %3344 = vmatpush1.bf16.xpose.msra.mxu0 0
        %3345 = vmatprep.subr.bf16.mxu0 0
        %3346 = vmatpush1.bf16.xpose.msra.mxu0 0
        %3347 = vmatprep.subr.bf16.mxu0 0
        %3348 = vmatpush1.bf16.xpose.msra.mxu0 0
        %3349 = vmatprep.subr.bf16.mxu0 0
        %3350 = vmatpush1.bf16.xpose.msra.mxu0 0
        %3351 = vmatprep.mubr.bf16.mxu0 0
        %3352 = vmatmul.mubr.bf16.gmra.mrb[0].mxu0 %v3314
        %v3353 = vpop.f32.mrb[0].mxu0
        %v3354 = vadd.f32 0.0, %v3353
        %v3355 = vpop.f32.mrb[0].mxu0
        %v3356 = vpop.f32.mrb[0].mxu0
        %v3357 = vpop.f32.mrb[0].mxu0
        %3358 = vdwg.mxu0
        %v3360 = vsel %vm1262, %v3216, 0
        %v3363 = vsel %vm1262, %v3220, 0
        %3365 = vmatprep.subr.bf16.mxu0 0
        %3366 = vmatpush1.bf16.xpose.msra.mxu0 %v3363
        %3367 = vmatprep.subr.bf16.mxu0 0
        %3368 = vmatpush1.bf16.xpose.msra.mxu0 0
        %3369 = vmatprep.subr.bf16.mxu0 0
        %3370 = vmatpush1.bf16.xpose.msra.mxu0 0
        %3371 = vmatprep.subr.bf16.mxu0 0
        %3372 = vmatpush1.bf16.xpose.msra.mxu0 0
        %3373 = vmatprep.subr.bf16.mxu0 0
        %3374 = vmatpush1.bf16.xpose.msra.mxu0 0
        %3375 = vmatprep.subr.bf16.mxu0 0
        %3376 = vmatpush1.bf16.xpose.msra.mxu0 0
        %3377 = vmatprep.subr.bf16.mxu0 0
        %3378 = vmatpush1.bf16.xpose.msra.mxu0 0
        %3379 = vmatprep.subr.bf16.mxu0 0
        %3380 = vmatpush1.bf16.xpose.msra.mxu0 0
        %3381 = vmatprep.subr.bf16.mxu0 0
        %3382 = vmatpush1.bf16.xpose.msra.mxu0 0
        %3383 = vmatprep.subr.bf16.mxu0 0
        %3384 = vmatpush1.bf16.xpose.msra.mxu0 0
        %3385 = vmatprep.subr.bf16.mxu0 0
        %3386 = vmatpush1.bf16.xpose.msra.mxu0 0
        %3387 = vmatprep.subr.bf16.mxu0 0
        %3388 = vmatpush1.bf16.xpose.msra.mxu0 0
        %3389 = vmatprep.subr.bf16.mxu0 0
        %3390 = vmatpush1.bf16.xpose.msra.mxu0 0
        %3391 = vmatprep.subr.bf16.mxu0 0
        %3392 = vmatpush1.bf16.xpose.msra.mxu0 0
        %3393 = vmatprep.subr.bf16.mxu0 0
        %3394 = vmatpush1.bf16.xpose.msra.mxu0 0
        %3395 = vmatprep.subr.bf16.mxu0 0
        %3396 = vmatpush1.bf16.xpose.msra.mxu0 0
        %3397 = vmatprep.mubr.bf16.mxu0 0
        %3398 = vmatmul.mubr.bf16.gmra.mrb[0].mxu0 %v3360
        %v3399 = vpop.f32.mrb[0].mxu0
        %v3400 = vadd.f32 0.0, %v3399
        %v3401 = vpop.f32.mrb[0].mxu0
        %v3402 = vpop.f32.mrb[0].mxu0
        %v3403 = vpop.f32.mrb[0].mxu0
        %3404 = vdwg.mxu0
        %v3405 = vmul.f32 %v3262, 0.125
        %v3406 = vmul.f32 %v3308, 0.125
        %v3407 = vmul.f32 %v3354, 0.125
        %v3408 = vmul.f32 %v3400, 0.125
        %v3409 = vadd.f32 %v3405, %v1458
        %v3410 = vadd.f32 %v3406, %v1462
        %v3411 = vadd.f32 %v3407, %v1466
        %v3412 = vadd.f32 %v3408, %v1470
        %v3413 = vsel %vm1479, %v3409, -inf
        %3414 = vmax.xlane.f32.xlu0 %v3413
        %v3415 = vpop.xlane.xlu0 %3414
        %v3416 = vsel %vm1479, %v3410, -inf
        %3417 = vmax.xlane.f32.xlu0 %v3416
        %v3418 = vpop.xlane.xlu0 %3417
        %v3419 = vsel %vm1479, %v3411, -inf
        %3420 = vmax.xlane.f32.xlu0 %v3419
        %v3421 = vpop.xlane.xlu0 %3420
        %v3422 = vsel %vm1479, %v3412, -inf
        %3423 = vmax.xlane.f32.xlu0 %v3422
        %v3424 = vpop.xlane.xlu0 %3423
        %v3425 = vsub.f32 %v3409, %v3415
        %v3426 = vsub.f32 %v3410, %v3418
        %v3427 = vsub.f32 %v3411, %v3421
        %v3428 = vsub.f32 %v3412, %v3424
        %v3429 = vmul.f32 %v3425, 1.442695
        %v3430 = vpow.pop %v3429
        %v3431 = vmul.f32 %v3426, 1.442695
        %v3432 = vpow.pop %v3431
        %v3433 = vmul.f32 %v3427, 1.442695
        %v3434 = vpow.pop %v3433
        %v3435 = vmul.f32 %v3428, 1.442695
        %v3436 = vpow.pop %v3435
        %v3437 = vsel %vm1479, %v3430, 0.0
        %3438 = vadd.xlane.f32.xlu0 %v3437
        %v3439 = vpop.xlane.xlu0 %3438
        %v3440 = vsel %vm1479, %v3432, 0.0
        %3441 = vadd.xlane.f32.xlu0 %v3440
        %v3442 = vpop.xlane.xlu0 %3441
        %v3443 = vsel %vm1479, %v3434, 0.0
        %3444 = vadd.xlane.f32.xlu0 %v3443
        %v3445 = vpop.xlane.xlu0 %3444
        %v3446 = vsel %vm1479, %v3436, 0.0
        %3447 = vadd.xlane.f32.xlu0 %v3446
        %v3448 = vpop.xlane.xlu0 %3447
        %v3449 = vrcp.pop %v3439
        %v3450 = vrcp.pop %v3442
        %v3451 = vrcp.pop %v3445
        %v3452 = vrcp.pop %v3448
        %v3453 = vmul.f32 %v3430, %v3449
        %v3454 = vmul.f32 %v3432, %v3450
        %v3455 = vmul.f32 %v3434, %v3451
        %v3456 = vmul.f32 %v3436, %v3452
        %v3457 = vpack.c.bf16 %v3453, %v3453
        %v3458 = vpack.c.bf16 %v3454, %v3454
        %v3459 = vpack.c.bf16 %v3455, %v3455
        %v3460 = vpack.c.bf16 %v3456, %v3456
        %v3461 = vpack.c.bf16 %v3199, %v3199
        %v3462 = vpack.c.bf16 %v3202, %v3202
        %v3463 = vpack.c.bf16 %v3207, %v3207
        %v3464 = vpack.c.bf16 %v3210, %v3210
        %v3466 = vsel %vm1479, %v3457, 0
        %v3469 = vsel %vm1535, %v3461, 0
        %3471 = vmatprep.subr.bf16.mxu0 0
        %3472 = vmatpush1.bf16.msra.mxu0 %v3469
        %3473 = vmatprep.subr.bf16.mxu0 0
        %3474 = vmatpush1.bf16.msra.mxu0 0
        %3475 = vmatprep.subr.bf16.mxu0 0
        %3476 = vmatpush1.bf16.msra.mxu0 0
        %3477 = vmatprep.subr.bf16.mxu0 0
        %3478 = vmatpush1.bf16.msra.mxu0 0
        %3479 = vmatprep.subr.bf16.mxu0 0
        %3480 = vmatpush1.bf16.msra.mxu0 0
        %3481 = vmatprep.subr.bf16.mxu0 0
        %3482 = vmatpush1.bf16.msra.mxu0 0
        %3483 = vmatprep.subr.bf16.mxu0 0
        %3484 = vmatpush1.bf16.msra.mxu0 0
        %3485 = vmatprep.subr.bf16.mxu0 0
        %3486 = vmatpush1.bf16.msra.mxu0 0
        %3487 = vmatprep.subr.bf16.mxu0 0
        %3488 = vmatpush1.bf16.msra.mxu0 0
        %3489 = vmatprep.subr.bf16.mxu0 0
        %3490 = vmatpush1.bf16.msra.mxu0 0
        %3491 = vmatprep.subr.bf16.mxu0 0
        %3492 = vmatpush1.bf16.msra.mxu0 0
        %3493 = vmatprep.subr.bf16.mxu0 0
        %3494 = vmatpush1.bf16.msra.mxu0 0
        %3495 = vmatprep.subr.bf16.mxu0 0
        %3496 = vmatpush1.bf16.msra.mxu0 0
        %3497 = vmatprep.subr.bf16.mxu0 0
        %3498 = vmatpush1.bf16.msra.mxu0 0
        %3499 = vmatprep.subr.bf16.mxu0 0
        %3500 = vmatpush1.bf16.msra.mxu0 0
        %3501 = vmatprep.subr.bf16.mxu0 0
        %3502 = vmatpush1.bf16.msra.mxu0 0
        %3503 = vmatprep.mubr.bf16.mxu0 0
        %3504 = vmatmul.mubr.bf16.gmra.mrb[0].mxu0 %v3466
        %v3505 = vpop.f32.mrb[0].mxu0
        %v3506 = vadd.f32 0.0, %v3505
        %v3507 = vpop.f32.mrb[0].mxu0
        %v3508 = vpop.f32.mrb[0].mxu0
        %v3509 = vpop.f32.mrb[0].mxu0
        %3510 = vdwg.mxu0
        %v3512 = vsel %vm1479, %v3458, 0
        %v3515 = vsel %vm1535, %v3462, 0
        %3517 = vmatprep.subr.bf16.mxu0 0
        %3518 = vmatpush1.bf16.msra.mxu0 %v3515
        %3519 = vmatprep.subr.bf16.mxu0 0
        %3520 = vmatpush1.bf16.msra.mxu0 0
        %3521 = vmatprep.subr.bf16.mxu0 0
        %3522 = vmatpush1.bf16.msra.mxu0 0
        %3523 = vmatprep.subr.bf16.mxu0 0
        %3524 = vmatpush1.bf16.msra.mxu0 0
        %3525 = vmatprep.subr.bf16.mxu0 0
        %3526 = vmatpush1.bf16.msra.mxu0 0
        %3527 = vmatprep.subr.bf16.mxu0 0
        %3528 = vmatpush1.bf16.msra.mxu0 0
        %3529 = vmatprep.subr.bf16.mxu0 0
        %3530 = vmatpush1.bf16.msra.mxu0 0
        %3531 = vmatprep.subr.bf16.mxu0 0
        %3532 = vmatpush1.bf16.msra.mxu0 0
        %3533 = vmatprep.subr.bf16.mxu0 0
        %3534 = vmatpush1.bf16.msra.mxu0 0
        %3535 = vmatprep.subr.bf16.mxu0 0
        %3536 = vmatpush1.bf16.msra.mxu0 0
        %3537 = vmatprep.subr.bf16.mxu0 0
        %3538 = vmatpush1.bf16.msra.mxu0 0
        %3539 = vmatprep.subr.bf16.mxu0 0
        %3540 = vmatpush1.bf16.msra.mxu0 0
        %3541 = vmatprep.subr.bf16.mxu0 0
        %3542 = vmatpush1.bf16.msra.mxu0 0
        %3543 = vmatprep.subr.bf16.mxu0 0
        %3544 = vmatpush1.bf16.msra.mxu0 0
        %3545 = vmatprep.subr.bf16.mxu0 0
        %3546 = vmatpush1.bf16.msra.mxu0 0
        %3547 = vmatprep.subr.bf16.mxu0 0
        %3548 = vmatpush1.bf16.msra.mxu0 0
        %3549 = vmatprep.mubr.bf16.mxu0 0
        %3550 = vmatmul.mubr.bf16.gmra.mrb[0].mxu0 %v3512
        %v3551 = vpop.f32.mrb[0].mxu0
        %v3552 = vadd.f32 0.0, %v3551
        %v3553 = vpop.f32.mrb[0].mxu0
        %v3554 = vpop.f32.mrb[0].mxu0
        %v3555 = vpop.f32.mrb[0].mxu0
        %3556 = vdwg.mxu0
        %v3558 = vsel %vm1479, %v3459, 0
        %v3561 = vsel %vm1535, %v3463, 0
        %3563 = vmatprep.subr.bf16.mxu0 0
        %3564 = vmatpush1.bf16.msra.mxu0 %v3561
        %3565 = vmatprep.subr.bf16.mxu0 0
        %3566 = vmatpush1.bf16.msra.mxu0 0
        %3567 = vmatprep.subr.bf16.mxu0 0
        %3568 = vmatpush1.bf16.msra.mxu0 0
        %3569 = vmatprep.subr.bf16.mxu0 0
        %3570 = vmatpush1.bf16.msra.mxu0 0
        %3571 = vmatprep.subr.bf16.mxu0 0
        %3572 = vmatpush1.bf16.msra.mxu0 0
        %3573 = vmatprep.subr.bf16.mxu0 0
        %3574 = vmatpush1.bf16.msra.mxu0 0
        %3575 = vmatprep.subr.bf16.mxu0 0
        %3576 = vmatpush1.bf16.msra.mxu0 0
        %3577 = vmatprep.subr.bf16.mxu0 0
        %3578 = vmatpush1.bf16.msra.mxu0 0
        %3579 = vmatprep.subr.bf16.mxu0 0
        %3580 = vmatpush1.bf16.msra.mxu0 0
        %3581 = vmatprep.subr.bf16.mxu0 0
        %3582 = vmatpush1.bf16.msra.mxu0 0
        %3583 = vmatprep.subr.bf16.mxu0 0
        %3584 = vmatpush1.bf16.msra.mxu0 0
        %3585 = vmatprep.subr.bf16.mxu0 0
        %3586 = vmatpush1.bf16.msra.mxu0 0
        %3587 = vmatprep.subr.bf16.mxu0 0
        %3588 = vmatpush1.bf16.msra.mxu0 0
        %3589 = vmatprep.subr.bf16.mxu0 0
        %3590 = vmatpush1.bf16.msra.mxu0 0
        %3591 = vmatprep.subr.bf16.mxu0 0
        %3592 = vmatpush1.bf16.msra.mxu0 0
        %3593 = vmatprep.subr.bf16.mxu0 0
        %3594 = vmatpush1.bf16.msra.mxu0 0
        %3595 = vmatprep.mubr.bf16.mxu0 0
        %3596 = vmatmul.mubr.bf16.gmra.mrb[0].mxu0 %v3558
        %v3597 = vpop.f32.mrb[0].mxu0
        %v3598 = vadd.f32 0.0, %v3597
        %v3599 = vpop.f32.mrb[0].mxu0
        %v3600 = vpop.f32.mrb[0].mxu0
        %v3601 = vpop.f32.mrb[0].mxu0
        %3602 = vdwg.mxu0
        %v3604 = vsel %vm1479, %v3460, 0
        %v3607 = vsel %vm1535, %v3464, 0
        %3609 = vmatprep.subr.bf16.mxu0 0
        %3610 = vmatpush1.bf16.msra.mxu0 %v3607
        %3611 = vmatprep.subr.bf16.mxu0 0
        %3612 = vmatpush1.bf16.msra.mxu0 0
        %3613 = vmatprep.subr.bf16.mxu0 0
        %3614 = vmatpush1.bf16.msra.mxu0 0
        %3615 = vmatprep.subr.bf16.mxu0 0
        %3616 = vmatpush1.bf16.msra.mxu0 0
        %3617 = vmatprep.subr.bf16.mxu0 0
        %3618 = vmatpush1.bf16.msra.mxu0 0
        %3619 = vmatprep.subr.bf16.mxu0 0
        %3620 = vmatpush1.bf16.msra.mxu0 0
        %3621 = vmatprep.subr.bf16.mxu0 0
        %3622 = vmatpush1.bf16.msra.mxu0 0
        %3623 = vmatprep.subr.bf16.mxu0 0
        %3624 = vmatpush1.bf16.msra.mxu0 0
        %3625 = vmatprep.subr.bf16.mxu0 0
        %3626 = vmatpush1.bf16.msra.mxu0 0
        %3627 = vmatprep.subr.bf16.mxu0 0
        %3628 = vmatpush1.bf16.msra.mxu0 0
        %3629 = vmatprep.subr.bf16.mxu0 0
        %3630 = vmatpush1.bf16.msra.mxu0 0
        %3631 = vmatprep.subr.bf16.mxu0 0
        %3632 = vmatpush1.bf16.msra.mxu0 0
        %3633 = vmatprep.subr.bf16.mxu0 0
        %3634 = vmatpush1.bf16.msra.mxu0 0
        %3635 = vmatprep.subr.bf16.mxu0 0
        %3636 = vmatpush1.bf16.msra.mxu0 0
        %3637 = vmatprep.subr.bf16.mxu0 0
        %3638 = vmatpush1.bf16.msra.mxu0 0
        %3639 = vmatprep.subr.bf16.mxu0 0
        %3640 = vmatpush1.bf16.msra.mxu0 0
        %3641 = vmatprep.mubr.bf16.mxu0 0
        %3642 = vmatmul.mubr.bf16.gmra.mrb[0].mxu0 %v3604
        %v3643 = vpop.f32.mrb[0].mxu0
        %v3644 = vadd.f32 0.0, %v3643
        %v3645 = vpop.f32.mrb[0].mxu0
        %v3646 = vpop.f32.mrb[0].mxu0
        %v3647 = vpop.f32.mrb[0].mxu0
        %3648 = vdwg.mxu0
        %s3649 = scalar_lea.vmem [#allocation9], 64
        %v3650 = vld [vmem:[%s3649] sm:$0xf]
        %v3651 = vld [vmem:[%s3649 + $0x4] sm:$0xf]
        %v3652 = vld [vmem:[%s3649 + $0x8] sm:$0xf]
        %v3653 = vld [vmem:[%s3649 + $0xc] sm:$0xf]
        %v3654 = vld [vmem:[%s3649 + $0x10] sm:$0xf]
        %v3655 = vld [vmem:[%s3649 + $0x14] sm:$0xf]
        %v3656 = vld [vmem:[%s3649 + $0x18] sm:$0xf]
        %v3657 = vld [vmem:[%s3649 + $0x1c] sm:$0xf]
        %v3658 = vpack.c.bf16 %v3552, %v3506
        %v3659 = vpack.c.bf16 %v3644, %v3598
        %3661 = vrot.lane.b32.xlu0 %v3213, 64
        %v3662 = vpop.permute.xlu0 %3661
        %3664 = vrot.lane.b32.xlu0 %v3217, 64
        %v3665 = vpop.permute.xlu0 %3664
        %v3667 = vsel %vm1262, %v3662, 0
        %v3670 = vsel %vm1262, %v3665, 0
        %3672 = vmatprep.subr.bf16.mxu0 0
        %3673 = vmatpush1.bf16.xpose.msra.mxu0 %v3670
        %3674 = vmatprep.subr.bf16.mxu0 0
        %3675 = vmatpush1.bf16.xpose.msra.mxu0 0
        %3676 = vmatprep.subr.bf16.mxu0 0
        %3677 = vmatpush1.bf16.xpose.msra.mxu0 0
        %3678 = vmatprep.subr.bf16.mxu0 0
        %3679 = vmatpush1.bf16.xpose.msra.mxu0 0
        %3680 = vmatprep.subr.bf16.mxu0 0
        %3681 = vmatpush1.bf16.xpose.msra.mxu0 0
        %3682 = vmatprep.subr.bf16.mxu0 0
        %3683 = vmatpush1.bf16.xpose.msra.mxu0 0
        %3684 = vmatprep.subr.bf16.mxu0 0
        %3685 = vmatpush1.bf16.xpose.msra.mxu0 0
        %3686 = vmatprep.subr.bf16.mxu0 0
        %3687 = vmatpush1.bf16.xpose.msra.mxu0 0
        %3688 = vmatprep.subr.bf16.mxu0 0
        %3689 = vmatpush1.bf16.xpose.msra.mxu0 0
        %3690 = vmatprep.subr.bf16.mxu0 0
        %3691 = vmatpush1.bf16.xpose.msra.mxu0 0
        %3692 = vmatprep.subr.bf16.mxu0 0
        %3693 = vmatpush1.bf16.xpose.msra.mxu0 0
        %3694 = vmatprep.subr.bf16.mxu0 0
        %3695 = vmatpush1.bf16.xpose.msra.mxu0 0
        %3696 = vmatprep.subr.bf16.mxu0 0
        %3697 = vmatpush1.bf16.xpose.msra.mxu0 0
        %3698 = vmatprep.subr.bf16.mxu0 0
        %3699 = vmatpush1.bf16.xpose.msra.mxu0 0
        %3700 = vmatprep.subr.bf16.mxu0 0
        %3701 = vmatpush1.bf16.xpose.msra.mxu0 0
        %3702 = vmatprep.subr.bf16.mxu0 0
        %3703 = vmatpush1.bf16.xpose.msra.mxu0 0
        %3704 = vmatprep.mubr.bf16.mxu0 0
        %3705 = vmatmul.mubr.bf16.gmra.mrb[0].mxu0 %v3667
        %v3706 = vpop.f32.mrb[0].mxu0
        %v3707 = vadd.f32 0.0, %v3706
        %v3708 = vpop.f32.mrb[0].mxu0
        %v3709 = vpop.f32.mrb[0].mxu0
        %v3710 = vpop.f32.mrb[0].mxu0
        %3711 = vdwg.mxu0
        %3713 = vrot.lane.b32.xlu0 %v3214, 64
        %v3714 = vpop.permute.xlu0 %3713
        %3716 = vrot.lane.b32.xlu0 %v3218, 64
        %v3717 = vpop.permute.xlu0 %3716
        %v3719 = vsel %vm1262, %v3714, 0
        %v3722 = vsel %vm1262, %v3717, 0
        %3724 = vmatprep.subr.bf16.mxu0 0
        %3725 = vmatpush1.bf16.xpose.msra.mxu0 %v3722
        %3726 = vmatprep.subr.bf16.mxu0 0
        %3727 = vmatpush1.bf16.xpose.msra.mxu0 0
        %3728 = vmatprep.subr.bf16.mxu0 0
        %3729 = vmatpush1.bf16.xpose.msra.mxu0 0
        %3730 = vmatprep.subr.bf16.mxu0 0
        %3731 = vmatpush1.bf16.xpose.msra.mxu0 0
        %3732 = vmatprep.subr.bf16.mxu0 0
        %3733 = vmatpush1.bf16.xpose.msra.mxu0 0
        %3734 = vmatprep.subr.bf16.mxu0 0
        %3735 = vmatpush1.bf16.xpose.msra.mxu0 0
        %3736 = vmatprep.subr.bf16.mxu0 0
        %3737 = vmatpush1.bf16.xpose.msra.mxu0 0
        %3738 = vmatprep.subr.bf16.mxu0 0
        %3739 = vmatpush1.bf16.xpose.msra.mxu0 0
        %3740 = vmatprep.subr.bf16.mxu0 0
        %3741 = vmatpush1.bf16.xpose.msra.mxu0 0
        %3742 = vmatprep.subr.bf16.mxu0 0
        %3743 = vmatpush1.bf16.xpose.msra.mxu0 0
        %3744 = vmatprep.subr.bf16.mxu0 0
        %3745 = vmatpush1.bf16.xpose.msra.mxu0 0
        %3746 = vmatprep.subr.bf16.mxu0 0
        %3747 = vmatpush1.bf16.xpose.msra.mxu0 0
        %3748 = vmatprep.subr.bf16.mxu0 0
        %3749 = vmatpush1.bf16.xpose.msra.mxu0 0
        %3750 = vmatprep.subr.bf16.mxu0 0
        %3751 = vmatpush1.bf16.xpose.msra.mxu0 0
        %3752 = vmatprep.subr.bf16.mxu0 0
        %3753 = vmatpush1.bf16.xpose.msra.mxu0 0
        %3754 = vmatprep.subr.bf16.mxu0 0
        %3755 = vmatpush1.bf16.xpose.msra.mxu0 0
        %3756 = vmatprep.mubr.bf16.mxu0 0
        %3757 = vmatmul.mubr.bf16.gmra.mrb[0].mxu0 %v3719
        %v3758 = vpop.f32.mrb[0].mxu0
        %v3759 = vadd.f32 0.0, %v3758
        %v3760 = vpop.f32.mrb[0].mxu0
        %v3761 = vpop.f32.mrb[0].mxu0
        %v3762 = vpop.f32.mrb[0].mxu0
        %3763 = vdwg.mxu0
        %3765 = vrot.lane.b32.xlu0 %v3215, 64
        %v3766 = vpop.permute.xlu0 %3765
        %3768 = vrot.lane.b32.xlu0 %v3219, 64
        %v3769 = vpop.permute.xlu0 %3768
        %v3771 = vsel %vm1262, %v3766, 0
        %v3774 = vsel %vm1262, %v3769, 0
        %3776 = vmatprep.subr.bf16.mxu0 0
        %3777 = vmatpush1.bf16.xpose.msra.mxu0 %v3774
        %3778 = vmatprep.subr.bf16.mxu0 0
        %3779 = vmatpush1.bf16.xpose.msra.mxu0 0
        %3780 = vmatprep.subr.bf16.mxu0 0
        %3781 = vmatpush1.bf16.xpose.msra.mxu0 0
        %3782 = vmatprep.subr.bf16.mxu0 0
        %3783 = vmatpush1.bf16.xpose.msra.mxu0 0
        %3784 = vmatprep.subr.bf16.mxu0 0
        %3785 = vmatpush1.bf16.xpose.msra.mxu0 0
        %3786 = vmatprep.subr.bf16.mxu0 0
        %3787 = vmatpush1.bf16.xpose.msra.mxu0 0
        %3788 = vmatprep.subr.bf16.mxu0 0
        %3789 = vmatpush1.bf16.xpose.msra.mxu0 0
        %3790 = vmatprep.subr.bf16.mxu0 0
        %3791 = vmatpush1.bf16.xpose.msra.mxu0 0
        %3792 = vmatprep.subr.bf16.mxu0 0
        %3793 = vmatpush1.bf16.xpose.msra.mxu0 0
        %3794 = vmatprep.subr.bf16.mxu0 0
        %3795 = vmatpush1.bf16.xpose.msra.mxu0 0
        %3796 = vmatprep.subr.bf16.mxu0 0
        %3797 = vmatpush1.bf16.xpose.msra.mxu0 0
        %3798 = vmatprep.subr.bf16.mxu0 0
        %3799 = vmatpush1.bf16.xpose.msra.mxu0 0
        %3800 = vmatprep.subr.bf16.mxu0 0
        %3801 = vmatpush1.bf16.xpose.msra.mxu0 0
        %3802 = vmatprep.subr.bf16.mxu0 0
        %3803 = vmatpush1.bf16.xpose.msra.mxu0 0
        %3804 = vmatprep.subr.bf16.mxu0 0
        %3805 = vmatpush1.bf16.xpose.msra.mxu0 0
        %3806 = vmatprep.subr.bf16.mxu0 0
        %3807 = vmatpush1.bf16.xpose.msra.mxu0 0
        %3808 = vmatprep.mubr.bf16.mxu0 0
        %3809 = vmatmul.mubr.bf16.gmra.mrb[0].mxu0 %v3771
        %v3810 = vpop.f32.mrb[0].mxu0
        %v3811 = vadd.f32 0.0, %v3810
        %v3812 = vpop.f32.mrb[0].mxu0
        %v3813 = vpop.f32.mrb[0].mxu0
        %v3814 = vpop.f32.mrb[0].mxu0
        %3815 = vdwg.mxu0
        %3817 = vrot.lane.b32.xlu0 %v3216, 64
        %v3818 = vpop.permute.xlu0 %3817
        %3820 = vrot.lane.b32.xlu0 %v3220, 64
        %v3821 = vpop.permute.xlu0 %3820
        %v3823 = vsel %vm1262, %v3818, 0
        %v3826 = vsel %vm1262, %v3821, 0
        %3828 = vmatprep.subr.bf16.mxu0 0
        %3829 = vmatpush1.bf16.xpose.msra.mxu0 %v3826
        %3830 = vmatprep.subr.bf16.mxu0 0
        %3831 = vmatpush1.bf16.xpose.msra.mxu0 0
        %3832 = vmatprep.subr.bf16.mxu0 0
        %3833 = vmatpush1.bf16.xpose.msra.mxu0 0
        %3834 = vmatprep.subr.bf16.mxu0 0
        %3835 = vmatpush1.bf16.xpose.msra.mxu0 0
        %3836 = vmatprep.subr.bf16.mxu0 0
        %3837 = vmatpush1.bf16.xpose.msra.mxu0 0
        %3838 = vmatprep.subr.bf16.mxu0 0
        %3839 = vmatpush1.bf16.xpose.msra.mxu0 0
        %3840 = vmatprep.subr.bf16.mxu0 0
        %3841 = vmatpush1.bf16.xpose.msra.mxu0 0
        %3842 = vmatprep.subr.bf16.mxu0 0
        %3843 = vmatpush1.bf16.xpose.msra.mxu0 0
        %3844 = vmatprep.subr.bf16.mxu0 0
        %3845 = vmatpush1.bf16.xpose.msra.mxu0 0
        %3846 = vmatprep.subr.bf16.mxu0 0
        %3847 = vmatpush1.bf16.xpose.msra.mxu0 0
        %3848 = vmatprep.subr.bf16.mxu0 0
        %3849 = vmatpush1.bf16.xpose.msra.mxu0 0
        %3850 = vmatprep.subr.bf16.mxu0 0
        %3851 = vmatpush1.bf16.xpose.msra.mxu0 0
        %3852 = vmatprep.subr.bf16.mxu0 0
        %3853 = vmatpush1.bf16.xpose.msra.mxu0 0
        %3854 = vmatprep.subr.bf16.mxu0 0
        %3855 = vmatpush1.bf16.xpose.msra.mxu0 0
        %3856 = vmatprep.subr.bf16.mxu0 0
        %3857 = vmatpush1.bf16.xpose.msra.mxu0 0
        %3858 = vmatprep.subr.bf16.mxu0 0
        %3859 = vmatpush1.bf16.xpose.msra.mxu0 0
        %3860 = vmatprep.mubr.bf16.mxu0 0
        %3861 = vmatmul.mubr.bf16.gmra.mrb[0].mxu0 %v3823
        %v3862 = vpop.f32.mrb[0].mxu0
        %v3863 = vadd.f32 0.0, %v3862
        %v3864 = vpop.f32.mrb[0].mxu0
        %v3865 = vpop.f32.mrb[0].mxu0
        %v3866 = vpop.f32.mrb[0].mxu0
        %3867 = vdwg.mxu0
        %v3868 = vmul.f32 %v3707, 0.125
        %v3869 = vmul.f32 %v3759, 0.125
        %v3870 = vmul.f32 %v3811, 0.125
        %v3871 = vmul.f32 %v3863, 0.125
        %v3872 = vadd.f32 %v3868, %v1458
        %v3873 = vadd.f32 %v3869, %v1462
        %v3874 = vadd.f32 %v3870, %v1466
        %v3875 = vadd.f32 %v3871, %v1470
        %v3876 = vsel %vm1479, %v3872, -inf
        %3877 = vmax.xlane.f32.xlu0 %v3876
        %v3878 = vpop.xlane.xlu0 %3877
        %v3879 = vsel %vm1479, %v3873, -inf
        %3880 = vmax.xlane.f32.xlu0 %v3879
        %v3881 = vpop.xlane.xlu0 %3880
        %v3882 = vsel %vm1479, %v3874, -inf
        %3883 = vmax.xlane.f32.xlu0 %v3882
        %v3884 = vpop.xlane.xlu0 %3883
        %v3885 = vsel %vm1479, %v3875, -inf
        %3886 = vmax.xlane.f32.xlu0 %v3885
        %v3887 = vpop.xlane.xlu0 %3886
        %v3888 = vsub.f32 %v3872, %v3878
        %v3889 = vsub.f32 %v3873, %v3881
        %v3890 = vsub.f32 %v3874, %v3884
        %v3891 = vsub.f32 %v3875, %v3887
        %v3892 = vmul.f32 %v3888, 1.442695
        %v3893 = vpow.pop %v3892
        %v3894 = vmul.f32 %v3889, 1.442695
        %v3895 = vpow.pop %v3894
        %v3896 = vmul.f32 %v3890, 1.442695
        %v3897 = vpow.pop %v3896
        %v3898 = vmul.f32 %v3891, 1.442695
        %v3899 = vpow.pop %v3898
        %v3900 = vsel %vm1479, %v3893, 0.0
        %3901 = vadd.xlane.f32.xlu0 %v3900
        %v3902 = vpop.xlane.xlu0 %3901
        %v3903 = vsel %vm1479, %v3895, 0.0
        %3904 = vadd.xlane.f32.xlu0 %v3903
        %v3905 = vpop.xlane.xlu0 %3904
        %v3906 = vsel %vm1479, %v3897, 0.0
        %3907 = vadd.xlane.f32.xlu0 %v3906
        %v3908 = vpop.xlane.xlu0 %3907
        %v3909 = vsel %vm1479, %v3899, 0.0
        %3910 = vadd.xlane.f32.xlu0 %v3909
        %v3911 = vpop.xlane.xlu0 %3910
        %v3912 = vrcp.pop %v3902
        %v3913 = vrcp.pop %v3905
        %v3914 = vrcp.pop %v3908
        %v3915 = vrcp.pop %v3911
        %v3916 = vmul.f32 %v3893, %v3912
        %v3917 = vmul.f32 %v3895, %v3913
        %v3918 = vmul.f32 %v3897, %v3914
        %v3919 = vmul.f32 %v3899, %v3915
        %v3920 = vpack.c.bf16 %v3916, %v3916
        %v3921 = vpack.c.bf16 %v3917, %v3917
        %v3922 = vpack.c.bf16 %v3918, %v3918
        %v3923 = vpack.c.bf16 %v3919, %v3919
        %3925 = vrot.lane.b32.xlu0 %v3461, 64
        %v3926 = vpop.permute.xlu0 %3925
        %v3928 = vsel %vm1479, %v3920, 0
        %v3931 = vsel %vm1535, %v3926, 0
        %3933 = vmatprep.subr.bf16.mxu0 0
        %3934 = vmatpush1.bf16.msra.mxu0 %v3931
        %3935 = vmatprep.subr.bf16.mxu0 0
        %3936 = vmatpush1.bf16.msra.mxu0 0
        %3937 = vmatprep.subr.bf16.mxu0 0
        %3938 = vmatpush1.bf16.msra.mxu0 0
        %3939 = vmatprep.subr.bf16.mxu0 0
        %3940 = vmatpush1.bf16.msra.mxu0 0
        %3941 = vmatprep.subr.bf16.mxu0 0
        %3942 = vmatpush1.bf16.msra.mxu0 0
        %3943 = vmatprep.subr.bf16.mxu0 0
        %3944 = vmatpush1.bf16.msra.mxu0 0
        %3945 = vmatprep.subr.bf16.mxu0 0
        %3946 = vmatpush1.bf16.msra.mxu0 0
        %3947 = vmatprep.subr.bf16.mxu0 0
        %3948 = vmatpush1.bf16.msra.mxu0 0
        %3949 = vmatprep.subr.bf16.mxu0 0
        %3950 = vmatpush1.bf16.msra.mxu0 0
        %3951 = vmatprep.subr.bf16.mxu0 0
        %3952 = vmatpush1.bf16.msra.mxu0 0
        %3953 = vmatprep.subr.bf16.mxu0 0
        %3954 = vmatpush1.bf16.msra.mxu0 0
        %3955 = vmatprep.subr.bf16.mxu0 0
        %3956 = vmatpush1.bf16.msra.mxu0 0
        %3957 = vmatprep.subr.bf16.mxu0 0
        %3958 = vmatpush1.bf16.msra.mxu0 0
        %3959 = vmatprep.subr.bf16.mxu0 0
        %3960 = vmatpush1.bf16.msra.mxu0 0
        %3961 = vmatprep.subr.bf16.mxu0 0
        %3962 = vmatpush1.bf16.msra.mxu0 0
        %3963 = vmatprep.subr.bf16.mxu0 0
        %3964 = vmatpush1.bf16.msra.mxu0 0
        %3965 = vmatprep.mubr.bf16.mxu0 0
        %3966 = vmatmul.mubr.bf16.gmra.mrb[0].mxu0 %v3928
        %v3967 = vpop.f32.mrb[0].mxu0
        %v3968 = vadd.f32 0.0, %v3967
        %v3969 = vpop.f32.mrb[0].mxu0
        %v3970 = vpop.f32.mrb[0].mxu0
        %v3971 = vpop.f32.mrb[0].mxu0
        %3972 = vdwg.mxu0
        %3974 = vrot.lane.b32.xlu0 %v3462, 64
        %v3975 = vpop.permute.xlu0 %3974
        %v3977 = vsel %vm1479, %v3921, 0
        %v3980 = vsel %vm1535, %v3975, 0
        %3982 = vmatprep.subr.bf16.mxu0 0
        %3983 = vmatpush1.bf16.msra.mxu0 %v3980
        %3984 = vmatprep.subr.bf16.mxu0 0
        %3985 = vmatpush1.bf16.msra.mxu0 0
        %3986 = vmatprep.subr.bf16.mxu0 0
        %3987 = vmatpush1.bf16.msra.mxu0 0
        %3988 = vmatprep.subr.bf16.mxu0 0
        %3989 = vmatpush1.bf16.msra.mxu0 0
        %3990 = vmatprep.subr.bf16.mxu0 0
        %3991 = vmatpush1.bf16.msra.mxu0 0
        %3992 = vmatprep.subr.bf16.mxu0 0
        %3993 = vmatpush1.bf16.msra.mxu0 0
        %3994 = vmatprep.subr.bf16.mxu0 0
        %3995 = vmatpush1.bf16.msra.mxu0 0
        %3996 = vmatprep.subr.bf16.mxu0 0
        %3997 = vmatpush1.bf16.msra.mxu0 0
        %3998 = vmatprep.subr.bf16.mxu0 0
        %3999 = vmatpush1.bf16.msra.mxu0 0
        %4000 = vmatprep.subr.bf16.mxu0 0
        %4001 = vmatpush1.bf16.msra.mxu0 0
        %4002 = vmatprep.subr.bf16.mxu0 0
        %4003 = vmatpush1.bf16.msra.mxu0 0
        %4004 = vmatprep.subr.bf16.mxu0 0
        %4005 = vmatpush1.bf16.msra.mxu0 0
        %4006 = vmatprep.subr.bf16.mxu0 0
        %4007 = vmatpush1.bf16.msra.mxu0 0
        %4008 = vmatprep.subr.bf16.mxu0 0
        %4009 = vmatpush1.bf16.msra.mxu0 0
        %4010 = vmatprep.subr.bf16.mxu0 0
        %4011 = vmatpush1.bf16.msra.mxu0 0
        %4012 = vmatprep.subr.bf16.mxu0 0
        %4013 = vmatpush1.bf16.msra.mxu0 0
        %4014 = vmatprep.mubr.bf16.mxu0 0
        %4015 = vmatmul.mubr.bf16.gmra.mrb[0].mxu0 %v3977
        %v4016 = vpop.f32.mrb[0].mxu0
        %v4017 = vadd.f32 0.0, %v4016
        %v4018 = vpop.f32.mrb[0].mxu0
        %v4019 = vpop.f32.mrb[0].mxu0
        %v4020 = vpop.f32.mrb[0].mxu0
        %4021 = vdwg.mxu0
        %4023 = vrot.lane.b32.xlu0 %v3463, 64
        %v4024 = vpop.permute.xlu0 %4023
        %v4026 = vsel %vm1479, %v3922, 0
        %v4029 = vsel %vm1535, %v4024, 0
        %4031 = vmatprep.subr.bf16.mxu0 0
        %4032 = vmatpush1.bf16.msra.mxu0 %v4029
        %4033 = vmatprep.subr.bf16.mxu0 0
        %4034 = vmatpush1.bf16.msra.mxu0 0
        %4035 = vmatprep.subr.bf16.mxu0 0
        %4036 = vmatpush1.bf16.msra.mxu0 0
        %4037 = vmatprep.subr.bf16.mxu0 0
        %4038 = vmatpush1.bf16.msra.mxu0 0
        %4039 = vmatprep.subr.bf16.mxu0 0
        %4040 = vmatpush1.bf16.msra.mxu0 0
        %4041 = vmatprep.subr.bf16.mxu0 0
        %4042 = vmatpush1.bf16.msra.mxu0 0
        %4043 = vmatprep.subr.bf16.mxu0 0
        %4044 = vmatpush1.bf16.msra.mxu0 0
        %4045 = vmatprep.subr.bf16.mxu0 0
        %4046 = vmatpush1.bf16.msra.mxu0 0
        %4047 = vmatprep.subr.bf16.mxu0 0
        %4048 = vmatpush1.bf16.msra.mxu0 0
        %4049 = vmatprep.subr.bf16.mxu0 0
        %4050 = vmatpush1.bf16.msra.mxu0 0
        %4051 = vmatprep.subr.bf16.mxu0 0
        %4052 = vmatpush1.bf16.msra.mxu0 0
        %4053 = vmatprep.subr.bf16.mxu0 0
        %4054 = vmatpush1.bf16.msra.mxu0 0
        %4055 = vmatprep.subr.bf16.mxu0 0
        %4056 = vmatpush1.bf16.msra.mxu0 0
        %4057 = vmatprep.subr.bf16.mxu0 0
        %4058 = vmatpush1.bf16.msra.mxu0 0
        %4059 = vmatprep.subr.bf16.mxu0 0
        %4060 = vmatpush1.bf16.msra.mxu0 0
        %4061 = vmatprep.subr.bf16.mxu0 0
        %4062 = vmatpush1.bf16.msra.mxu0 0
        %4063 = vmatprep.mubr.bf16.mxu0 0
        %4064 = vmatmul.mubr.bf16.gmra.mrb[0].mxu0 %v4026
        %v4065 = vpop.f32.mrb[0].mxu0
        %v4066 = vadd.f32 0.0, %v4065
        %v4067 = vpop.f32.mrb[0].mxu0
        %v4068 = vpop.f32.mrb[0].mxu0
        %v4069 = vpop.f32.mrb[0].mxu0
        %4070 = vdwg.mxu0
        %4072 = vrot.lane.b32.xlu0 %v3464, 64
        %v4073 = vpop.permute.xlu0 %4072
        %v4075 = vsel %vm1479, %v3923, 0
        %v4078 = vsel %vm1535, %v4073, 0
        %4080 = vmatprep.subr.bf16.mxu0 0
        %4081 = vmatpush1.bf16.msra.mxu0 %v4078
        %4082 = vmatprep.subr.bf16.mxu0 0
        %4083 = vmatpush1.bf16.msra.mxu0 0
        %4084 = vmatprep.subr.bf16.mxu0 0
        %4085 = vmatpush1.bf16.msra.mxu0 0
        %4086 = vmatprep.subr.bf16.mxu0 0
        %4087 = vmatpush1.bf16.msra.mxu0 0
        %4088 = vmatprep.subr.bf16.mxu0 0
        %4089 = vmatpush1.bf16.msra.mxu0 0
        %4090 = vmatprep.subr.bf16.mxu0 0
        %4091 = vmatpush1.bf16.msra.mxu0 0
        %4092 = vmatprep.subr.bf16.mxu0 0
        %4093 = vmatpush1.bf16.msra.mxu0 0
        %4094 = vmatprep.subr.bf16.mxu0 0
        %4095 = vmatpush1.bf16.msra.mxu0 0
        %4096 = vmatprep.subr.bf16.mxu0 0
        %4097 = vmatpush1.bf16.msra.mxu0 0
        %4098 = vmatprep.subr.bf16.mxu0 0
        %4099 = vmatpush1.bf16.msra.mxu0 0
        %4100 = vmatprep.subr.bf16.mxu0 0
        %4101 = vmatpush1.bf16.msra.mxu0 0
        %4102 = vmatprep.subr.bf16.mxu0 0
        %4103 = vmatpush1.bf16.msra.mxu0 0
        %4104 = vmatprep.subr.bf16.mxu0 0
        %4105 = vmatpush1.bf16.msra.mxu0 0
        %4106 = vmatprep.subr.bf16.mxu0 0
        %4107 = vmatpush1.bf16.msra.mxu0 0
        %4108 = vmatprep.subr.bf16.mxu0 0
        %4109 = vmatpush1.bf16.msra.mxu0 0
        %4110 = vmatprep.subr.bf16.mxu0 0
        %4111 = vmatpush1.bf16.msra.mxu0 0
        %4112 = vmatprep.mubr.bf16.mxu0 0
        %4113 = vmatmul.mubr.bf16.gmra.mrb[0].mxu0 %v4075
        %v4114 = vpop.f32.mrb[0].mxu0
        %v4115 = vadd.f32 0.0, %v4114
        %v4116 = vpop.f32.mrb[0].mxu0
        %v4117 = vpop.f32.mrb[0].mxu0
        %v4118 = vpop.f32.mrb[0].mxu0
        %4119 = vdwg.mxu0
        %s4120 = scalar_lea.vmem [#allocation9], 96
        %v4121 = vld [vmem:[%s4120] sm:$0xf]
        %v4122 = vld [vmem:[%s4120 + $0x4] sm:$0xf]
        %v4123 = vld [vmem:[%s4120 + $0x8] sm:$0xf]
        %v4124 = vld [vmem:[%s4120 + $0xc] sm:$0xf]
        %v4125 = vld [vmem:[%s4120 + $0x10] sm:$0xf]
        %v4126 = vld [vmem:[%s4120 + $0x14] sm:$0xf]
        %v4127 = vld [vmem:[%s4120 + $0x18] sm:$0xf]
        %v4128 = vld [vmem:[%s4120 + $0x1c] sm:$0xf]
        %v4129 = vpack.c.bf16 %v4017, %v3968
        %v4130 = vpack.c.bf16 %v4115, %v4066
        %v4139 = vunpack.c.l.b16 %v4121
        %v4140 = vunpack.c.l.b16 %v4122
        %v4141 = vunpack.c.l.b16 %v4123
        %v4142 = vunpack.c.l.b16 %v4124
        %v4143 = vunpack.c.l.b16 %v4125
        %v4144 = vunpack.c.l.b16 %v4126
        %v4145 = vunpack.c.l.b16 %v4127
        %v4146 = vunpack.c.l.b16 %v4128
        %v4147 = vpack.c.b16 %v4140, %v4139
        %v4148 = vpack.c.b16 %v4142, %v4141
        %v4149 = vpack.c.b16 %v4144, %v4143
        %v4150 = vpack.c.b16 %v4146, %v4145
        %v4156 = vsel %vm1262, %v4129, 0
        %v4159 = vsel %vm1262, %v4130, 0
        %4161 = vmatprep.subr.bf16.mxu0 0
        %4162 = vmatpush1.bf16.msra.mxu0 %v4147
        %4163 = vmatprep.subr.bf16.mxu0 0
        %4164 = vmatpush1.bf16.msra.mxu0 %v4148
        %4165 = vmatprep.subr.bf16.mxu0 0
        %4166 = vmatpush1.bf16.msra.mxu0 %v4149
        %4167 = vmatprep.subr.bf16.mxu0 0
        %4168 = vmatpush1.bf16.msra.mxu0 %v4150
        %4169 = vmatprep.subr.bf16.mxu0 0
        %4170 = vmatpush1.bf16.msra.mxu0 0
        %4171 = vmatprep.subr.bf16.mxu0 0
        %4172 = vmatpush1.bf16.msra.mxu0 0
        %4173 = vmatprep.subr.bf16.mxu0 0
        %4174 = vmatpush1.bf16.msra.mxu0 0
        %4175 = vmatprep.subr.bf16.mxu0 0
        %4176 = vmatpush1.bf16.msra.mxu0 0
        %4177 = vmatprep.subr.bf16.mxu0 0
        %4178 = vmatpush1.bf16.msra.mxu0 0
        %4179 = vmatprep.subr.bf16.mxu0 0
        %4180 = vmatpush1.bf16.msra.mxu0 0
        %4181 = vmatprep.subr.bf16.mxu0 0
        %4182 = vmatpush1.bf16.msra.mxu0 0
        %4183 = vmatprep.subr.bf16.mxu0 0
        %4184 = vmatpush1.bf16.msra.mxu0 0
        %4185 = vmatprep.subr.bf16.mxu0 0
        %4186 = vmatpush1.bf16.msra.mxu0 0
        %4187 = vmatprep.subr.bf16.mxu0 0
        %4188 = vmatpush1.bf16.msra.mxu0 0
        %4189 = vmatprep.subr.bf16.mxu0 0
        %4190 = vmatpush1.bf16.msra.mxu0 0
        %4191 = vmatprep.subr.bf16.mxu0 0
        %4192 = vmatpush1.bf16.msra.mxu0 0
        %4193 = vmatprep.mubr.bf16.mxu0 0
        %4194 = vmatmul.mubr.bf16.gmra.mrb[0].mxu0 %v4156
        %v4195 = vpop.f32.mrb[0].mxu0
        %v4196 = vadd.f32 0.0, %v4195
        %v4197 = vpop.f32.mrb[0].mxu0
        %v4198 = vpop.f32.mrb[0].mxu0
        %v4199 = vadd.f32 0.0, %v4198
        %v4200 = vpop.f32.mrb[0].mxu0
        %4201 = vmatprep.mubr.bf16.mxu0 0
        %4202 = vmatmul.mubr.bf16.gmra.mrb[0].mxu0 %v4159
        %v4203 = vpop.f32.mrb[0].mxu0
        %v4204 = vadd.f32 0.0, %v4203
        %v4205 = vpop.f32.mrb[0].mxu0
        %v4206 = vpop.f32.mrb[0].mxu0
        %v4207 = vadd.f32 0.0, %v4206
        %v4208 = vpop.f32.mrb[0].mxu0
        %4209 = vdwg.mxu0
        %v4218 = vunpack.c.l.b16 %v3650
        %v4219 = vunpack.c.l.b16 %v3651
        %v4220 = vunpack.c.l.b16 %v3652
        %v4221 = vunpack.c.l.b16 %v3653
        %v4222 = vunpack.c.l.b16 %v3654
        %v4223 = vunpack.c.l.b16 %v3655
        %v4224 = vunpack.c.l.b16 %v3656
        %v4225 = vunpack.c.l.b16 %v3657
        %v4226 = vpack.c.b16 %v4219, %v4218
        %v4227 = vpack.c.b16 %v4221, %v4220
        %v4228 = vpack.c.b16 %v4223, %v4222
        %v4229 = vpack.c.b16 %v4225, %v4224
        %v4235 = vsel %vm1262, %v3658, 0
        %v4238 = vsel %vm1262, %v3659, 0
        %4240 = vmatprep.subr.bf16.mxu0 0
        %4241 = vmatpush1.bf16.msra.mxu0 %v4226
        %4242 = vmatprep.subr.bf16.mxu0 0
        %4243 = vmatpush1.bf16.msra.mxu0 %v4227
        %4244 = vmatprep.subr.bf16.mxu0 0
        %4245 = vmatpush1.bf16.msra.mxu0 %v4228
        %4246 = vmatprep.subr.bf16.mxu0 0
        %4247 = vmatpush1.bf16.msra.mxu0 %v4229
        %4248 = vmatprep.subr.bf16.mxu0 0
        %4249 = vmatpush1.bf16.msra.mxu0 0
        %4250 = vmatprep.subr.bf16.mxu0 0
        %4251 = vmatpush1.bf16.msra.mxu0 0
        %4252 = vmatprep.subr.bf16.mxu0 0
        %4253 = vmatpush1.bf16.msra.mxu0 0
        %4254 = vmatprep.subr.bf16.mxu0 0
        %4255 = vmatpush1.bf16.msra.mxu0 0
        %4256 = vmatprep.subr.bf16.mxu0 0
        %4257 = vmatpush1.bf16.msra.mxu0 0
        %4258 = vmatprep.subr.bf16.mxu0 0
        %4259 = vmatpush1.bf16.msra.mxu0 0
        %4260 = vmatprep.subr.bf16.mxu0 0
        %4261 = vmatpush1.bf16.msra.mxu0 0
        %4262 = vmatprep.subr.bf16.mxu0 0
        %4263 = vmatpush1.bf16.msra.mxu0 0
        %4264 = vmatprep.subr.bf16.mxu0 0
        %4265 = vmatpush1.bf16.msra.mxu0 0
        %4266 = vmatprep.subr.bf16.mxu0 0
        %4267 = vmatpush1.bf16.msra.mxu0 0
        %4268 = vmatprep.subr.bf16.mxu0 0
        %4269 = vmatpush1.bf16.msra.mxu0 0
        %4270 = vmatprep.subr.bf16.mxu0 0
        %4271 = vmatpush1.bf16.msra.mxu0 0
        %4272 = vmatprep.mubr.bf16.mxu0 0
        %4273 = vmatmul.mubr.bf16.gmra.mrb[0].mxu0 %v4235
        %v4274 = vpop.f32.mrb[0].mxu0
        %v4275 = vadd.f32 %v4196, %v4274
        %v4276 = vpop.f32.mrb[0].mxu0
        %v4277 = vpop.f32.mrb[0].mxu0
        %v4278 = vadd.f32 %v4199, %v4277
        %v4279 = vpop.f32.mrb[0].mxu0
        %4280 = vmatprep.mubr.bf16.mxu0 0
        %4281 = vmatmul.mubr.bf16.gmra.mrb[0].mxu0 %v4238
        %v4282 = vpop.f32.mrb[0].mxu0
        %v4283 = vadd.f32 %v4204, %v4282
        %v4284 = vpop.f32.mrb[0].mxu0
        %v4285 = vpop.f32.mrb[0].mxu0
        %v4286 = vadd.f32 %v4207, %v4285
        %v4287 = vpop.f32.mrb[0].mxu0
        %4288 = vdwg.mxu0
        %s4289 = scalar_lea.vmem %s10, 1
        %v4290 = vld [vmem:[%s4289] sm:$0x1]
        %v4292 = vlaneseq
        %v4293 = vshrl.u32 %v4292, 7
        %v4294 = vsub.s32 0, %v4293
        %v4295 = vrot.slane %v4290, %v4294
        %v4297 = vadd.f32 %v4275, %v4295
        %v4298 = vadd.f32 %v4278, %v4295
        %v4299 = vadd.f32 %v4283, %v4295
        %v4300 = vadd.f32 %v4286, %v4295
        %v4301 = vadd.f32 %v4297, %v2926
        %v4302 = vadd.f32 %v4298, %v2927
        %v4303 = vadd.f32 %v4299, %v2928
        %v4304 = vadd.f32 %v4300, %v2929
        %s4305 = scalar_lea.vmem %s11, 1
        %v4306 = vld [vmem:[%s4305] sm:$0x1]
        %s4307 = scalar_lea.vmem %s12, 1
        %v4308 = vld [vmem:[%s4307] sm:$0x1]
        %4309 = vadd.xlane.f32.xlu0 %v4301
        %v4310 = vpop.xlane.xlu0 %4309
        %4311 = vadd.xlane.f32.xlu0 %v4302
        %v4312 = vpop.xlane.xlu0 %4311
        %4313 = vadd.xlane.f32.xlu0 %v4303
        %v4314 = vpop.xlane.xlu0 %4313
        %4315 = vadd.xlane.f32.xlu0 %v4304
        %v4316 = vpop.xlane.xlu0 %4315
        %v4317 = vmul.f32 %v4310, %v912
        %v4318 = vmul.f32 %v4312, %v912
        %v4319 = vmul.f32 %v4314, %v912
        %v4320 = vmul.f32 %v4316, %v912
        %v4321 = vsub.f32 %v4301, %v4317
        %v4322 = vsub.f32 %v4302, %v4318
        %v4323 = vsub.f32 %v4303, %v4319
        %v4324 = vsub.f32 %v4304, %v4320
        %v4325 = vmul.f32 %v4321, %v4321
        %v4326 = vmul.f32 %v4322, %v4322
        %v4327 = vmul.f32 %v4323, %v4323
        %v4328 = vmul.f32 %v4324, %v4324
        %4329 = vadd.xlane.f32.xlu0 %v4325
        %v4330 = vpop.xlane.xlu0 %4329
        %4331 = vadd.xlane.f32.xlu0 %v4326
        %v4332 = vpop.xlane.xlu0 %4331
        %4333 = vadd.xlane.f32.xlu0 %v4327
        %v4334 = vpop.xlane.xlu0 %4333
        %4335 = vadd.xlane.f32.xlu0 %v4328
        %v4336 = vpop.xlane.xlu0 %4335
        %v4337 = vmul.f32 %v4330, %v912
        %v4338 = vmul.f32 %v4332, %v912
        %v4339 = vmul.f32 %v4334, %v912
        %v4340 = vmul.f32 %v4336, %v912
        %v4341 = vadd.f32 %v4337, 1e-12
        %v4342 = vadd.f32 %v4338, 1e-12
        %v4343 = vadd.f32 %v4339, 1e-12
        %v4344 = vadd.f32 %v4340, 1e-12
        %v4345 = vrsqrt.pop %v4341
        %v4346 = vrsqrt.pop %v4342
        %v4347 = vrsqrt.pop %v4343
        %v4348 = vrsqrt.pop %v4344
        %v4349 = vmul.f32 %v4321, %v4345
        %v4350 = vmul.f32 %v4322, %v4346
        %v4351 = vmul.f32 %v4323, %v4347
        %v4352 = vmul.f32 %v4324, %v4348
        %v4354 = vlaneseq
        %v4355 = vshrl.u32 %v4354, 7
        %v4356 = vsub.s32 0, %v4355
        %v4357 = vrot.slane %v4306, %v4356
        %v4359 = vmul.f32 %v4349, %v4357
        %v4360 = vmul.f32 %v4350, %v4357
        %v4361 = vmul.f32 %v4351, %v4357
        %v4362 = vmul.f32 %v4352, %v4357
        %v4364 = vlaneseq
        %v4365 = vshrl.u32 %v4364, 7
        %v4366 = vsub.s32 0, %v4365
        %v4367 = vrot.slane %v4308, %v4366
        %v4369 = vadd.f32 %v4359, %v4367
        %v4370 = vadd.f32 %v4360, %v4367
        %v4371 = vadd.f32 %v4361, %v4367
        %v4372 = vadd.f32 %v4362, %v4367
        %s4373 = scalar_lea.vmem [#allocation10], 128
        %v4374 = vld [vmem:[%s4373] sm:$0xff]
        %v4375 = vld [vmem:[%s4373 + $0x8] sm:$0xff]
        %v4376 = vld [vmem:[%s4373 + $0x10] sm:$0xff]
        %v4377 = vld [vmem:[%s4373 + $0x18] sm:$0xff]
        %v4378 = vld [vmem:[%s4373 + $0x20] sm:$0xff]
        %v4379 = vld [vmem:[%s4373 + $0x28] sm:$0xff]
        %v4380 = vld [vmem:[%s4373 + $0x30] sm:$0xff]
        %v4381 = vld [vmem:[%s4373 + $0x38] sm:$0xff]
        %v4382 = vld [vmem:[%s4373 + $0x40] sm:$0xff]
        %v4383 = vld [vmem:[%s4373 + $0x48] sm:$0xff]
        %v4384 = vld [vmem:[%s4373 + $0x50] sm:$0xff]
        %v4385 = vld [vmem:[%s4373 + $0x58] sm:$0xff]
        %v4386 = vld [vmem:[%s4373 + $0x60] sm:$0xff]
        %v4387 = vld [vmem:[%s4373 + $0x68] sm:$0xff]
        %v4388 = vld [vmem:[%s4373 + $0x70] sm:$0xff]
        %v4389 = vld [vmem:[%s4373 + $0x78] sm:$0xff]
        %v4390 = vpack.c.bf16 %v4370, %v4369
        %v4391 = vpack.c.bf16 %v4372, %v4371
        %s4392 = scalar_lea.vmem %s14, 2
        %v4393 = vld [vmem:[%s4392] sm:$0x3]
        %v4395 = vlaneseq
        %v4396 = vshrl.u32 %v4395, 7
        %v4397 = vsub.s32 0, %v4396
        %v4398 = vrot.slane %v4393, %v4397
        %v4399 = vlaneseq
        %v4400 = vshrl.u32 %v4399, 7
        %v4401 = vsub.s32 1, %v4400
        %v4402 = vrot.slane %v4393, %v4401
        %v4421 = vunpack.c.l.b16 %v4374
        %v4422 = vunpack.c.h.b16 %v4374
        %v4423 = vunpack.c.l.b16 %v4375
        %v4424 = vunpack.c.h.b16 %v4375
        %v4425 = vunpack.c.l.b16 %v4376
        %v4426 = vunpack.c.h.b16 %v4376
        %v4427 = vunpack.c.l.b16 %v4377
        %v4428 = vunpack.c.h.b16 %v4377
        %v4429 = vunpack.c.l.b16 %v4378
        %v4430 = vunpack.c.h.b16 %v4378
        %v4431 = vunpack.c.l.b16 %v4379
        %v4432 = vunpack.c.h.b16 %v4379
        %v4433 = vunpack.c.l.b16 %v4380
        %v4434 = vunpack.c.h.b16 %v4380
        %v4435 = vunpack.c.l.b16 %v4381
        %v4436 = vunpack.c.h.b16 %v4381
        %v4437 = vunpack.c.l.b16 %v4382
        %v4438 = vunpack.c.h.b16 %v4382
        %v4439 = vunpack.c.l.b16 %v4383
        %v4440 = vunpack.c.h.b16 %v4383
        %v4441 = vunpack.c.l.b16 %v4384
        %v4442 = vunpack.c.h.b16 %v4384
        %v4443 = vunpack.c.l.b16 %v4385
        %v4444 = vunpack.c.h.b16 %v4385
        %v4445 = vunpack.c.l.b16 %v4386
        %v4446 = vunpack.c.h.b16 %v4386
        %v4447 = vunpack.c.l.b16 %v4387
        %v4448 = vunpack.c.h.b16 %v4387
        %v4449 = vunpack.c.l.b16 %v4388
        %v4450 = vunpack.c.h.b16 %v4388
        %v4451 = vunpack.c.l.b16 %v4389
        %v4452 = vunpack.c.h.b16 %v4389
        %v4453 = vpack.c.b16 %v4423, %v4421
        %v4454 = vpack.c.b16 %v4424, %v4422
        %v4455 = vpack.c.b16 %v4427, %v4425
        %v4456 = vpack.c.b16 %v4428, %v4426
        %v4457 = vpack.c.b16 %v4431, %v4429
        %v4458 = vpack.c.b16 %v4432, %v4430
        %v4459 = vpack.c.b16 %v4435, %v4433
        %v4460 = vpack.c.b16 %v4436, %v4434
        %v4461 = vpack.c.b16 %v4439, %v4437
        %v4462 = vpack.c.b16 %v4440, %v4438
        %v4463 = vpack.c.b16 %v4443, %v4441
        %v4464 = vpack.c.b16 %v4444, %v4442
        %v4465 = vpack.c.b16 %v4447, %v4445
        %v4466 = vpack.c.b16 %v4448, %v4446
        %v4467 = vpack.c.b16 %v4451, %v4449
        %v4468 = vpack.c.b16 %v4452, %v4450
        %4485 = vmatprep.subr.bf16.mxu0 %v4454
        %4486 = vmatpush1.bf16.msra.mxu0 %v4453
        %4487 = vmatprep.subr.bf16.mxu0 %v4456
        %4488 = vmatpush1.bf16.msra.mxu0 %v4455
        %4489 = vmatprep.subr.bf16.mxu0 %v4458
        %4490 = vmatpush1.bf16.msra.mxu0 %v4457
        %4491 = vmatprep.subr.bf16.mxu0 %v4460
        %4492 = vmatpush1.bf16.msra.mxu0 %v4459
        %4493 = vmatprep.subr.bf16.mxu0 %v4462
        %4494 = vmatpush1.bf16.msra.mxu0 %v4461
        %4495 = vmatprep.subr.bf16.mxu0 %v4464
        %4496 = vmatpush1.bf16.msra.mxu0 %v4463
        %4497 = vmatprep.subr.bf16.mxu0 %v4466
        %4498 = vmatpush1.bf16.msra.mxu0 %v4465
        %4499 = vmatprep.subr.bf16.mxu0 %v4468
        %4500 = vmatpush1.bf16.msra.mxu0 %v4467
        %4501 = vmatprep.subr.bf16.mxu0 0
        %4502 = vmatpush1.bf16.msra.mxu0 0
        %4503 = vmatprep.subr.bf16.mxu0 0
        %4504 = vmatpush1.bf16.msra.mxu0 0
        %4505 = vmatprep.subr.bf16.mxu0 0
        %4506 = vmatpush1.bf16.msra.mxu0 0
        %4507 = vmatprep.subr.bf16.mxu0 0
        %4508 = vmatpush1.bf16.msra.mxu0 0
        %4509 = vmatprep.subr.bf16.mxu0 0
        %4510 = vmatpush1.bf16.msra.mxu0 0
        %4511 = vmatprep.subr.bf16.mxu0 0
        %4512 = vmatpush1.bf16.msra.mxu0 0
        %4513 = vmatprep.subr.bf16.mxu0 0
        %4514 = vmatpush1.bf16.msra.mxu0 0
        %4515 = vmatprep.subr.bf16.mxu0 0
        %4516 = vmatpush1.bf16.msra.mxu0 0
        %4517 = vmatprep.mubr.bf16.mxu0 0
        %4518 = vmatmul.mubr.bf16.gmra.mrb[0].mxu0 %v4390
        %v4519 = vpop.f32.mrb[0].mxu0
        %v4520 = vadd.f32 %v4398, %v4519
        %v4521 = vpop.f32.mrb[0].mxu0
        %v4522 = vadd.f32 %v4402, %v4521
        %v4523 = vpop.f32.mrb[0].mxu0
        %v4524 = vadd.f32 %v4398, %v4523
        %v4525 = vpop.f32.mrb[0].mxu0
        %v4526 = vadd.f32 %v4402, %v4525
        %4527 = vmatprep.mubr.bf16.mxu0 0
        %4528 = vmatmul.mubr.bf16.gmra.mrb[0].mxu0 %v4391
        %v4529 = vpop.f32.mrb[0].mxu0
        %v4530 = vadd.f32 %v4398, %v4529
        %v4531 = vpop.f32.mrb[0].mxu0
        %v4532 = vadd.f32 %v4402, %v4531
        %v4533 = vpop.f32.mrb[0].mxu0
        %v4534 = vadd.f32 %v4398, %v4533
        %v4535 = vpop.f32.mrb[0].mxu0
        %v4536 = vadd.f32 %v4402, %v4535
        %4537 = vdwg.mxu0
        %v4538 = vmul.f32 %v4520, 0.5
        %v4539 = vmul.f32 %v4522, 0.5
        %v4540 = vmul.f32 %v4524, 0.5
        %v4541 = vmul.f32 %v4526, 0.5
        %v4542 = vmul.f32 %v4530, 0.5
        %v4543 = vmul.f32 %v4532, 0.5
        %v4544 = vmul.f32 %v4534, 0.5
        %v4545 = vmul.f32 %v4536, 0.5
        %v4546 = vmul.f32 %v4520, 0.044715
        %v4547 = vmul.f32 %v4522, 0.044715
        %v4548 = vmul.f32 %v4524, 0.044715
        %v4549 = vmul.f32 %v4526, 0.044715
        %v4550 = vmul.f32 %v4530, 0.044715
        %v4551 = vmul.f32 %v4532, 0.044715
        %v4552 = vmul.f32 %v4534, 0.044715
        %v4553 = vmul.f32 %v4536, 0.044715
        %v4554 = vmul.f32 %v4546, %v4520
        %v4555 = vmul.f32 %v4547, %v4522
        %v4556 = vmul.f32 %v4548, %v4524
        %v4557 = vmul.f32 %v4549, %v4526
        %v4558 = vmul.f32 %v4550, %v4530
        %v4559 = vmul.f32 %v4551, %v4532
        %v4560 = vmul.f32 %v4552, %v4534
        %v4561 = vmul.f32 %v4553, %v4536
        %v4562 = vmul.f32 %v4554, %v4520
        %v4563 = vmul.f32 %v4555, %v4522
        %v4564 = vmul.f32 %v4556, %v4524
        %v4565 = vmul.f32 %v4557, %v4526
        %v4566 = vmul.f32 %v4558, %v4530
        %v4567 = vmul.f32 %v4559, %v4532
        %v4568 = vmul.f32 %v4560, %v4534
        %v4569 = vmul.f32 %v4561, %v4536
        %v4570 = vadd.f32 %v4520, %v4562
        %v4571 = vadd.f32 %v4522, %v4563
        %v4572 = vadd.f32 %v4524, %v4564
        %v4573 = vadd.f32 %v4526, %v4565
        %v4574 = vadd.f32 %v4530, %v4566
        %v4575 = vadd.f32 %v4532, %v4567
        %v4576 = vadd.f32 %v4534, %v4568
        %v4577 = vadd.f32 %v4536, %v4569
        %v4578 = vmul.f32 %v4570, 0.7978846
        %v4579 = vmul.f32 %v4571, 0.7978846
        %v4580 = vmul.f32 %v4572, 0.7978846
        %v4581 = vmul.f32 %v4573, 0.7978846
        %v4582 = vmul.f32 %v4574, 0.7978846
        %v4583 = vmul.f32 %v4575, 0.7978846
        %v4584 = vmul.f32 %v4576, 0.7978846
        %v4585 = vmul.f32 %v4577, 0.7978846
        %v4586 = vtanh.pop %v4578
        %v4587 = vtanh.pop %v4579
        %v4588 = vtanh.pop %v4580
        %v4589 = vtanh.pop %v4581
        %v4590 = vtanh.pop %v4582
        %v4591 = vtanh.pop %v4583
        %v4592 = vtanh.pop %v4584
        %v4593 = vtanh.pop %v4585
        %v4594 = vadd.f32 %v4586, 1.0
        %v4595 = vadd.f32 %v4587, 1.0
        %v4596 = vadd.f32 %v4588, 1.0
        %v4597 = vadd.f32 %v4589, 1.0
        %v4598 = vadd.f32 %v4590, 1.0
        %v4599 = vadd.f32 %v4591, 1.0
        %v4600 = vadd.f32 %v4592, 1.0
        %v4601 = vadd.f32 %v4593, 1.0
        %v4602 = vmul.f32 %v4538, %v4594
        %v4603 = vmul.f32 %v4539, %v4595
        %v4604 = vmul.f32 %v4540, %v4596
        %v4605 = vmul.f32 %v4541, %v4597
        %v4606 = vmul.f32 %v4542, %v4598
        %v4607 = vmul.f32 %v4543, %v4599
        %v4608 = vmul.f32 %v4544, %v4600
        %v4609 = vmul.f32 %v4545, %v4601
        %s4610 = scalar_lea.vmem [#allocation12], 128
        %v4611 = vld [vmem:[%s4610] sm:$0xf]
        %v4612 = vld [vmem:[%s4610 + $0x4] sm:$0xf]
        %v4613 = vld [vmem:[%s4610 + $0x8] sm:$0xf]
        %v4614 = vld [vmem:[%s4610 + $0xc] sm:$0xf]
        %v4615 = vld [vmem:[%s4610 + $0x10] sm:$0xf]
        %v4616 = vld [vmem:[%s4610 + $0x14] sm:$0xf]
        %v4617 = vld [vmem:[%s4610 + $0x18] sm:$0xf]
        %v4618 = vld [vmem:[%s4610 + $0x1c] sm:$0xf]
        %v4619 = vld [vmem:[%s4610 + $0x20] sm:$0xf]
        %v4620 = vld [vmem:[%s4610 + $0x24] sm:$0xf]
        %v4621 = vld [vmem:[%s4610 + $0x28] sm:$0xf]
        %v4622 = vld [vmem:[%s4610 + $0x2c] sm:$0xf]
        %v4623 = vld [vmem:[%s4610 + $0x30] sm:$0xf]
        %v4624 = vld [vmem:[%s4610 + $0x34] sm:$0xf]
        %v4625 = vld [vmem:[%s4610 + $0x38] sm:$0xf]
        %v4626 = vld [vmem:[%s4610 + $0x3c] sm:$0xf]
        %v4627 = vld [vmem:[%s4610 + $0x40] sm:$0xf]
        %v4628 = vld [vmem:[%s4610 + $0x44] sm:$0xf]
        %v4629 = vld [vmem:[%s4610 + $0x48] sm:$0xf]
        %v4630 = vld [vmem:[%s4610 + $0x4c] sm:$0xf]
        %v4631 = vld [vmem:[%s4610 + $0x50] sm:$0xf]
        %v4632 = vld [vmem:[%s4610 + $0x54] sm:$0xf]
        %v4633 = vld [vmem:[%s4610 + $0x58] sm:$0xf]
        %v4634 = vld [vmem:[%s4610 + $0x5c] sm:$0xf]
        %v4635 = vld [vmem:[%s4610 + $0x60] sm:$0xf]
        %v4636 = vld [vmem:[%s4610 + $0x64] sm:$0xf]
        %v4637 = vld [vmem:[%s4610 + $0x68] sm:$0xf]
        %v4638 = vld [vmem:[%s4610 + $0x6c] sm:$0xf]
        %v4639 = vld [vmem:[%s4610 + $0x70] sm:$0xf]
        %v4640 = vld [vmem:[%s4610 + $0x74] sm:$0xf]
        %v4641 = vld [vmem:[%s4610 + $0x78] sm:$0xf]
        %v4642 = vld [vmem:[%s4610 + $0x7c] sm:$0xf]
        %v4643 = vpack.c.bf16 %v4604, %v4602
        %v4644 = vpack.c.bf16 %v4605, %v4603
        %v4645 = vpack.c.bf16 %v4608, %v4606
        %v4646 = vpack.c.bf16 %v4609, %v4607
        %s4647 = scalar_lea.vmem %s16, 1
        %v4648 = vld [vmem:[%s4647] sm:$0x1]
        %v4650 = vlaneseq
        %v4651 = vshrl.u32 %v4650, 7
        %v4652 = vsub.s32 0, %v4651
        %v4653 = vrot.slane %v4648, %v4652
        %v4687 = vunpack.c.l.b16 %v4611
        %v4688 = vunpack.c.l.b16 %v4612
        %v4689 = vunpack.c.l.b16 %v4613
        %v4690 = vunpack.c.l.b16 %v4614
        %v4691 = vunpack.c.l.b16 %v4615
        %v4692 = vunpack.c.l.b16 %v4616
        %v4693 = vunpack.c.l.b16 %v4617
        %v4694 = vunpack.c.l.b16 %v4618
        %v4695 = vunpack.c.l.b16 %v4619
        %v4696 = vunpack.c.l.b16 %v4620
        %v4697 = vunpack.c.l.b16 %v4621
        %v4698 = vunpack.c.l.b16 %v4622
        %v4699 = vunpack.c.l.b16 %v4623
        %v4700 = vunpack.c.l.b16 %v4624
        %v4701 = vunpack.c.l.b16 %v4625
        %v4702 = vunpack.c.l.b16 %v4626
        %v4703 = vunpack.c.l.b16 %v4627
        %v4704 = vunpack.c.l.b16 %v4628
        %v4705 = vunpack.c.l.b16 %v4629
        %v4706 = vunpack.c.l.b16 %v4630
        %v4707 = vunpack.c.l.b16 %v4631
        %v4708 = vunpack.c.l.b16 %v4632
        %v4709 = vunpack.c.l.b16 %v4633
        %v4710 = vunpack.c.l.b16 %v4634
        %v4711 = vunpack.c.l.b16 %v4635
        %v4712 = vunpack.c.l.b16 %v4636
        %v4713 = vunpack.c.l.b16 %v4637
        %v4714 = vunpack.c.l.b16 %v4638
        %v4715 = vunpack.c.l.b16 %v4639
        %v4716 = vunpack.c.l.b16 %v4640
        %v4717 = vunpack.c.l.b16 %v4641
        %v4718 = vunpack.c.l.b16 %v4642
        %v4719 = vpack.c.b16 %v4688, %v4687
        %v4720 = vpack.c.b16 %v4690, %v4689
        %v4721 = vpack.c.b16 %v4692, %v4691
        %v4722 = vpack.c.b16 %v4694, %v4693
        %v4723 = vpack.c.b16 %v4696, %v4695
        %v4724 = vpack.c.b16 %v4698, %v4697
        %v4725 = vpack.c.b16 %v4700, %v4699
        %v4726 = vpack.c.b16 %v4702, %v4701
        %v4727 = vpack.c.b16 %v4704, %v4703
        %v4728 = vpack.c.b16 %v4706, %v4705
        %v4729 = vpack.c.b16 %v4708, %v4707
        %v4730 = vpack.c.b16 %v4710, %v4709
        %v4731 = vpack.c.b16 %v4712, %v4711
        %v4732 = vpack.c.b16 %v4714, %v4713
        %v4733 = vpack.c.b16 %v4716, %v4715
        %v4734 = vpack.c.b16 %v4718, %v4717
        %4751 = vmatprep.subr.bf16.mxu0 0
        %4752 = vmatpush1.bf16.msra.mxu0 %v4719
        %4753 = vmatprep.subr.bf16.mxu0 0
        %4754 = vmatpush1.bf16.msra.mxu0 %v4720
        %4755 = vmatprep.subr.bf16.mxu0 0
        %4756 = vmatpush1.bf16.msra.mxu0 %v4721
        %4757 = vmatprep.subr.bf16.mxu0 0
        %4758 = vmatpush1.bf16.msra.mxu0 %v4722
        %4759 = vmatprep.subr.bf16.mxu0 0
        %4760 = vmatpush1.bf16.msra.mxu0 %v4723
        %4761 = vmatprep.subr.bf16.mxu0 0
        %4762 = vmatpush1.bf16.msra.mxu0 %v4724
        %4763 = vmatprep.subr.bf16.mxu0 0
        %4764 = vmatpush1.bf16.msra.mxu0 %v4725
        %4765 = vmatprep.subr.bf16.mxu0 0
        %4766 = vmatpush1.bf16.msra.mxu0 %v4726
        %4767 = vmatprep.subr.bf16.mxu0 0
        %4768 = vmatpush1.bf16.msra.mxu0 %v4727
        %4769 = vmatprep.subr.bf16.mxu0 0
        %4770 = vmatpush1.bf16.msra.mxu0 %v4728
        %4771 = vmatprep.subr.bf16.mxu0 0
        %4772 = vmatpush1.bf16.msra.mxu0 %v4729
        %4773 = vmatprep.subr.bf16.mxu0 0
        %4774 = vmatpush1.bf16.msra.mxu0 %v4730
        %4775 = vmatprep.subr.bf16.mxu0 0
        %4776 = vmatpush1.bf16.msra.mxu0 %v4731
        %4777 = vmatprep.subr.bf16.mxu0 0
        %4778 = vmatpush1.bf16.msra.mxu0 %v4732
        %4779 = vmatprep.subr.bf16.mxu0 0
        %4780 = vmatpush1.bf16.msra.mxu0 %v4733
        %4781 = vmatprep.subr.bf16.mxu0 0
        %4782 = vmatpush1.bf16.msra.mxu0 %v4734
        %4783 = vmatprep.mubr.bf16.mxu0 %v4644
        %4784 = vmatmul.mubr.bf16.gmra.mrb[0].mxu0 %v4643
        %v4785 = vpop.f32.mrb[0].mxu0
        %v4786 = vadd.f32 %v4653, %v4785
        %v4787 = vpop.f32.mrb[0].mxu0
        %v4788 = vpop.f32.mrb[0].mxu0
        %v4789 = vadd.f32 %v4653, %v4788
        %v4790 = vpop.f32.mrb[0].mxu0
        %4791 = vmatprep.mubr.bf16.mxu0 %v4646
        %4792 = vmatmul.mubr.bf16.gmra.mrb[0].mxu0 %v4645
        %v4793 = vpop.f32.mrb[0].mxu0
        %v4794 = vadd.f32 %v4653, %v4793
        %v4795 = vpop.f32.mrb[0].mxu0
        %v4796 = vpop.f32.mrb[0].mxu0
        %v4797 = vadd.f32 %v4653, %v4796
        %v4798 = vpop.f32.mrb[0].mxu0
        %4799 = vdwg.mxu0
        %v4800 = vadd.f32 %v4786, %v4369
        %v4801 = vadd.f32 %v4789, %v4370
        %v4802 = vadd.f32 %v4794, %v4371
        %v4803 = vadd.f32 %v4797, %v4372
        %s4804 = scalar_lea.vmem %s17, 1
        %v4805 = vld [vmem:[%s4804] sm:$0x1]
        %s4806 = scalar_lea.vmem %s18, 1
        %v4807 = vld [vmem:[%s4806] sm:$0x1]
        %4808 = vadd.xlane.f32.xlu0 %v4800
        %v4809 = vpop.xlane.xlu0 %4808
        %4810 = vadd.xlane.f32.xlu0 %v4801
        %v4811 = vpop.xlane.xlu0 %4810
        %4812 = vadd.xlane.f32.xlu0 %v4802
        %v4813 = vpop.xlane.xlu0 %4812
        %4814 = vadd.xlane.f32.xlu0 %v4803
        %v4815 = vpop.xlane.xlu0 %4814
        %v4816 = vmul.f32 %v4809, %v912
        %v4817 = vmul.f32 %v4811, %v912
        %v4818 = vmul.f32 %v4813, %v912
        %v4819 = vmul.f32 %v4815, %v912
        %v4820 = vsub.f32 %v4800, %v4816
        %v4821 = vsub.f32 %v4801, %v4817
        %v4822 = vsub.f32 %v4802, %v4818
        %v4823 = vsub.f32 %v4803, %v4819
        %v4824 = vmul.f32 %v4820, %v4820
        %v4825 = vmul.f32 %v4821, %v4821
        %v4826 = vmul.f32 %v4822, %v4822
        %v4827 = vmul.f32 %v4823, %v4823
        %4828 = vadd.xlane.f32.xlu0 %v4824
        %v4829 = vpop.xlane.xlu0 %4828
        %4830 = vadd.xlane.f32.xlu0 %v4825
        %v4831 = vpop.xlane.xlu0 %4830
        %4832 = vadd.xlane.f32.xlu0 %v4826
        %v4833 = vpop.xlane.xlu0 %4832
        %4834 = vadd.xlane.f32.xlu0 %v4827
        %v4835 = vpop.xlane.xlu0 %4834
        %v4836 = vmul.f32 %v4829, %v912
        %v4837 = vmul.f32 %v4831, %v912
        %v4838 = vmul.f32 %v4833, %v912
        %v4839 = vmul.f32 %v4835, %v912
        %v4840 = vadd.f32 %v4836, 1e-12
        %v4841 = vadd.f32 %v4837, 1e-12
        %v4842 = vadd.f32 %v4838, 1e-12
        %v4843 = vadd.f32 %v4839, 1e-12
        %v4844 = vrsqrt.pop %v4840
        %v4845 = vrsqrt.pop %v4841
        %v4846 = vrsqrt.pop %v4842
        %v4847 = vrsqrt.pop %v4843
        %v4848 = vmul.f32 %v4820, %v4844
        %v4849 = vmul.f32 %v4821, %v4845
        %v4850 = vmul.f32 %v4822, %v4846
        %v4851 = vmul.f32 %v4823, %v4847
        %v4853 = vlaneseq
        %v4854 = vshrl.u32 %v4853, 7
        %v4855 = vsub.s32 0, %v4854
        %v4856 = vrot.slane %v4805, %v4855
        %v4858 = vmul.f32 %v4848, %v4856
        %v4859 = vmul.f32 %v4849, %v4856
        %v4860 = vmul.f32 %v4850, %v4856
        %v4861 = vmul.f32 %v4851, %v4856
        %v4863 = vlaneseq
        %v4864 = vshrl.u32 %v4863, 7
        %v4865 = vsub.s32 0, %v4864
        %v4866 = vrot.slane %v4807, %v4865
        %v4868 = vadd.f32 %v4858, %v4866
        %v4869 = vadd.f32 %v4859, %v4866
        %v4870 = vadd.f32 %v4860, %v4866
        %v4871 = vadd.f32 %v4861, %v4866
        %v4873 = vrot.slane %v4869, 7
        %v4876 = vrot.slane %v4870, 6
        %v4879 = vrot.slane %v4871, 5
        %vm4881 = vcmask 1040384
        %v4882 = vsel %vm4881, %v4868, %v4873
        %vm4883 = vcmask 1041408
        %v4884 = vsel %vm4883, %v4882, %v4876
        %vm4885 = vcmask 1042432
        %v4886 = vsel %vm4885, %v4884, %v4879
        %v4887 = vld [vmem:[#allocation13] sm:$0xf]
        %v4888 = vld [vmem:[#allocation13 + $0x4] sm:$0xf]
        %v4889 = vld [vmem:[#allocation13 + $0x8] sm:$0xf]
        %v4890 = vld [vmem:[#allocation13 + $0xc] sm:$0xf]
        %v4891 = vld [vmem:[#allocation13 + $0x10] sm:$0xf]
        %v4892 = vld [vmem:[#allocation13 + $0x14] sm:$0xf]
        %v4893 = vld [vmem:[#allocation13 + $0x18] sm:$0xf]
        %v4894 = vld [vmem:[#allocation13 + $0x1c] sm:$0xf]
        %v4895 = vld [vmem:[#allocation13 + $0x20] sm:$0xf]
        %v4896 = vld [vmem:[#allocation13 + $0x24] sm:$0xf]
        %v4897 = vld [vmem:[#allocation13 + $0x28] sm:$0xf]
        %v4898 = vld [vmem:[#allocation13 + $0x2c] sm:$0xf]
        %v4899 = vld [vmem:[#allocation13 + $0x30] sm:$0xf]
        %v4900 = vld [vmem:[#allocation13 + $0x34] sm:$0xf]
        %v4901 = vld [vmem:[#allocation13 + $0x38] sm:$0xf]
        %v4902 = vld [vmem:[#allocation13 + $0x3c] sm:$0xf]
        %v4903 = vpack.c.bf16 %v4886, %v4886
        %v4904 = vld [vmem:[%s20] sm:$0x1]
        %v4906 = vlaneseq
        %v4907 = vshrl.u32 %v4906, 7
        %v4908 = vsub.s32 0, %v4907
        %v4909 = vrot.slane %v4904, %v4908
        %v4927 = vunpack.c.l.b16 %v4887
        %v4928 = vunpack.c.l.b16 %v4888
        %v4929 = vunpack.c.l.b16 %v4889
        %v4930 = vunpack.c.l.b16 %v4890
        %v4931 = vunpack.c.l.b16 %v4891
        %v4932 = vunpack.c.l.b16 %v4892
        %v4933 = vunpack.c.l.b16 %v4893
        %v4934 = vunpack.c.l.b16 %v4894
        %v4935 = vunpack.c.l.b16 %v4895
        %v4936 = vunpack.c.l.b16 %v4896
        %v4937 = vunpack.c.l.b16 %v4897
        %v4938 = vunpack.c.l.b16 %v4898
        %v4939 = vunpack.c.l.b16 %v4899
        %v4940 = vunpack.c.l.b16 %v4900
        %v4941 = vunpack.c.l.b16 %v4901
        %v4942 = vunpack.c.l.b16 %v4902
        %v4943 = vpack.c.b16 %v4928, %v4927
        %v4944 = vpack.c.b16 %v4930, %v4929
        %v4945 = vpack.c.b16 %v4932, %v4931
        %v4946 = vpack.c.b16 %v4934, %v4933
        %v4947 = vpack.c.b16 %v4936, %v4935
        %v4948 = vpack.c.b16 %v4938, %v4937
        %v4949 = vpack.c.b16 %v4940, %v4939
        %v4950 = vpack.c.b16 %v4942, %v4941
        %4959 = vmatprep.subr.bf16.mxu0 0
        %4960 = vmatpush1.bf16.msra.mxu0 %v4943
        %4961 = vmatprep.subr.bf16.mxu0 0
        %4962 = vmatpush1.bf16.msra.mxu0 %v4944
        %4963 = vmatprep.subr.bf16.mxu0 0
        %4964 = vmatpush1.bf16.msra.mxu0 %v4945
        %4965 = vmatprep.subr.bf16.mxu0 0
        %4966 = vmatpush1.bf16.msra.mxu0 %v4946
        %4967 = vmatprep.subr.bf16.mxu0 0
        %4968 = vmatpush1.bf16.msra.mxu0 %v4947
        %4969 = vmatprep.subr.bf16.mxu0 0
        %4970 = vmatpush1.bf16.msra.mxu0 %v4948
        %4971 = vmatprep.subr.bf16.mxu0 0
        %4972 = vmatpush1.bf16.msra.mxu0 %v4949
        %4973 = vmatprep.subr.bf16.mxu0 0
        %4974 = vmatpush1.bf16.msra.mxu0 %v4950
        %4975 = vmatprep.subr.bf16.mxu0 0
        %4976 = vmatpush1.bf16.msra.mxu0 0
        %4977 = vmatprep.subr.bf16.mxu0 0
        %4978 = vmatpush1.bf16.msra.mxu0 0
        %4979 = vmatprep.subr.bf16.mxu0 0
        %4980 = vmatpush1.bf16.msra.mxu0 0
        %4981 = vmatprep.subr.bf16.mxu0 0
        %4982 = vmatpush1.bf16.msra.mxu0 0
        %4983 = vmatprep.subr.bf16.mxu0 0
        %4984 = vmatpush1.bf16.msra.mxu0 0
        %4985 = vmatprep.subr.bf16.mxu0 0
        %4986 = vmatpush1.bf16.msra.mxu0 0
        %4987 = vmatprep.subr.bf16.mxu0 0
        %4988 = vmatpush1.bf16.msra.mxu0 0
        %4989 = vmatprep.subr.bf16.mxu0 0
        %4990 = vmatpush1.bf16.msra.mxu0 0
        %4991 = vmatprep.mubr.bf16.mxu0 0
        %4992 = vmatmul.mubr.bf16.gmra.mrb[0].mxu0 %v4903
        %v4993 = vpop.f32.mrb[0].mxu0
        %v4994 = vadd.f32 %v4909, %v4993
        %v4995 = vpop.f32.mrb[0].mxu0
        %v4996 = vpop.f32.mrb[0].mxu0
        %v4997 = vpop.f32.mrb[0].mxu0
        %4998 = vdwg.mxu0
        %v4999 = vtanh.pop %v4994
        %5000 = vst [vmem:[%s721] sm:$0xf] %v4999
        %p5001 = scmp.lt.s32.totalorder %s42, 1
        %s5002 = scalar_select %p5001, %s42, 1
        %s5003 = smul.addr %s5002, 4
        %s5004 = scalar_lea.vmem %s21, %s5003
        // Predicated region
        $region125: #{bert_forward.1} parent=99 // pred_check
          %p5005 = pneg %p485
        $region126: #{bert_forward.1} parent=99 // pred_check_branch
          %5007 = sbr.rel (%p5005) target = $region128
        $region127: #{bert_forward.1} parent=99 // pred_region
          _
        $region128: #{bert_forward.1} parent=99 // pred_fallthru
          _
      $region100: #{bert_forward.1} parent=5 // pred_fallthru
        _
      %p5008 = scmp.le.s32.totalorder 2, %s37
      // Predicated region
      $region129: #{bert_forward.1} parent=5 // pred_check
        %p5009 = pneg %p5008
      $region130: #{bert_forward.1} parent=5 // pred_check_branch
        %5011 = sbr.rel (%p5009) target = $region132
      $region131: #{bert_forward.1} parent=5 // pred_region
        %s5012 = ssub.s32 %s37, 2
        // Predicated region
        $region133: #{bert_forward.1} parent=131 // pred_check
          %p5013 = pneg %p491
        $region134: #{bert_forward.1} parent=131 // pred_check_branch
          %5015 = sbr.rel (%p5013) target = $region136
        $region135: #{bert_forward.1} parent=131 // pred_region
          %p5016 = scmp.lt.s32.totalorder %s43, 1
          %s5017 = scalar_select %p5016, %s43, 1
          %s5018 = smul.addr %s5017, 4
          %s5019 = scalar_lea.vmem %s21, %s5018
        $region136: #{bert_forward.1} parent=131 // pred_fallthru
          _
      $region132: #{bert_forward.1} parent=5 // pred_fallthru
        _
    $region6: #{bert_forward.1} parent=1 // loop_footer
      %s41 = sadd.s32 1, %s37
    $region7: #{bert_forward.1} parent=1 // loop_footer_branch
      %36 = sbr.rel target = $region3
    $region8: #{bert_forward.1} parent=1 // loop_exit
      _
    %5020 = vsyncpa [#allocation6], 1
    %s5021 = scalar_lea.sflag [#allocation6], 1
    %5022 = vsyncpa %s5021, 1
    %5023 = vsyncpa [#allocation8], 1
    %5024 = vsyncpa [#allocation11], 1
    %5025 = vsyncpa [#allocation14], 1

</llo_original>
